<compile_context>
chip_gen: v5e
topology: v5e:2x2
jax: 0.10.0
libtpu: 0.0.40
codegen_flags: <defaults>
</compile_context>

<pallas_src>
import jax
import jax.numpy as jnp
from jax.experimental import pallas as pl
from jax.experimental.pallas import tpu as pltpu

_LANE = 128
_MAX_TM = 2048   # lane-tile: (32, 2048) f32 input block = 256 KiB / buffer


def _head_kernel(x_ref, w1_ref, b1_ref, w2_ref, b2_ref, feat_ref, mid_ref):
    """Fused 1x1x1-conv + folded-BN + ReLU + 1x1x1-conv on one (C, TM) tile."""
    x = x_ref[0].astype(jnp.float32)                      # (C_in, TM)
    h = jnp.dot(w1_ref[...], x,
                preferred_element_type=jnp.float32,
                precision=jax.lax.Precision.HIGHEST)      # (C_mid, TM)
    h = jnp.maximum(h + b1_ref[...], 0.0)                 # BN folded + ReLU
    feat_ref[0] = h.astype(feat_ref.dtype)
    mid = jnp.dot(w2_ref[...], h,
                  preferred_element_type=jnp.float32,
                  precision=jax.lax.Precision.HIGHEST)    # (C_out, TM)
    mid_ref[0] = (mid + b2_ref[...]).astype(mid_ref.dtype)


def generator_head(x, conv1_w, conv1_b, bn_gamma, bn_beta, bn_mean, bn_var,
                   conv2_w, conv2_b, *, eps=1e-5):
    """conv_out1 -> conv_out2 -> squeeze(dim=1), matching generator.forward.

    x: (N, 32, T, H, W) feature map (output of the TATT block).
    Returns (seq_feats (N, 8, T, H, W), seq_midseg (N, T, H, W) if
    num_classes == 1 else (N, num_classes, T, H, W)).
    """
    N, C_in, T, H, W = x.shape
    C_mid = conv1_w.shape[0]
    C_out = conv2_w.shape[0]

    # Fold conv1 bias + eval-mode BatchNorm3d affine into the conv1 weights.
    inv = (bn_gamma.astype(jnp.float32)
           * jax.lax.rsqrt(bn_var.astype(jnp.float32) + eps))        # (C_mid,)
    w1_eff = conv1_w.reshape(C_mid, C_in).astype(jnp.float32) * inv[:, None]
    b1_eff = ((conv1_b.astype(jnp.float32) - bn_mean.astype(jnp.float32)) * inv
              + bn_beta.astype(jnp.float32)).reshape(C_mid, 1)
    w2 = conv2_w.reshape(C_out, C_mid).astype(jnp.float32)
    b2 = conv2_b.astype(jnp.float32).reshape(C_out, 1)

    # Flatten (T, H, W) into one lane-dense axis; pad it to a tile multiple.
    L0 = T * H * W
    xf = x.reshape(N, C_in, L0)
    L128 = pl.cdiv(L0, _LANE) * _LANE
    tm = L128 if L128 <= _MAX_TM else _MAX_TM
    L = pl.cdiv(L128, tm) * tm
    if L != L0:
        xf = jnp.pad(xf, ((0, 0), (0, 0), (0, L - L0)))

    grid = (N, L // tm)

    feat, mid = pl.pallas_call(
        _head_kernel,
        out_shape=(jax.ShapeDtypeStruct((N, C_mid, L), x.dtype),
                   jax.ShapeDtypeStruct((N, C_out, L), x.dtype)),
        grid_spec=pltpu.PrefetchScalarGridSpec(
            num_scalar_prefetch=0,
            grid=grid,
            in_specs=[
                pl.BlockSpec((1, C_in, tm), lambda n, m: (n, 0, m)),
                pl.BlockSpec((C_mid, C_in), lambda n, m: (0, 0)),
                pl.BlockSpec((C_mid, 1), lambda n, m: (0, 0)),
                pl.BlockSpec((C_out, C_mid), lambda n, m: (0, 0)),
                pl.BlockSpec((C_out, 1), lambda n, m: (0, 0)),
            ],
            out_specs=(
                pl.BlockSpec((1, C_mid, tm), lambda n, m: (n, 0, m)),
                pl.BlockSpec((1, C_out, tm), lambda n, m: (n, 0, m)),
            ),
        ),
        compiler_params=pltpu.CompilerParams(
            dimension_semantics=("parallel", "parallel")),
    )(xf, w1_eff, b1_eff, w2, b2)

    seq_feats = feat[:, :, :L0].reshape(N, C_mid, T, H, W)
    seq_midout = mid[:, :, :L0].reshape(N, C_out, T, H, W)
    # torch .squeeze(dim=1): only drops the dim if it is size 1.
    seq_midseg = seq_midout[:, 0] if C_out == 1 else seq_midout
    return seq_feats, seq_midseg


def generator_head_ref(x, conv1_w, conv1_b, bn_gamma, bn_beta, bn_mean,
                       bn_var, conv2_w, conv2_b, *, eps=1e-5):
    """Pure-JAX reference for the same head."""
    C_mid, C_in = conv1_w.shape[0], conv1_w.shape[1]
    C_out = conv2_w.shape[0]
    xf = x.astype(jnp.float32)
    w1 = conv1_w.reshape(C_mid, C_in).astype(jnp.float32)
    w2 = conv2_w.reshape(C_out, C_mid).astype(jnp.float32)
    y = jnp.einsum('ncthw,oc->nothw', xf, w1,
                   precision=jax.lax.Precision.HIGHEST)
    y = y + conv1_b.astype(jnp.float32).reshape(1, -1, 1, 1, 1)
    inv = (bn_gamma / jnp.sqrt(bn_var.astype(jnp.float32) + eps))
    y = ((y - bn_mean.reshape(1, -1, 1, 1, 1)) * inv.reshape(1, -1, 1, 1, 1)
         + bn_beta.reshape(1, -1, 1, 1, 1))
    feats = jnp.maximum(y, 0.0)
    mid = jnp.einsum('ncthw,oc->nothw', feats, w2,
                     precision=jax.lax.Precision.HIGHEST)
    mid = mid + conv2_b.astype(jnp.float32).reshape(1, -1, 1, 1, 1)
    midseg = mid[:, 0] if C_out == 1 else mid
    return feats.astype(x.dtype), midseg.astype(x.dtype)


def _make_params(key, c_in=32, c_mid=8, num_classes=1):
    ks = jax.random.split(key, 8)
    conv1_w = jax.random.normal(ks[0], (c_mid, c_in, 1, 1, 1), jnp.float32) * 0.2
    conv1_b = jax.random.normal(ks[1], (c_mid,), jnp.float32) * 0.1
    bn_gamma = jax.random.uniform(ks[2], (c_mid,), jnp.float32, 0.5, 1.5)
    bn_beta = jax.random.normal(ks[3], (c_mid,), jnp.float32) * 0.1
    bn_mean = jax.random.normal(ks[4], (c_mid,), jnp.float32) * 0.1
    bn_var = jax.random.uniform(ks[5], (c_mid,), jnp.float32, 0.5, 1.5)
    conv2_w = jax.random.normal(ks[6], (num_classes, c_mid, 1, 1, 1),
                                jnp.float32) * 0.3
    conv2_b = jax.random.normal(ks[7], (num_classes,), jnp.float32) * 0.1
    return (conv1_w, conv1_b, bn_gamma, bn_beta, bn_mean, bn_var,
            conv2_w, conv2_b)


if __name__ == "__main__":
    key = jax.random.PRNGKey(0)
    kx, kp, kx2 = jax.random.split(key, 3)
    params = _make_params(kp)

    # Feature map feeding conv_out1 (output of the TATT block): d_model = 32.
    x = jax.random.normal(kx, (2, 32, 8, 16, 16), dtype=jnp.float32)
    feats, midseg = jax.block_until_ready(generator_head(x, *params))
    feats_r, midseg_r = jax.block_until_ready(generator_head_ref(x, *params))
    assert feats.shape == (2, 8, 8, 16, 16) and midseg.shape == (2, 8, 16, 16)
    assert jnp.allclose(feats, feats_r, atol=1e-4, rtol=1e-4)
    assert jnp.allclose(midseg, midseg_r, atol=1e-4, rtol=1e-4)

    # Non-lane-aligned spatial size exercises the padded-tile path.
    x2 = jax.random.normal(kx2, (1, 32, 5, 15, 9), dtype=jnp.float32)
    feats2, midseg2 = jax.block_until_ready(generator_head(x2, *params))
    feats2_r, midseg2_r = jax.block_until_ready(generator_head_ref(x2, *params))
    assert feats2.shape == (1, 8, 5, 15, 9) and midseg2.shape == (1, 5, 15, 9)
    assert jnp.allclose(feats2, feats2_r, atol=1e-4, rtol=1e-4)
    assert jnp.allclose(midseg2, midseg2_r, atol=1e-4, rtol=1e-4)

    print("KERNEL_OK")
</pallas_src>

<mosaic_0001>
module attributes {stable_mosaic.version = 11 : i64} {
  func.func @_head_kernel(%arg0: i32, %arg1: i32, %arg2: memref<1x32x2048xf32, #tpu.memory_space<vmem>>, %arg3: memref<8x32xf32, #tpu.memory_space<vmem>>, %arg4: memref<8x1xf32, #tpu.memory_space<vmem>>, %arg5: memref<1x8xf32, #tpu.memory_space<vmem>>, %arg6: memref<1x1xf32, #tpu.memory_space<vmem>>, %arg7: memref<1x8x2048xf32, #tpu.memory_space<vmem>>, %arg8: memref<1x1x2048xf32, #tpu.memory_space<vmem>>) attributes {dimension_semantics = [#tpu.dimension_semantics<parallel>, #tpu.dimension_semantics<parallel>], iteration_bounds = array<i64: 2, 1>, scalar_prefetch = 0 : i64, scratch_operands = 0 : i64, tpu.core_type = #tpu.core_type<tc>, window_params = [{transform_indices = @transform_0, window_bounds = array<i64: 1, 32, 2048>}, {pipeline_mode = #tpu.pipeline_mode<synchronous>, transform_indices = @transform_1, window_bounds = array<i64: 8, 32>}, {pipeline_mode = #tpu.pipeline_mode<synchronous>, transform_indices = @transform_2, window_bounds = array<i64: 8, 1>}, {pipeline_mode = #tpu.pipeline_mode<synchronous>, transform_indices = @transform_3, window_bounds = array<i64: 1, 8>}, {pipeline_mode = #tpu.pipeline_mode<synchronous>, transform_indices = @transform_4, window_bounds = array<i64: 1, 1>}, {transform_indices = @transform_5, window_bounds = array<i64: 1, 8, 2048>}, {transform_indices = @transform_6, window_bounds = array<i64: 1, 1, 2048>}]} {
    %c0 = arith.constant 0 : index
    %c0_0 = arith.constant 0 : index
    %c0_1 = arith.constant 0 : index
    %0 = vector.load %arg2[%c0, %c0_0, %c0_1] : memref<1x32x2048xf32, #tpu.memory_space<vmem>>, vector<1x32x2048xf32>
    %1 = vector.shape_cast %0 : vector<1x32x2048xf32> to vector<32x2048xf32>
    %c0_2 = arith.constant 0 : index
    %c0_3 = arith.constant 0 : index
    %2 = vector.load %arg3[%c0_2, %c0_3] : memref<8x32xf32, #tpu.memory_space<vmem>>, vector<8x32xf32>
    %cst = arith.constant dense<0.000000e+00> : vector<8x2048xf32>
    %3 = tpu.matmul %2, %1, %cst {dimension_numbers = #tpu.dot_dimension_numbers<[1], [0], [0], [1], [0, 0, 1, 1], [], []>, precision = #tpu.contract_precision<fp32>} : vector<8x32xf32>, vector<32x2048xf32>, vector<8x2048xf32> -> vector<8x2048xf32>
    %c0_4 = arith.constant 0 : index
    %c0_5 = arith.constant 0 : index
    %4 = vector.load %arg4[%c0_4, %c0_5] : memref<8x1xf32, #tpu.memory_space<vmem>>, vector<8x1xf32>
    %5 = vector.broadcast %4 : vector<8x1xf32> to vector<8x2048xf32>
    %6 = arith.addf %3, %5 : vector<8x2048xf32>
    %cst_6 = arith.constant 0.000000e+00 : f32
    %7 = vector.broadcast %cst_6 : f32 to vector<8x2048xf32>
    %8 = arith.maximumf %6, %7 : vector<8x2048xf32>
    %c0_7 = arith.constant 0 : index
    %c0_8 = arith.constant 0 : index
    %c0_9 = arith.constant 0 : index
    %9 = vector.load %arg7[%c0_7, %c0_8, %c0_9] : memref<1x8x2048xf32, #tpu.memory_space<vmem>>, vector<1x8x2048xf32>
    %10 = vector.shape_cast %9 : vector<1x8x2048xf32> to vector<8x2048xf32>
    %11 = vector.shape_cast %8 : vector<8x2048xf32> to vector<1x8x2048xf32>
    tpu.vector_store %arg7[%c0_7, %c0_8, %c0_9], %11 {strides = array<i32>} : memref<1x8x2048xf32, #tpu.memory_space<vmem>>, vector<1x8x2048xf32>,
    %c0_10 = arith.constant 0 : index
    %c0_11 = arith.constant 0 : index
    %12 = vector.load %arg5[%c0_10, %c0_11] : memref<1x8xf32, #tpu.memory_space<vmem>>, vector<1x8xf32>
    %cst_12 = arith.constant dense<0.000000e+00> : vector<1x2048xf32>
    %13 = tpu.matmul %12, %8, %cst_12 {dimension_numbers = #tpu.dot_dimension_numbers<[1], [0], [0], [1], [0, 0, 1, 1], [], []>, precision = #tpu.contract_precision<fp32>} : vector<1x8xf32>, vector<8x2048xf32>, vector<1x2048xf32> -> vector<1x2048xf32>
    %c0_13 = arith.constant 0 : index
    %c0_14 = arith.constant 0 : index
    %14 = vector.load %arg6[%c0_13, %c0_14] : memref<1x1xf32, #tpu.memory_space<vmem>>, vector<1x1xf32>
    %15 = vector.broadcast %14 : vector<1x1xf32> to vector<1x2048xf32>
    %16 = arith.addf %13, %15 : vector<1x2048xf32>
    %c0_15 = arith.constant 0 : index
    %c0_16 = arith.constant 0 : index
    %c0_17 = arith.constant 0 : index
    %17 = vector.load %arg8[%c0_15, %c0_16, %c0_17] : memref<1x1x2048xf32, #tpu.memory_space<vmem>>, vector<1x1x2048xf32>
    %18 = vector.shape_cast %17 : vector<1x1x2048xf32> to vector<1x2048xf32>
    %19 = vector.shape_cast %16 : vector<1x2048xf32> to vector<1x1x2048xf32>
    tpu.vector_store %arg8[%c0_15, %c0_16, %c0_17], %19 {strides = array<i32>} : memref<1x1x2048xf32, #tpu.memory_space<vmem>>, vector<1x1x2048xf32>,
    return
  }
  func.func @transform_0(%arg0: i32, %arg1: i32) -> (i32, i32, i32) {
    %c0_i32 = arith.constant 0 : i32
    %c0_i32_0 = arith.constant 0 : i32
    return %arg0, %c0_i32, %arg1 : i32, i32, i32
  }
  func.func @transform_1(%arg0: i32, %arg1: i32) -> (i32, i32) {
    %c0_i32 = arith.constant 0 : i32
    %c0_i32_0 = arith.constant 0 : i32
    %c0_i32_1 = arith.constant 0 : i32
    return %c0_i32, %c0_i32_0 : i32, i32
  }
  func.func @transform_2(%arg0: i32, %arg1: i32) -> (i32, i32) {
    %c0_i32 = arith.constant 0 : i32
    %c0_i32_0 = arith.constant 0 : i32
    %c0_i32_1 = arith.constant 0 : i32
    return %c0_i32, %c0_i32_0 : i32, i32
  }
  func.func @transform_3(%arg0: i32, %arg1: i32) -> (i32, i32) {
    %c0_i32 = arith.constant 0 : i32
    %c0_i32_0 = arith.constant 0 : i32
    %c0_i32_1 = arith.constant 0 : i32
    return %c0_i32, %c0_i32_0 : i32, i32
  }
  func.func @transform_4(%arg0: i32, %arg1: i32) -> (i32, i32) {
    %c0_i32 = arith.constant 0 : i32
    %c0_i32_0 = arith.constant 0 : i32
    %c0_i32_1 = arith.constant 0 : i32
    return %c0_i32, %c0_i32_0 : i32, i32
  }
  func.func @transform_5(%arg0: i32, %arg1: i32) -> (i32, i32, i32) {
    %c0_i32 = arith.constant 0 : i32
    %c0_i32_0 = arith.constant 0 : i32
    return %arg0, %c0_i32, %arg1 : i32, i32, i32
  }
  func.func @transform_6(%arg0: i32, %arg1: i32) -> (i32, i32, i32) {
    %c0_i32 = arith.constant 0 : i32
    %c0_i32_0 = arith.constant 0 : i32
    return %arg0, %c0_i32, %arg1 : i32, i32, i32
  }
}

</mosaic_0001>

<llo_original>
// kernel: tpu_custom_call.1
$region0: #{tpu_custom_call.1}
  #allocation0 [shape = 'u32[]', space=smem, size = 0x4, offset = 0x4, fixed_abs, tag = 'smem constant byte address 0x4 - core index']
  #allocation1 [shape = 'u32[72,128]{1,0:T(1,128)}', space=vmem, size = 0x9000, scoped, tag = 'internal scratch']
  #allocation2 [shape = 'f32[1,1]{1,0:T(1,128)S(1)}', space=vmem, size = 0x200, scoped, tag = 'scoped memory for tpu_custom_call.1']
  %s0 = inlined_call_operand.hbm [shape: f32[2,32,2048], index: 0, kind: input, shape index: {}]
  %s1 = inlined_call_operand.vmem [shape: f32[8,32], index: 1, kind: input, shape index: {}]
  %s2 = inlined_call_operand.vmem [shape: f32[8,1], index: 2, kind: input, shape index: {}]
  %s3 = inlined_call_operand.vmem [shape: f32[1,8], index: 3, kind: input, shape index: {}]
  %s4 = inlined_call_operand.<no memory space> [shape: f32[1,1], index: 4, kind: input, shape index: {}]
  %s5 = inlined_call_operand.hbm [shape: f32[2,8,2048], index: 5, kind: output, shape index: {0}]
  %s6 = inlined_call_operand.hbm [shape: f32[2,1,2048], index: 6, kind: output, shape index: {1}]
  %7 = xla_tuple %s5, %s6
  %s8 = sld [smem:[#allocation0]]
  $region65: #{tpu_custom_call.1} parent=0
    _
  %s10 = ssub.s32 1, %s8
  %s11 = scalar_select 0, %s10, %s8
  %v12 = vstv %s4
  %13 = vst [vmem:[#allocation2] sm:$0x1] %v12
  $region1: #{tpu_custom_call.1} parent=0
    #allocation3 [shape = 'u8[524288]{0}', space=vmem, size = 0x80000, scoped, tag = 'input window, operand 0']
    #allocation4 [shape = 's32[2]{0}', space=sflag, size = 0x8, scoped, tag = 'scoped memory for tpu_custom_call.1']
    #allocation5 [shape = 's32[2]{0}', space=sflag, size = 0x8, scoped, tag = 'scoped memory for tpu_custom_call.1']
    #allocation6 [shape = 'u8[131072]{0}', space=vmem, size = 0x20000, scoped, tag = 'output window, operand 0']
    #allocation7 [shape = 'u8[16384]{0}', space=vmem, size = 0x4000, scoped, tag = 'output window, operand 1']
    #allocation8 [shape = 's32[2]{0}', space=sflag, size = 0x8, scoped, tag = 'scoped memory for tpu_custom_call.1']
    %14 = vsyncpa [#allocation4], 0
    %s15 = scalar_lea.sflag [#allocation4], 1
    %16 = vsyncpa %s15, 0
    %17 = vsyncpa [#allocation5], 0
    %s18 = scalar_lea.sflag [#allocation5], 1
    %19 = vsyncpa %s18, 0
    %20 = vsyncpa [#allocation8], 0
    %s21 = scalar_lea.sflag [#allocation8], 1
    %22 = vsyncpa %s21, 0
    loop: start=0, step=1, limit=4
    $region2: #{tpu_custom_call.1} parent=1 // loop_pre_header
      _
    $region3: #{tpu_custom_call.1} parent=1 // loop_header
      %s24 = sphi 0, %s28
      %p25 = scmp.ge.s32.totalorder %s24, 4
      %s31 = sphi 0, %s43
      %s32 = sphi 0, %s39
      %s33 = sphi 0, %s31
      %s34 = sphi 0, %s32
      %s35 = sphi 0, %s33
      %s36 = sphi 0, %s34
      %s48 = sphi 0, %s50
      %s51 = sphi 0, %s48
      %s52 = sphi 0, %s51
      %s68 = sphi 0, %s52
      %s72 = sphi 0, %s72
      %s74 = sphi 0, %s72
      %s75 = sphi 0, %s74
      %s89 = sphi 0, %s75
      %s93 = sphi 0, %s93
      %s95 = sphi 0, %s93
      %s96 = sphi 0, %s95
      %s110 = sphi 0, %s96
      %s114 = sphi 0, %s114
      %s116 = sphi 0, %s114
      %s117 = sphi 0, %s116
      %s131 = sphi 0, %s117
      %s135 = sphi 0, %s135
      %s137 = sphi 0, %s135
      %s138 = sphi 0, %s137
      %s152 = sphi 0, %s138
      %s160 = sphi 0, %s162
      %s163 = sphi 0, %s160
      %s164 = sphi 0, %s163
      %s180 = sphi 0, %s164
      %s188 = sphi 0, %s190
      %s191 = sphi 0, %s188
      %s192 = sphi 0, %s191
      %s208 = sphi 0, %s192
    $region4: #{tpu_custom_call.1} parent=1 // loop_header_branch
      %27 = sbr.rel (%p25) target = $region8
    $region5: #{tpu_custom_call.1} parent=1 // loop_body
      %s29 = ssub.s32 %s24, 1
      %s30 = ssub.s32 %s24, 2
      %s37 = sadd.s32 1, %s32
      %p38 = scmp.ge.s32.totalorder %s37, 1
      %s39 = scalar_select %p38, 0, %s37
      %s40 = sadd.s32 1, %s31
      %s41 = scalar_select %p38, %s40, %s31
      %p42 = scmp.ge.s32.totalorder %s41, 2
      %s43 = scalar_select %p42, 0, %s41
      %s44 = ssub.s32 %s31, %s43
      %s45 = ssub.s32 %s32, %s39
      %s46 = sor.u32 %s44, %s45
      %p47 = scmp.eq.s32.totalorder %s46, 0
      %s49 = sadd.s32 %s48, 1
      %s50 = scalar_select %p47, %s48, %s49
      %p53 = pneg %p47
      %p54 = scmp.eq.s32.totalorder %s24, 1
      %p55 = por %p53, %p54
      %p56 = scmp.ne.s32.totalorder %s48, %s51
      %p57 = scmp.eq.s32.totalorder %s24, 0
      %p58 = por %p56, %p57
      %p59 = scmp.ne.s32.totalorder %s48, %s51
      %p60 = scmp.eq.s32.totalorder %s29, 1
      %p61 = por %p59, %p60
      %p62 = scmp.ne.s32.totalorder %s51, %s52
      %p63 = scmp.eq.s32.totalorder %s29, 0
      %p64 = por %p62, %p63
      %p65 = scmp.ne.s32.totalorder %s51, %s52
      %p66 = scmp.eq.s32.totalorder %s30, 1
      %p67 = por %p65, %p66
      %p69 = scmp.ne.s32.totalorder %s52, %s68
      %p70 = scmp.eq.s32.totalorder %s30, 0
      %p71 = por %p69, %p70
      %s73 = sadd.s32 %s72, 1
      %p76 = scmp.eq.s32.totalorder %s24, 1
      %p77 = scmp.ne.s32.totalorder %s72, %s74
      %p78 = scmp.eq.s32.totalorder %s24, 0
      %p79 = por %p77, %p78
      %p80 = scmp.ne.s32.totalorder %s72, %s74
      %p81 = scmp.eq.s32.totalorder %s29, 1
      %p82 = por %p80, %p81
      %p83 = scmp.ne.s32.totalorder %s74, %s75
      %p84 = scmp.eq.s32.totalorder %s29, 0
      %p85 = por %p83, %p84
      %p86 = scmp.ne.s32.totalorder %s74, %s75
      %p87 = scmp.eq.s32.totalorder %s30, 1
      %p88 = por %p86, %p87
      %p90 = scmp.ne.s32.totalorder %s75, %s89
      %p91 = scmp.eq.s32.totalorder %s30, 0
      %p92 = por %p90, %p91
      %s94 = sadd.s32 %s93, 1
      %p97 = scmp.eq.s32.totalorder %s24, 1
      %p98 = scmp.ne.s32.totalorder %s93, %s95
      %p99 = scmp.eq.s32.totalorder %s24, 0
      %p100 = por %p98, %p99
      %p101 = scmp.ne.s32.totalorder %s93, %s95
      %p102 = scmp.eq.s32.totalorder %s29, 1
      %p103 = por %p101, %p102
      %p104 = scmp.ne.s32.totalorder %s95, %s96
      %p105 = scmp.eq.s32.totalorder %s29, 0
      %p106 = por %p104, %p105
      %p107 = scmp.ne.s32.totalorder %s95, %s96
      %p108 = scmp.eq.s32.totalorder %s30, 1
      %p109 = por %p107, %p108
      %p111 = scmp.ne.s32.totalorder %s96, %s110
      %p112 = scmp.eq.s32.totalorder %s30, 0
      %p113 = por %p111, %p112
      %s115 = sadd.s32 %s114, 1
      %p118 = scmp.eq.s32.totalorder %s24, 1
      %p119 = scmp.ne.s32.totalorder %s114, %s116
      %p120 = scmp.eq.s32.totalorder %s24, 0
      %p121 = por %p119, %p120
      %p122 = scmp.ne.s32.totalorder %s114, %s116
      %p123 = scmp.eq.s32.totalorder %s29, 1
      %p124 = por %p122, %p123
      %p125 = scmp.ne.s32.totalorder %s116, %s117
      %p126 = scmp.eq.s32.totalorder %s29, 0
      %p127 = por %p125, %p126
      %p128 = scmp.ne.s32.totalorder %s116, %s117
      %p129 = scmp.eq.s32.totalorder %s30, 1
      %p130 = por %p128, %p129
      %p132 = scmp.ne.s32.totalorder %s117, %s131
      %p133 = scmp.eq.s32.totalorder %s30, 0
      %p134 = por %p132, %p133
      %s136 = sadd.s32 %s135, 1
      %p139 = scmp.eq.s32.totalorder %s24, 1
      %p140 = scmp.ne.s32.totalorder %s135, %s137
      %p141 = scmp.eq.s32.totalorder %s24, 0
      %p142 = por %p140, %p141
      %p143 = scmp.ne.s32.totalorder %s135, %s137
      %p144 = scmp.eq.s32.totalorder %s29, 1
      %p145 = por %p143, %p144
      %p146 = scmp.ne.s32.totalorder %s137, %s138
      %p147 = scmp.eq.s32.totalorder %s29, 0
      %p148 = por %p146, %p147
      %p149 = scmp.ne.s32.totalorder %s137, %s138
      %p150 = scmp.eq.s32.totalorder %s30, 1
      %p151 = por %p149, %p150
      %p153 = scmp.ne.s32.totalorder %s138, %s152
      %p154 = scmp.eq.s32.totalorder %s30, 0
      %p155 = por %p153, %p154
      %s156 = ssub.s32 %s31, %s43
      %s157 = ssub.s32 %s32, %s39
      %s158 = sor.u32 %s156, %s157
      %p159 = scmp.eq.s32.totalorder %s158, 0
      %s161 = sadd.s32 %s160, 1
      %s162 = scalar_select %p159, %s160, %s161
      %p165 = pneg %p159
      %p166 = scmp.eq.s32.totalorder %s24, 1
      %p167 = por %p165, %p166
      %p168 = scmp.ne.s32.totalorder %s160, %s163
      %p169 = scmp.eq.s32.totalorder %s24, 0
      %p170 = por %p168, %p169
      %p171 = scmp.ne.s32.totalorder %s160, %s163
      %p172 = scmp.eq.s32.totalorder %s29, 1
      %p173 = por %p171, %p172
      %p174 = scmp.ne.s32.totalorder %s163, %s164
      %p175 = scmp.eq.s32.totalorder %s29, 0
      %p176 = por %p174, %p175
      %p177 = scmp.ne.s32.totalorder %s163, %s164
      %p178 = scmp.eq.s32.totalorder %s30, 1
      %p179 = por %p177, %p178
      %p181 = scmp.ne.s32.totalorder %s164, %s180
      %p182 = scmp.eq.s32.totalorder %s30, 0
      %p183 = por %p181, %p182
      %s184 = ssub.s32 %s31, %s43
      %s185 = ssub.s32 %s32, %s39
      %s186 = sor.u32 %s184, %s185
      %p187 = scmp.eq.s32.totalorder %s186, 0
      %s189 = sadd.s32 %s188, 1
      %s190 = scalar_select %p187, %s188, %s189
      %p193 = pneg %p187
      %p194 = scmp.eq.s32.totalorder %s24, 1
      %p195 = por %p193, %p194
      %p196 = scmp.ne.s32.totalorder %s188, %s191
      %p197 = scmp.eq.s32.totalorder %s24, 0
      %p198 = por %p196, %p197
      %p199 = scmp.ne.s32.totalorder %s188, %s191
      %p200 = scmp.eq.s32.totalorder %s29, 1
      %p201 = por %p199, %p200
      %p202 = scmp.ne.s32.totalorder %s191, %s192
      %p203 = scmp.eq.s32.totalorder %s29, 0
      %p204 = por %p202, %p203
      %p205 = scmp.ne.s32.totalorder %s191, %s192
      %p206 = scmp.eq.s32.totalorder %s30, 1
      %p207 = por %p205, %p206
      %p209 = scmp.ne.s32.totalorder %s192, %s208
      %p210 = scmp.eq.s32.totalorder %s30, 0
      %p211 = por %p209, %p210
      %p212 = scmp.le.s32.totalorder 1, %s24
      %p213 = scmp.lt.s32.totalorder %s24, 3
      %p214 = pnand %p212, %p213
      %p215 = pneg %p214
      // Predicated region
      $region9: #{tpu_custom_call.1} parent=5 // pred_check
        _
      $region10: #{tpu_custom_call.1} parent=5 // pred_check_branch
        %217 = sbr.rel (%p214) target = $region12
      $region11: #{tpu_custom_call.1} parent=5 // pred_region
        %s218 = ssub.s32 %s24, 1
        // Predicated region
        $region13: #{tpu_custom_call.1} parent=11 // pred_check
          %p219 = pneg %p85
        $region14: #{tpu_custom_call.1} parent=11 // pred_check_branch
          %221 = sbr.rel (%p219) target = $region16
        $region15: #{tpu_custom_call.1} parent=11 // pred_region
          _
        $region16: #{tpu_custom_call.1} parent=11 // pred_fallthru
          _
        // Predicated region
        $region17: #{tpu_custom_call.1} parent=11 // pred_check
          %p222 = pneg %p106
        $region18: #{tpu_custom_call.1} parent=11 // pred_check_branch
          %224 = sbr.rel (%p222) target = $region20
        $region19: #{tpu_custom_call.1} parent=11 // pred_region
          _
        $region20: #{tpu_custom_call.1} parent=11 // pred_fallthru
          _
        // Predicated region
        $region21: #{tpu_custom_call.1} parent=11 // pred_check
          %p225 = pneg %p127
        $region22: #{tpu_custom_call.1} parent=11 // pred_check_branch
          %227 = sbr.rel (%p225) target = $region24
        $region23: #{tpu_custom_call.1} parent=11 // pred_region
          _
        $region24: #{tpu_custom_call.1} parent=11 // pred_fallthru
          _
        // Predicated region
        $region25: #{tpu_custom_call.1} parent=11 // pred_check
          %p228 = pneg %p148
        $region26: #{tpu_custom_call.1} parent=11 // pred_check_branch
          %230 = sbr.rel (%p228) target = $region28
        $region27: #{tpu_custom_call.1} parent=11 // pred_region
          _
        $region28: #{tpu_custom_call.1} parent=11 // pred_fallthru
          _
      $region12: #{tpu_custom_call.1} parent=5 // pred_fallthru
        _
      %p231 = scmp.lt.s32.totalorder %s24, 2
      // Predicated region
      $region29: #{tpu_custom_call.1} parent=5 // pred_check
        %p232 = pneg %p231
      $region30: #{tpu_custom_call.1} parent=5 // pred_check_branch
        %234 = sbr.rel (%p232) target = $region32
      $region31: #{tpu_custom_call.1} parent=5 // pred_region
        // Predicated region
        $region33: #{tpu_custom_call.1} parent=31 // pred_check
          %p235 = pneg %p58
        $region34: #{tpu_custom_call.1} parent=31 // pred_check_branch
          %237 = sbr.rel (%p235) target = $region36
        $region35: #{tpu_custom_call.1} parent=31 // pred_region
          %s238 = sand.u32 %s48, 1
          %s239 = scalar_lea.sflag [#allocation4], %s238
          %s240 = sand.u32 %s48, 1
          %s241 = smul.addr %s240, 512
          %s242 = scalar_lea.vmem [#allocation3], %s241
          %s243 = smul.u32 16, %s32
          %245 = vsyncadd %s239, 0
          %s246 = smul.addr %s31, 64
          %s247 = sadd.s32 %s243, %s246
          %s248 = smul.addr %s247, 8
          %s249 = scalar_lea.hbm %s0, %s248
          %s250 = sshll.u32 %s249, 4
          %s251 = int_to_ptr.hbm [resolvable:$true] %s250
          %s252 = sshll.u32 %s242, 4
          %s253 = int_to_ptr.vmem [resolvable:$true] %s252
          %258 = dma.hbm_to_vmem [thread:$0]  %s251, 8192, %s253, %s239, 2048, 2048, 128
        $region36: #{tpu_custom_call.1} parent=31 // pred_fallthru
          _
      $region32: #{tpu_custom_call.1} parent=5 // pred_fallthru
        _
      %p259 = scmp.le.s32.totalorder 1, %s24
      %p260 = scmp.lt.s32.totalorder %s24, 3
      %p261 = pnand %p259, %p260
      %p262 = pneg %p261
      // Predicated region
      $region37: #{tpu_custom_call.1} parent=5 // pred_check
        _
      $region38: #{tpu_custom_call.1} parent=5 // pred_check_branch
        %264 = sbr.rel (%p261) target = $region40
      $region39: #{tpu_custom_call.1} parent=5 // pred_region
        %s265 = ssub.s32 %s24, 1
        %s266 = sand.u32 %s51, 1
        %s267 = scalar_lea.sflag [#allocation4], %s266
        %s268 = sand.u32 %s51, 1
        %s269 = smul.addr %s268, 512
        %s270 = scalar_lea.vmem [#allocation3], %s269
        // Predicated region
        $region41: #{tpu_custom_call.1} parent=39 // pred_check
          %p271 = pneg %p64
        $region42: #{tpu_custom_call.1} parent=39 // pred_check_branch
          %273 = sbr.rel (%p271) target = $region44
        $region43: #{tpu_custom_call.1} parent=39 // pred_region
          %275 = dma.done %s267, 8192
        $region44: #{tpu_custom_call.1} parent=39 // pred_fallthru
          _
        %s276 = sand.u32 %s51, 1
        %s277 = scalar_lea.sflag [#allocation4], %s276
        %s278 = sand.u32 %s51, 1
        %s279 = smul.addr %s278, 512
        %s280 = scalar_lea.vmem [#allocation3], %s279
        %p281 = pneg %p64
        %p282 = pneg %p61
        %p283 = pneg %p85
        %p284 = pneg %p82
        %p285 = pneg %p106
        %p286 = pneg %p103
        %p287 = pneg %p127
        %p288 = pneg %p124
        %p289 = pneg %p148
        %p290 = pneg %p145
        %p291 = pneg %p176
        %p292 = pneg %p173
        %s293 = sand.u32 %s163, 1
        %s294 = scalar_lea.sflag [#allocation5], %s293
        %s295 = sand.u32 %s163, 1
        %s296 = smul.addr %s295, 128
        %s297 = scalar_lea.vmem [#allocation6], %s296
        %p298 = pneg %p204
        %p299 = pneg %p201
        %s300 = sand.u32 %s191, 1
        %s301 = scalar_lea.sflag [#allocation8], %s300
        %s302 = sand.u32 %s191, 1
        %s303 = smul.addr %s302, 16
        %s304 = scalar_lea.vmem [#allocation7], %s303
        %s305 = smul.u32 16, %s34
        %s306 = smul.u32 16, %s34
        %s307 = smul.u32 16, %s34
        %v308 = vld [vmem:[%s270] sm:$0xff]
        %v309 = vld [vmem:[%s270 + $0x8] sm:$0xff]
        %v310 = vld [vmem:[%s270 + $0x10] sm:$0xff]
        %v311 = vld [vmem:[%s270 + $0x18] sm:$0xff]
        %v312 = vld [vmem:[%s270 + $0x20] sm:$0xff]
        %v313 = vld [vmem:[%s270 + $0x28] sm:$0xff]
        %v314 = vld [vmem:[%s270 + $0x30] sm:$0xff]
        %v315 = vld [vmem:[%s270 + $0x38] sm:$0xff]
        %v316 = vld [vmem:[%s270 + $0x40] sm:$0xff]
        %v317 = vld [vmem:[%s270 + $0x48] sm:$0xff]
        %v318 = vld [vmem:[%s270 + $0x50] sm:$0xff]
        %v319 = vld [vmem:[%s270 + $0x58] sm:$0xff]
        %v320 = vld [vmem:[%s270 + $0x60] sm:$0xff]
        %v321 = vld [vmem:[%s270 + $0x68] sm:$0xff]
        %v322 = vld [vmem:[%s270 + $0x70] sm:$0xff]
        %v323 = vld [vmem:[%s270 + $0x78] sm:$0xff]
        %v324 = vld [vmem:[%s270 + $0x80] sm:$0xff]
        %v325 = vld [vmem:[%s270 + $0x88] sm:$0xff]
        %v326 = vld [vmem:[%s270 + $0x90] sm:$0xff]
        %v327 = vld [vmem:[%s270 + $0x98] sm:$0xff]
        %v328 = vld [vmem:[%s270 + $0xa0] sm:$0xff]
        %v329 = vld [vmem:[%s270 + $0xa8] sm:$0xff]
        %v330 = vld [vmem:[%s270 + $0xb0] sm:$0xff]
        %v331 = vld [vmem:[%s270 + $0xb8] sm:$0xff]
        %v332 = vld [vmem:[%s270 + $0xc0] sm:$0xff]
        %v333 = vld [vmem:[%s270 + $0xc8] sm:$0xff]
        %v334 = vld [vmem:[%s270 + $0xd0] sm:$0xff]
        %v335 = vld [vmem:[%s270 + $0xd8] sm:$0xff]
        %v336 = vld [vmem:[%s270 + $0xe0] sm:$0xff]
        %v337 = vld [vmem:[%s270 + $0xe8] sm:$0xff]
        %v338 = vld [vmem:[%s270 + $0xf0] sm:$0xff]
        %v339 = vld [vmem:[%s270 + $0xf8] sm:$0xff]
        %v340 = vld [vmem:[%s270 + $0x100] sm:$0xff]
        %v341 = vld [vmem:[%s270 + $0x108] sm:$0xff]
        %v342 = vld [vmem:[%s270 + $0x110] sm:$0xff]
        %v343 = vld [vmem:[%s270 + $0x118] sm:$0xff]
        %v344 = vld [vmem:[%s270 + $0x120] sm:$0xff]
        %v345 = vld [vmem:[%s270 + $0x128] sm:$0xff]
        %v346 = vld [vmem:[%s270 + $0x130] sm:$0xff]
        %v347 = vld [vmem:[%s270 + $0x138] sm:$0xff]
        %v348 = vld [vmem:[%s270 + $0x140] sm:$0xff]
        %v349 = vld [vmem:[%s270 + $0x148] sm:$0xff]
        %v350 = vld [vmem:[%s270 + $0x150] sm:$0xff]
        %v351 = vld [vmem:[%s270 + $0x158] sm:$0xff]
        %v352 = vld [vmem:[%s270 + $0x160] sm:$0xff]
        %v353 = vld [vmem:[%s270 + $0x168] sm:$0xff]
        %v354 = vld [vmem:[%s270 + $0x170] sm:$0xff]
        %v355 = vld [vmem:[%s270 + $0x178] sm:$0xff]
        %v356 = vld [vmem:[%s270 + $0x180] sm:$0xff]
        %v357 = vld [vmem:[%s270 + $0x188] sm:$0xff]
        %v358 = vld [vmem:[%s270 + $0x190] sm:$0xff]
        %v359 = vld [vmem:[%s270 + $0x198] sm:$0xff]
        %v360 = vld [vmem:[%s270 + $0x1a0] sm:$0xff]
        %v361 = vld [vmem:[%s270 + $0x1a8] sm:$0xff]
        %v362 = vld [vmem:[%s270 + $0x1b0] sm:$0xff]
        %v363 = vld [vmem:[%s270 + $0x1b8] sm:$0xff]
        %v364 = vld [vmem:[%s270 + $0x1c0] sm:$0xff]
        %v365 = vld [vmem:[%s270 + $0x1c8] sm:$0xff]
        %v366 = vld [vmem:[%s270 + $0x1d0] sm:$0xff]
        %v367 = vld [vmem:[%s270 + $0x1d8] sm:$0xff]
        %v368 = vld [vmem:[%s270 + $0x1e0] sm:$0xff]
        %v369 = vld [vmem:[%s270 + $0x1e8] sm:$0xff]
        %v370 = vld [vmem:[%s270 + $0x1f0] sm:$0xff]
        %v371 = vld [vmem:[%s270 + $0x1f8] sm:$0xff]
        %v372 = vld [vmem:[%s1] sm:$0xff]
        %v373 = vld [vmem:[%s2] sm:$0xff]
        %375 = vset.pattern.permute.xlu0 0
        %376 = vperm.xlu0 %375, %v373
        %v377 = vpop.permute.xlu0 %376
        %vm379 = vcmask 261120
        %v381 = vsel %vm379, %v372, 0
        %383 = vmatpush.msra.mxu0 0.0
        %384 = vmatpush.msra.mxu0 0.0
        %385 = vmatpush.msra.mxu0 0.0
        %386 = vmatpush.msra.mxu0 0.0
        %387 = vmatpush.msra.mxu0 0.0
        %388 = vmatpush.msra.mxu0 0.0
        %389 = vmatpush.msra.mxu0 0.0
        %390 = vmatpush.msra.mxu0 0.0
        %391 = vmatpush.msra.mxu0 0.0
        %392 = vmatpush.msra.mxu0 0.0
        %393 = vmatpush.msra.mxu0 0.0
        %394 = vmatpush.msra.mxu0 0.0
        %v395 = vand.u32 %v356, 4294901760
        %396 = vmatpush.msra.mxu0 %v395
        %v397 = vand.u32 %v340, 4294901760
        %398 = vmatpush.msra.mxu0 %v397
        %v399 = vand.u32 %v324, 4294901760
        %400 = vmatpush.msra.mxu0 %v399
        %v401 = vand.u32 %v308, 4294901760
        %402 = vmatpush.msra.mxu0 %v401
        %v403 = vand.u32 %v381, 4294901760
        %v404 = vsub.f32 %v381, %v403
        %v405 = vand.u32 %v404, 4294901760
        %v406 = vsub.f32 %v404, %v405
        %v407 = vand.u32 %v406, 4294901760
        %408 = vmatmul.f32.gmra.mxu0 %v407
        %v409 = vpop.f32.mrf.mxu0
        %v410 = vadd.f32 %v377, %v409
        %411 = vdwg.mxu0
        %412 = vmatpush.msra.mxu0 0.0
        %413 = vmatpush.msra.mxu0 0.0
        %414 = vmatpush.msra.mxu0 0.0
        %415 = vmatpush.msra.mxu0 0.0
        %416 = vmatpush.msra.mxu0 0.0
        %417 = vmatpush.msra.mxu0 0.0
        %418 = vmatpush.msra.mxu0 0.0
        %419 = vmatpush.msra.mxu0 0.0
        %420 = vmatpush.msra.mxu0 0.0
        %421 = vmatpush.msra.mxu0 0.0
        %422 = vmatpush.msra.mxu0 0.0
        %423 = vmatpush.msra.mxu0 0.0
        %v424 = vand.u32 %v356, 4294901760
        %v425 = vsub.f32 %v356, %v424
        %v426 = vand.u32 %v425, 4294901760
        %v427 = vsub.f32 %v425, %v426
        %v428 = vand.u32 %v427, 4294901760
        %429 = vmatpush.msra.mxu0 %v428
        %v430 = vand.u32 %v340, 4294901760
        %v431 = vsub.f32 %v340, %v430
        %v432 = vand.u32 %v431, 4294901760
        %v433 = vsub.f32 %v431, %v432
        %v434 = vand.u32 %v433, 4294901760
        %435 = vmatpush.msra.mxu0 %v434
        %v436 = vand.u32 %v324, 4294901760
        %v437 = vsub.f32 %v324, %v436
        %v438 = vand.u32 %v437, 4294901760
        %v439 = vsub.f32 %v437, %v438
        %v440 = vand.u32 %v439, 4294901760
        %441 = vmatpush.msra.mxu0 %v440
        %v442 = vand.u32 %v308, 4294901760
        %v443 = vsub.f32 %v308, %v442
        %v444 = vand.u32 %v443, 4294901760
        %v445 = vsub.f32 %v443, %v444
        %v446 = vand.u32 %v445, 4294901760
        %447 = vmatpush.msra.mxu0 %v446
        %v448 = vand.u32 %v381, 4294901760
        %449 = vmatmul.f32.gmra.mxu0 %v448
        %v450 = vpop.f32.mrf.mxu0
        %v451 = vadd.f32 %v410, %v450
        %452 = vdwg.mxu0
        %453 = vmatpush.msra.mxu0 0.0
        %454 = vmatpush.msra.mxu0 0.0
        %455 = vmatpush.msra.mxu0 0.0
        %456 = vmatpush.msra.mxu0 0.0
        %457 = vmatpush.msra.mxu0 0.0
        %458 = vmatpush.msra.mxu0 0.0
        %459 = vmatpush.msra.mxu0 0.0
        %460 = vmatpush.msra.mxu0 0.0
        %461 = vmatpush.msra.mxu0 0.0
        %462 = vmatpush.msra.mxu0 0.0
        %463 = vmatpush.msra.mxu0 0.0
        %464 = vmatpush.msra.mxu0 0.0
        %v465 = vand.u32 %v356, 4294901760
        %v466 = vsub.f32 %v356, %v465
        %467 = vmatpush.msra.mxu0 %v466
        %v468 = vand.u32 %v340, 4294901760
        %v469 = vsub.f32 %v340, %v468
        %470 = vmatpush.msra.mxu0 %v469
        %v471 = vand.u32 %v324, 4294901760
        %v472 = vsub.f32 %v324, %v471
        %473 = vmatpush.msra.mxu0 %v472
        %v474 = vand.u32 %v308, 4294901760
        %v475 = vsub.f32 %v308, %v474
        %476 = vmatpush.msra.mxu0 %v475
        %v477 = vand.u32 %v381, 4294901760
        %v478 = vsub.f32 %v381, %v477
        %479 = vmatmul.f32.gmra.mxu0 %v478
        %v480 = vpop.f32.mrf.mxu0
        %v481 = vadd.f32 %v451, %v480
        %482 = vdwg.mxu0
        %483 = vmatpush.msra.mxu0 0.0
        %484 = vmatpush.msra.mxu0 0.0
        %485 = vmatpush.msra.mxu0 0.0
        %486 = vmatpush.msra.mxu0 0.0
        %487 = vmatpush.msra.mxu0 0.0
        %488 = vmatpush.msra.mxu0 0.0
        %489 = vmatpush.msra.mxu0 0.0
        %490 = vmatpush.msra.mxu0 0.0
        %491 = vmatpush.msra.mxu0 0.0
        %492 = vmatpush.msra.mxu0 0.0
        %493 = vmatpush.msra.mxu0 0.0
        %494 = vmatpush.msra.mxu0 0.0
        %v495 = vand.u32 %v356, 4294901760
        %496 = vmatpush.msra.mxu0 %v495
        %v497 = vand.u32 %v340, 4294901760
        %498 = vmatpush.msra.mxu0 %v497
        %v499 = vand.u32 %v324, 4294901760
        %500 = vmatpush.msra.mxu0 %v499
        %v501 = vand.u32 %v308, 4294901760
        %502 = vmatpush.msra.mxu0 %v501
        %v503 = vand.u32 %v381, 4294901760
        %v504 = vsub.f32 %v381, %v503
        %v505 = vand.u32 %v504, 4294901760
        %506 = vmatmul.f32.gmra.mxu0 %v505
        %v507 = vpop.f32.mrf.mxu0
        %v508 = vadd.f32 %v481, %v507
        %509 = vdwg.mxu0
        %510 = vmatpush.msra.mxu0 0.0
        %511 = vmatpush.msra.mxu0 0.0
        %512 = vmatpush.msra.mxu0 0.0
        %513 = vmatpush.msra.mxu0 0.0
        %514 = vmatpush.msra.mxu0 0.0
        %515 = vmatpush.msra.mxu0 0.0
        %516 = vmatpush.msra.mxu0 0.0
        %517 = vmatpush.msra.mxu0 0.0
        %518 = vmatpush.msra.mxu0 0.0
        %519 = vmatpush.msra.mxu0 0.0
        %520 = vmatpush.msra.mxu0 0.0
        %521 = vmatpush.msra.mxu0 0.0
        %v522 = vand.u32 %v356, 4294901760
        %v523 = vsub.f32 %v356, %v522
        %v524 = vand.u32 %v523, 4294901760
        %525 = vmatpush.msra.mxu0 %v524
        %v526 = vand.u32 %v340, 4294901760
        %v527 = vsub.f32 %v340, %v526
        %v528 = vand.u32 %v527, 4294901760
        %529 = vmatpush.msra.mxu0 %v528
        %v530 = vand.u32 %v324, 4294901760
        %v531 = vsub.f32 %v324, %v530
        %v532 = vand.u32 %v531, 4294901760
        %533 = vmatpush.msra.mxu0 %v532
        %v534 = vand.u32 %v308, 4294901760
        %v535 = vsub.f32 %v308, %v534
        %v536 = vand.u32 %v535, 4294901760
        %537 = vmatpush.msra.mxu0 %v536
        %v538 = vand.u32 %v381, 4294901760
        %539 = vmatmul.f32.gmra.mxu0 %v538
        %v540 = vpop.f32.mrf.mxu0
        %v541 = vadd.f32 %v508, %v540
        %542 = vdwg.mxu0
        %543 = vmatpush.msra.mxu0 0.0
        %544 = vmatpush.msra.mxu0 0.0
        %545 = vmatpush.msra.mxu0 0.0
        %546 = vmatpush.msra.mxu0 0.0
        %547 = vmatpush.msra.mxu0 0.0
        %548 = vmatpush.msra.mxu0 0.0
        %549 = vmatpush.msra.mxu0 0.0
        %550 = vmatpush.msra.mxu0 0.0
        %551 = vmatpush.msra.mxu0 0.0
        %552 = vmatpush.msra.mxu0 0.0
        %553 = vmatpush.msra.mxu0 0.0
        %554 = vmatpush.msra.mxu0 0.0
        %v555 = vand.u32 %v356, 4294901760
        %556 = vmatpush.msra.mxu0 %v555
        %v557 = vand.u32 %v340, 4294901760
        %558 = vmatpush.msra.mxu0 %v557
        %v559 = vand.u32 %v324, 4294901760
        %560 = vmatpush.msra.mxu0 %v559
        %v561 = vand.u32 %v308, 4294901760
        %562 = vmatpush.msra.mxu0 %v561
        %v563 = vand.u32 %v381, 4294901760
        %564 = vmatmul.f32.gmra.mxu0 %v563
        %v565 = vpop.f32.mrf.mxu0
        %v566 = vadd.f32 %v541, %v565
        %567 = vdwg.mxu0
        %568 = vmatpush.msra.mxu0 0.0
        %569 = vmatpush.msra.mxu0 0.0
        %570 = vmatpush.msra.mxu0 0.0
        %571 = vmatpush.msra.mxu0 0.0
        %572 = vmatpush.msra.mxu0 0.0
        %573 = vmatpush.msra.mxu0 0.0
        %574 = vmatpush.msra.mxu0 0.0
        %575 = vmatpush.msra.mxu0 0.0
        %576 = vmatpush.msra.mxu0 0.0
        %577 = vmatpush.msra.mxu0 0.0
        %578 = vmatpush.msra.mxu0 0.0
        %579 = vmatpush.msra.mxu0 0.0
        %v580 = vand.u32 %v357, 4294901760
        %581 = vmatpush.msra.mxu0 %v580
        %v582 = vand.u32 %v341, 4294901760
        %583 = vmatpush.msra.mxu0 %v582
        %v584 = vand.u32 %v325, 4294901760
        %585 = vmatpush.msra.mxu0 %v584
        %v586 = vand.u32 %v309, 4294901760
        %587 = vmatpush.msra.mxu0 %v586
        %v588 = vand.u32 %v381, 4294901760
        %v589 = vsub.f32 %v381, %v588
        %v590 = vand.u32 %v589, 4294901760
        %v591 = vsub.f32 %v589, %v590
        %v592 = vand.u32 %v591, 4294901760
        %593 = vmatmul.f32.gmra.mxu0 %v592
        %v594 = vpop.f32.mrf.mxu0
        %v595 = vadd.f32 %v377, %v594
        %596 = vdwg.mxu0
        %597 = vmatpush.msra.mxu0 0.0
        %598 = vmatpush.msra.mxu0 0.0
        %599 = vmatpush.msra.mxu0 0.0
        %600 = vmatpush.msra.mxu0 0.0
        %601 = vmatpush.msra.mxu0 0.0
        %602 = vmatpush.msra.mxu0 0.0
        %603 = vmatpush.msra.mxu0 0.0
        %604 = vmatpush.msra.mxu0 0.0
        %605 = vmatpush.msra.mxu0 0.0
        %606 = vmatpush.msra.mxu0 0.0
        %607 = vmatpush.msra.mxu0 0.0
        %608 = vmatpush.msra.mxu0 0.0
        %v609 = vand.u32 %v357, 4294901760
        %v610 = vsub.f32 %v357, %v609
        %v611 = vand.u32 %v610, 4294901760
        %v612 = vsub.f32 %v610, %v611
        %v613 = vand.u32 %v612, 4294901760
        %614 = vmatpush.msra.mxu0 %v613
        %v615 = vand.u32 %v341, 4294901760
        %v616 = vsub.f32 %v341, %v615
        %v617 = vand.u32 %v616, 4294901760
        %v618 = vsub.f32 %v616, %v617
        %v619 = vand.u32 %v618, 4294901760
        %620 = vmatpush.msra.mxu0 %v619
        %v621 = vand.u32 %v325, 4294901760
        %v622 = vsub.f32 %v325, %v621
        %v623 = vand.u32 %v622, 4294901760
        %v624 = vsub.f32 %v622, %v623
        %v625 = vand.u32 %v624, 4294901760
        %626 = vmatpush.msra.mxu0 %v625
        %v627 = vand.u32 %v309, 4294901760
        %v628 = vsub.f32 %v309, %v627
        %v629 = vand.u32 %v628, 4294901760
        %v630 = vsub.f32 %v628, %v629
        %v631 = vand.u32 %v630, 4294901760
        %632 = vmatpush.msra.mxu0 %v631
        %v633 = vand.u32 %v381, 4294901760
        %634 = vmatmul.f32.gmra.mxu0 %v633
        %v635 = vpop.f32.mrf.mxu0
        %v636 = vadd.f32 %v595, %v635
        %637 = vdwg.mxu0
        %638 = vmatpush.msra.mxu0 0.0
        %639 = vmatpush.msra.mxu0 0.0
        %640 = vmatpush.msra.mxu0 0.0
        %641 = vmatpush.msra.mxu0 0.0
        %642 = vmatpush.msra.mxu0 0.0
        %643 = vmatpush.msra.mxu0 0.0
        %644 = vmatpush.msra.mxu0 0.0
        %645 = vmatpush.msra.mxu0 0.0
        %646 = vmatpush.msra.mxu0 0.0
        %647 = vmatpush.msra.mxu0 0.0
        %648 = vmatpush.msra.mxu0 0.0
        %649 = vmatpush.msra.mxu0 0.0
        %v650 = vand.u32 %v357, 4294901760
        %v651 = vsub.f32 %v357, %v650
        %652 = vmatpush.msra.mxu0 %v651
        %v653 = vand.u32 %v341, 4294901760
        %v654 = vsub.f32 %v341, %v653
        %655 = vmatpush.msra.mxu0 %v654
        %v656 = vand.u32 %v325, 4294901760
        %v657 = vsub.f32 %v325, %v656
        %658 = vmatpush.msra.mxu0 %v657
        %v659 = vand.u32 %v309, 4294901760
        %v660 = vsub.f32 %v309, %v659
        %661 = vmatpush.msra.mxu0 %v660
        %v662 = vand.u32 %v381, 4294901760
        %v663 = vsub.f32 %v381, %v662
        %664 = vmatmul.f32.gmra.mxu0 %v663
        %v665 = vpop.f32.mrf.mxu0
        %v666 = vadd.f32 %v636, %v665
        %667 = vdwg.mxu0
        %668 = vmatpush.msra.mxu0 0.0
        %669 = vmatpush.msra.mxu0 0.0
        %670 = vmatpush.msra.mxu0 0.0
        %671 = vmatpush.msra.mxu0 0.0
        %672 = vmatpush.msra.mxu0 0.0
        %673 = vmatpush.msra.mxu0 0.0
        %674 = vmatpush.msra.mxu0 0.0
        %675 = vmatpush.msra.mxu0 0.0
        %676 = vmatpush.msra.mxu0 0.0
        %677 = vmatpush.msra.mxu0 0.0
        %678 = vmatpush.msra.mxu0 0.0
        %679 = vmatpush.msra.mxu0 0.0
        %v680 = vand.u32 %v357, 4294901760
        %681 = vmatpush.msra.mxu0 %v680
        %v682 = vand.u32 %v341, 4294901760
        %683 = vmatpush.msra.mxu0 %v682
        %v684 = vand.u32 %v325, 4294901760
        %685 = vmatpush.msra.mxu0 %v684
        %v686 = vand.u32 %v309, 4294901760
        %687 = vmatpush.msra.mxu0 %v686
        %v688 = vand.u32 %v381, 4294901760
        %v689 = vsub.f32 %v381, %v688
        %v690 = vand.u32 %v689, 4294901760
        %691 = vmatmul.f32.gmra.mxu0 %v690
        %v692 = vpop.f32.mrf.mxu0
        %v693 = vadd.f32 %v666, %v692
        %694 = vdwg.mxu0
        %695 = vmatpush.msra.mxu0 0.0
        %696 = vmatpush.msra.mxu0 0.0
        %697 = vmatpush.msra.mxu0 0.0
        %698 = vmatpush.msra.mxu0 0.0
        %699 = vmatpush.msra.mxu0 0.0
        %700 = vmatpush.msra.mxu0 0.0
        %701 = vmatpush.msra.mxu0 0.0
        %702 = vmatpush.msra.mxu0 0.0
        %703 = vmatpush.msra.mxu0 0.0
        %704 = vmatpush.msra.mxu0 0.0
        %705 = vmatpush.msra.mxu0 0.0
        %706 = vmatpush.msra.mxu0 0.0
        %v707 = vand.u32 %v357, 4294901760
        %v708 = vsub.f32 %v357, %v707
        %v709 = vand.u32 %v708, 4294901760
        %710 = vmatpush.msra.mxu0 %v709
        %v711 = vand.u32 %v341, 4294901760
        %v712 = vsub.f32 %v341, %v711
        %v713 = vand.u32 %v712, 4294901760
        %714 = vmatpush.msra.mxu0 %v713
        %v715 = vand.u32 %v325, 4294901760
        %v716 = vsub.f32 %v325, %v715
        %v717 = vand.u32 %v716, 4294901760
        %718 = vmatpush.msra.mxu0 %v717
        %v719 = vand.u32 %v309, 4294901760
        %v720 = vsub.f32 %v309, %v719
        %v721 = vand.u32 %v720, 4294901760
        %722 = vmatpush.msra.mxu0 %v721
        %v723 = vand.u32 %v381, 4294901760
        %724 = vmatmul.f32.gmra.mxu0 %v723
        %v725 = vpop.f32.mrf.mxu0
        %v726 = vadd.f32 %v693, %v725
        %727 = vdwg.mxu0
        %728 = vmatpush.msra.mxu0 0.0
        %729 = vmatpush.msra.mxu0 0.0
        %730 = vmatpush.msra.mxu0 0.0
        %731 = vmatpush.msra.mxu0 0.0
        %732 = vmatpush.msra.mxu0 0.0
        %733 = vmatpush.msra.mxu0 0.0
        %734 = vmatpush.msra.mxu0 0.0
        %735 = vmatpush.msra.mxu0 0.0
        %736 = vmatpush.msra.mxu0 0.0
        %737 = vmatpush.msra.mxu0 0.0
        %738 = vmatpush.msra.mxu0 0.0
        %739 = vmatpush.msra.mxu0 0.0
        %v740 = vand.u32 %v357, 4294901760
        %741 = vmatpush.msra.mxu0 %v740
        %v742 = vand.u32 %v341, 4294901760
        %743 = vmatpush.msra.mxu0 %v742
        %v744 = vand.u32 %v325, 4294901760
        %745 = vmatpush.msra.mxu0 %v744
        %v746 = vand.u32 %v309, 4294901760
        %747 = vmatpush.msra.mxu0 %v746
        %v748 = vand.u32 %v381, 4294901760
        %749 = vmatmul.f32.gmra.mxu0 %v748
        %v750 = vpop.f32.mrf.mxu0
        %v751 = vadd.f32 %v726, %v750
        %752 = vdwg.mxu0
        %753 = vmatpush.msra.mxu0 0.0
        %754 = vmatpush.msra.mxu0 0.0
        %755 = vmatpush.msra.mxu0 0.0
        %756 = vmatpush.msra.mxu0 0.0
        %757 = vmatpush.msra.mxu0 0.0
        %758 = vmatpush.msra.mxu0 0.0
        %759 = vmatpush.msra.mxu0 0.0
        %760 = vmatpush.msra.mxu0 0.0
        %761 = vmatpush.msra.mxu0 0.0
        %762 = vmatpush.msra.mxu0 0.0
        %763 = vmatpush.msra.mxu0 0.0
        %764 = vmatpush.msra.mxu0 0.0
        %v765 = vand.u32 %v358, 4294901760
        %766 = vmatpush.msra.mxu0 %v765
        %v767 = vand.u32 %v342, 4294901760
        %768 = vmatpush.msra.mxu0 %v767
        %v769 = vand.u32 %v326, 4294901760
        %770 = vmatpush.msra.mxu0 %v769
        %v771 = vand.u32 %v310, 4294901760
        %772 = vmatpush.msra.mxu0 %v771
        %v773 = vand.u32 %v381, 4294901760
        %v774 = vsub.f32 %v381, %v773
        %v775 = vand.u32 %v774, 4294901760
        %v776 = vsub.f32 %v774, %v775
        %v777 = vand.u32 %v776, 4294901760
        %778 = vmatmul.f32.gmra.mxu0 %v777
        %v779 = vpop.f32.mrf.mxu0
        %v780 = vadd.f32 %v377, %v779
        %781 = vdwg.mxu0
        %782 = vmatpush.msra.mxu0 0.0
        %783 = vmatpush.msra.mxu0 0.0
        %784 = vmatpush.msra.mxu0 0.0
        %785 = vmatpush.msra.mxu0 0.0
        %786 = vmatpush.msra.mxu0 0.0
        %787 = vmatpush.msra.mxu0 0.0
        %788 = vmatpush.msra.mxu0 0.0
        %789 = vmatpush.msra.mxu0 0.0
        %790 = vmatpush.msra.mxu0 0.0
        %791 = vmatpush.msra.mxu0 0.0
        %792 = vmatpush.msra.mxu0 0.0
        %793 = vmatpush.msra.mxu0 0.0
        %v794 = vand.u32 %v358, 4294901760
        %v795 = vsub.f32 %v358, %v794
        %v796 = vand.u32 %v795, 4294901760
        %v797 = vsub.f32 %v795, %v796
        %v798 = vand.u32 %v797, 4294901760
        %799 = vmatpush.msra.mxu0 %v798
        %v800 = vand.u32 %v342, 4294901760
        %v801 = vsub.f32 %v342, %v800
        %v802 = vand.u32 %v801, 4294901760
        %v803 = vsub.f32 %v801, %v802
        %v804 = vand.u32 %v803, 4294901760
        %805 = vmatpush.msra.mxu0 %v804
        %v806 = vand.u32 %v326, 4294901760
        %v807 = vsub.f32 %v326, %v806
        %v808 = vand.u32 %v807, 4294901760
        %v809 = vsub.f32 %v807, %v808
        %v810 = vand.u32 %v809, 4294901760
        %811 = vmatpush.msra.mxu0 %v810
        %v812 = vand.u32 %v310, 4294901760
        %v813 = vsub.f32 %v310, %v812
        %v814 = vand.u32 %v813, 4294901760
        %v815 = vsub.f32 %v813, %v814
        %v816 = vand.u32 %v815, 4294901760
        %817 = vmatpush.msra.mxu0 %v816
        %v818 = vand.u32 %v381, 4294901760
        %819 = vmatmul.f32.gmra.mxu0 %v818
        %v820 = vpop.f32.mrf.mxu0
        %v821 = vadd.f32 %v780, %v820
        %822 = vdwg.mxu0
        %823 = vmatpush.msra.mxu0 0.0
        %824 = vmatpush.msra.mxu0 0.0
        %825 = vmatpush.msra.mxu0 0.0
        %826 = vmatpush.msra.mxu0 0.0
        %827 = vmatpush.msra.mxu0 0.0
        %828 = vmatpush.msra.mxu0 0.0
        %829 = vmatpush.msra.mxu0 0.0
        %830 = vmatpush.msra.mxu0 0.0
        %831 = vmatpush.msra.mxu0 0.0
        %832 = vmatpush.msra.mxu0 0.0
        %833 = vmatpush.msra.mxu0 0.0
        %834 = vmatpush.msra.mxu0 0.0
        %v835 = vand.u32 %v358, 4294901760
        %v836 = vsub.f32 %v358, %v835
        %837 = vmatpush.msra.mxu0 %v836
        %v838 = vand.u32 %v342, 4294901760
        %v839 = vsub.f32 %v342, %v838
        %840 = vmatpush.msra.mxu0 %v839
        %v841 = vand.u32 %v326, 4294901760
        %v842 = vsub.f32 %v326, %v841
        %843 = vmatpush.msra.mxu0 %v842
        %v844 = vand.u32 %v310, 4294901760
        %v845 = vsub.f32 %v310, %v844
        %846 = vmatpush.msra.mxu0 %v845
        %v847 = vand.u32 %v381, 4294901760
        %v848 = vsub.f32 %v381, %v847
        %849 = vmatmul.f32.gmra.mxu0 %v848
        %v850 = vpop.f32.mrf.mxu0
        %v851 = vadd.f32 %v821, %v850
        %852 = vdwg.mxu0
        %853 = vmatpush.msra.mxu0 0.0
        %854 = vmatpush.msra.mxu0 0.0
        %855 = vmatpush.msra.mxu0 0.0
        %856 = vmatpush.msra.mxu0 0.0
        %857 = vmatpush.msra.mxu0 0.0
        %858 = vmatpush.msra.mxu0 0.0
        %859 = vmatpush.msra.mxu0 0.0
        %860 = vmatpush.msra.mxu0 0.0
        %861 = vmatpush.msra.mxu0 0.0
        %862 = vmatpush.msra.mxu0 0.0
        %863 = vmatpush.msra.mxu0 0.0
        %864 = vmatpush.msra.mxu0 0.0
        %v865 = vand.u32 %v358, 4294901760
        %866 = vmatpush.msra.mxu0 %v865
        %v867 = vand.u32 %v342, 4294901760
        %868 = vmatpush.msra.mxu0 %v867
        %v869 = vand.u32 %v326, 4294901760
        %870 = vmatpush.msra.mxu0 %v869
        %v871 = vand.u32 %v310, 4294901760
        %872 = vmatpush.msra.mxu0 %v871
        %v873 = vand.u32 %v381, 4294901760
        %v874 = vsub.f32 %v381, %v873
        %v875 = vand.u32 %v874, 4294901760
        %876 = vmatmul.f32.gmra.mxu0 %v875
        %v877 = vpop.f32.mrf.mxu0
        %v878 = vadd.f32 %v851, %v877
        %879 = vdwg.mxu0
        %880 = vmatpush.msra.mxu0 0.0
        %881 = vmatpush.msra.mxu0 0.0
        %882 = vmatpush.msra.mxu0 0.0
        %883 = vmatpush.msra.mxu0 0.0
        %884 = vmatpush.msra.mxu0 0.0
        %885 = vmatpush.msra.mxu0 0.0
        %886 = vmatpush.msra.mxu0 0.0
        %887 = vmatpush.msra.mxu0 0.0
        %888 = vmatpush.msra.mxu0 0.0
        %889 = vmatpush.msra.mxu0 0.0
        %890 = vmatpush.msra.mxu0 0.0
        %891 = vmatpush.msra.mxu0 0.0
        %v892 = vand.u32 %v358, 4294901760
        %v893 = vsub.f32 %v358, %v892
        %v894 = vand.u32 %v893, 4294901760
        %895 = vmatpush.msra.mxu0 %v894
        %v896 = vand.u32 %v342, 4294901760
        %v897 = vsub.f32 %v342, %v896
        %v898 = vand.u32 %v897, 4294901760
        %899 = vmatpush.msra.mxu0 %v898
        %v900 = vand.u32 %v326, 4294901760
        %v901 = vsub.f32 %v326, %v900
        %v902 = vand.u32 %v901, 4294901760
        %903 = vmatpush.msra.mxu0 %v902
        %v904 = vand.u32 %v310, 4294901760
        %v905 = vsub.f32 %v310, %v904
        %v906 = vand.u32 %v905, 4294901760
        %907 = vmatpush.msra.mxu0 %v906
        %v908 = vand.u32 %v381, 4294901760
        %909 = vmatmul.f32.gmra.mxu0 %v908
        %v910 = vpop.f32.mrf.mxu0
        %v911 = vadd.f32 %v878, %v910
        %912 = vdwg.mxu0
        %913 = vmatpush.msra.mxu0 0.0
        %914 = vmatpush.msra.mxu0 0.0
        %915 = vmatpush.msra.mxu0 0.0
        %916 = vmatpush.msra.mxu0 0.0
        %917 = vmatpush.msra.mxu0 0.0
        %918 = vmatpush.msra.mxu0 0.0
        %919 = vmatpush.msra.mxu0 0.0
        %920 = vmatpush.msra.mxu0 0.0
        %921 = vmatpush.msra.mxu0 0.0
        %922 = vmatpush.msra.mxu0 0.0
        %923 = vmatpush.msra.mxu0 0.0
        %924 = vmatpush.msra.mxu0 0.0
        %v925 = vand.u32 %v358, 4294901760
        %926 = vmatpush.msra.mxu0 %v925
        %v927 = vand.u32 %v342, 4294901760
        %928 = vmatpush.msra.mxu0 %v927
        %v929 = vand.u32 %v326, 4294901760
        %930 = vmatpush.msra.mxu0 %v929
        %v931 = vand.u32 %v310, 4294901760
        %932 = vmatpush.msra.mxu0 %v931
        %v933 = vand.u32 %v381, 4294901760
        %934 = vmatmul.f32.gmra.mxu0 %v933
        %v935 = vpop.f32.mrf.mxu0
        %v936 = vadd.f32 %v911, %v935
        %937 = vdwg.mxu0
        %938 = vmatpush.msra.mxu0 0.0
        %939 = vmatpush.msra.mxu0 0.0
        %940 = vmatpush.msra.mxu0 0.0
        %941 = vmatpush.msra.mxu0 0.0
        %942 = vmatpush.msra.mxu0 0.0
        %943 = vmatpush.msra.mxu0 0.0
        %944 = vmatpush.msra.mxu0 0.0
        %945 = vmatpush.msra.mxu0 0.0
        %946 = vmatpush.msra.mxu0 0.0
        %947 = vmatpush.msra.mxu0 0.0
        %948 = vmatpush.msra.mxu0 0.0
        %949 = vmatpush.msra.mxu0 0.0
        %v950 = vand.u32 %v359, 4294901760
        %951 = vmatpush.msra.mxu0 %v950
        %v952 = vand.u32 %v343, 4294901760
        %953 = vmatpush.msra.mxu0 %v952
        %v954 = vand.u32 %v327, 4294901760
        %955 = vmatpush.msra.mxu0 %v954
        %v956 = vand.u32 %v311, 4294901760
        %957 = vmatpush.msra.mxu0 %v956
        %v958 = vand.u32 %v381, 4294901760
        %v959 = vsub.f32 %v381, %v958
        %v960 = vand.u32 %v959, 4294901760
        %v961 = vsub.f32 %v959, %v960
        %v962 = vand.u32 %v961, 4294901760
        %963 = vmatmul.f32.gmra.mxu0 %v962
        %v964 = vpop.f32.mrf.mxu0
        %v965 = vadd.f32 %v377, %v964
        %966 = vdwg.mxu0
        %967 = vmatpush.msra.mxu0 0.0
        %968 = vmatpush.msra.mxu0 0.0
        %969 = vmatpush.msra.mxu0 0.0
        %970 = vmatpush.msra.mxu0 0.0
        %971 = vmatpush.msra.mxu0 0.0
        %972 = vmatpush.msra.mxu0 0.0
        %973 = vmatpush.msra.mxu0 0.0
        %974 = vmatpush.msra.mxu0 0.0
        %975 = vmatpush.msra.mxu0 0.0
        %976 = vmatpush.msra.mxu0 0.0
        %977 = vmatpush.msra.mxu0 0.0
        %978 = vmatpush.msra.mxu0 0.0
        %v979 = vand.u32 %v359, 4294901760
        %v980 = vsub.f32 %v359, %v979
        %v981 = vand.u32 %v980, 4294901760
        %v982 = vsub.f32 %v980, %v981
        %v983 = vand.u32 %v982, 4294901760
        %984 = vmatpush.msra.mxu0 %v983
        %v985 = vand.u32 %v343, 4294901760
        %v986 = vsub.f32 %v343, %v985
        %v987 = vand.u32 %v986, 4294901760
        %v988 = vsub.f32 %v986, %v987
        %v989 = vand.u32 %v988, 4294901760
        %990 = vmatpush.msra.mxu0 %v989
        %v991 = vand.u32 %v327, 4294901760
        %v992 = vsub.f32 %v327, %v991
        %v993 = vand.u32 %v992, 4294901760
        %v994 = vsub.f32 %v992, %v993
        %v995 = vand.u32 %v994, 4294901760
        %996 = vmatpush.msra.mxu0 %v995
        %v997 = vand.u32 %v311, 4294901760
        %v998 = vsub.f32 %v311, %v997
        %v999 = vand.u32 %v998, 4294901760
        %v1000 = vsub.f32 %v998, %v999
        %v1001 = vand.u32 %v1000, 4294901760
        %1002 = vmatpush.msra.mxu0 %v1001
        %v1003 = vand.u32 %v381, 4294901760
        %1004 = vmatmul.f32.gmra.mxu0 %v1003
        %v1005 = vpop.f32.mrf.mxu0
        %v1006 = vadd.f32 %v965, %v1005
        %1007 = vdwg.mxu0
        %1008 = vmatpush.msra.mxu0 0.0
        %1009 = vmatpush.msra.mxu0 0.0
        %1010 = vmatpush.msra.mxu0 0.0
        %1011 = vmatpush.msra.mxu0 0.0
        %1012 = vmatpush.msra.mxu0 0.0
        %1013 = vmatpush.msra.mxu0 0.0
        %1014 = vmatpush.msra.mxu0 0.0
        %1015 = vmatpush.msra.mxu0 0.0
        %1016 = vmatpush.msra.mxu0 0.0
        %1017 = vmatpush.msra.mxu0 0.0
        %1018 = vmatpush.msra.mxu0 0.0
        %1019 = vmatpush.msra.mxu0 0.0
        %v1020 = vand.u32 %v359, 4294901760
        %v1021 = vsub.f32 %v359, %v1020
        %1022 = vmatpush.msra.mxu0 %v1021
        %v1023 = vand.u32 %v343, 4294901760
        %v1024 = vsub.f32 %v343, %v1023
        %1025 = vmatpush.msra.mxu0 %v1024
        %v1026 = vand.u32 %v327, 4294901760
        %v1027 = vsub.f32 %v327, %v1026
        %1028 = vmatpush.msra.mxu0 %v1027
        %v1029 = vand.u32 %v311, 4294901760
        %v1030 = vsub.f32 %v311, %v1029
        %1031 = vmatpush.msra.mxu0 %v1030
        %v1032 = vand.u32 %v381, 4294901760
        %v1033 = vsub.f32 %v381, %v1032
        %1034 = vmatmul.f32.gmra.mxu0 %v1033
        %v1035 = vpop.f32.mrf.mxu0
        %v1036 = vadd.f32 %v1006, %v1035
        %1037 = vdwg.mxu0
        %1038 = vmatpush.msra.mxu0 0.0
        %1039 = vmatpush.msra.mxu0 0.0
        %1040 = vmatpush.msra.mxu0 0.0
        %1041 = vmatpush.msra.mxu0 0.0
        %1042 = vmatpush.msra.mxu0 0.0
        %1043 = vmatpush.msra.mxu0 0.0
        %1044 = vmatpush.msra.mxu0 0.0
        %1045 = vmatpush.msra.mxu0 0.0
        %1046 = vmatpush.msra.mxu0 0.0
        %1047 = vmatpush.msra.mxu0 0.0
        %1048 = vmatpush.msra.mxu0 0.0
        %1049 = vmatpush.msra.mxu0 0.0
        %v1050 = vand.u32 %v359, 4294901760
        %1051 = vmatpush.msra.mxu0 %v1050
        %v1052 = vand.u32 %v343, 4294901760
        %1053 = vmatpush.msra.mxu0 %v1052
        %v1054 = vand.u32 %v327, 4294901760
        %1055 = vmatpush.msra.mxu0 %v1054
        %v1056 = vand.u32 %v311, 4294901760
        %1057 = vmatpush.msra.mxu0 %v1056
        %v1058 = vand.u32 %v381, 4294901760
        %v1059 = vsub.f32 %v381, %v1058
        %v1060 = vand.u32 %v1059, 4294901760
        %1061 = vmatmul.f32.gmra.mxu0 %v1060
        %v1062 = vpop.f32.mrf.mxu0
        %v1063 = vadd.f32 %v1036, %v1062
        %1064 = vdwg.mxu0
        %1065 = vmatpush.msra.mxu0 0.0
        %1066 = vmatpush.msra.mxu0 0.0
        %1067 = vmatpush.msra.mxu0 0.0
        %1068 = vmatpush.msra.mxu0 0.0
        %1069 = vmatpush.msra.mxu0 0.0
        %1070 = vmatpush.msra.mxu0 0.0
        %1071 = vmatpush.msra.mxu0 0.0
        %1072 = vmatpush.msra.mxu0 0.0
        %1073 = vmatpush.msra.mxu0 0.0
        %1074 = vmatpush.msra.mxu0 0.0
        %1075 = vmatpush.msra.mxu0 0.0
        %1076 = vmatpush.msra.mxu0 0.0
        %v1077 = vand.u32 %v359, 4294901760
        %v1078 = vsub.f32 %v359, %v1077
        %v1079 = vand.u32 %v1078, 4294901760
        %1080 = vmatpush.msra.mxu0 %v1079
        %v1081 = vand.u32 %v343, 4294901760
        %v1082 = vsub.f32 %v343, %v1081
        %v1083 = vand.u32 %v1082, 4294901760
        %1084 = vmatpush.msra.mxu0 %v1083
        %v1085 = vand.u32 %v327, 4294901760
        %v1086 = vsub.f32 %v327, %v1085
        %v1087 = vand.u32 %v1086, 4294901760
        %1088 = vmatpush.msra.mxu0 %v1087
        %v1089 = vand.u32 %v311, 4294901760
        %v1090 = vsub.f32 %v311, %v1089
        %v1091 = vand.u32 %v1090, 4294901760
        %1092 = vmatpush.msra.mxu0 %v1091
        %v1093 = vand.u32 %v381, 4294901760
        %1094 = vmatmul.f32.gmra.mxu0 %v1093
        %v1095 = vpop.f32.mrf.mxu0
        %v1096 = vadd.f32 %v1063, %v1095
        %1097 = vdwg.mxu0
        %1098 = vmatpush.msra.mxu0 0.0
        %1099 = vmatpush.msra.mxu0 0.0
        %1100 = vmatpush.msra.mxu0 0.0
        %1101 = vmatpush.msra.mxu0 0.0
        %1102 = vmatpush.msra.mxu0 0.0
        %1103 = vmatpush.msra.mxu0 0.0
        %1104 = vmatpush.msra.mxu0 0.0
        %1105 = vmatpush.msra.mxu0 0.0
        %1106 = vmatpush.msra.mxu0 0.0
        %1107 = vmatpush.msra.mxu0 0.0
        %1108 = vmatpush.msra.mxu0 0.0
        %1109 = vmatpush.msra.mxu0 0.0
        %v1110 = vand.u32 %v359, 4294901760
        %1111 = vmatpush.msra.mxu0 %v1110
        %v1112 = vand.u32 %v343, 4294901760
        %1113 = vmatpush.msra.mxu0 %v1112
        %v1114 = vand.u32 %v327, 4294901760
        %1115 = vmatpush.msra.mxu0 %v1114
        %v1116 = vand.u32 %v311, 4294901760
        %1117 = vmatpush.msra.mxu0 %v1116
        %v1118 = vand.u32 %v381, 4294901760
        %1119 = vmatmul.f32.gmra.mxu0 %v1118
        %v1120 = vpop.f32.mrf.mxu0
        %v1121 = vadd.f32 %v1096, %v1120
        %1122 = vdwg.mxu0
        %1123 = vmatpush.msra.mxu0 0.0
        %1124 = vmatpush.msra.mxu0 0.0
        %1125 = vmatpush.msra.mxu0 0.0
        %1126 = vmatpush.msra.mxu0 0.0
        %1127 = vmatpush.msra.mxu0 0.0
        %1128 = vmatpush.msra.mxu0 0.0
        %1129 = vmatpush.msra.mxu0 0.0
        %1130 = vmatpush.msra.mxu0 0.0
        %1131 = vmatpush.msra.mxu0 0.0
        %1132 = vmatpush.msra.mxu0 0.0
        %1133 = vmatpush.msra.mxu0 0.0
        %1134 = vmatpush.msra.mxu0 0.0
        %v1135 = vand.u32 %v360, 4294901760
        %1136 = vmatpush.msra.mxu0 %v1135
        %v1137 = vand.u32 %v344, 4294901760
        %1138 = vmatpush.msra.mxu0 %v1137
        %v1139 = vand.u32 %v328, 4294901760
        %1140 = vmatpush.msra.mxu0 %v1139
        %v1141 = vand.u32 %v312, 4294901760
        %1142 = vmatpush.msra.mxu0 %v1141
        %v1143 = vand.u32 %v381, 4294901760
        %v1144 = vsub.f32 %v381, %v1143
        %v1145 = vand.u32 %v1144, 4294901760
        %v1146 = vsub.f32 %v1144, %v1145
        %v1147 = vand.u32 %v1146, 4294901760
        %1148 = vmatmul.f32.gmra.mxu0 %v1147
        %v1149 = vpop.f32.mrf.mxu0
        %v1150 = vadd.f32 %v377, %v1149
        %1151 = vdwg.mxu0
        %1152 = vmatpush.msra.mxu0 0.0
        %1153 = vmatpush.msra.mxu0 0.0
        %1154 = vmatpush.msra.mxu0 0.0
        %1155 = vmatpush.msra.mxu0 0.0
        %1156 = vmatpush.msra.mxu0 0.0
        %1157 = vmatpush.msra.mxu0 0.0
        %1158 = vmatpush.msra.mxu0 0.0
        %1159 = vmatpush.msra.mxu0 0.0
        %1160 = vmatpush.msra.mxu0 0.0
        %1161 = vmatpush.msra.mxu0 0.0
        %1162 = vmatpush.msra.mxu0 0.0
        %1163 = vmatpush.msra.mxu0 0.0
        %v1164 = vand.u32 %v360, 4294901760
        %v1165 = vsub.f32 %v360, %v1164
        %v1166 = vand.u32 %v1165, 4294901760
        %v1167 = vsub.f32 %v1165, %v1166
        %v1168 = vand.u32 %v1167, 4294901760
        %1169 = vmatpush.msra.mxu0 %v1168
        %v1170 = vand.u32 %v344, 4294901760
        %v1171 = vsub.f32 %v344, %v1170
        %v1172 = vand.u32 %v1171, 4294901760
        %v1173 = vsub.f32 %v1171, %v1172
        %v1174 = vand.u32 %v1173, 4294901760
        %1175 = vmatpush.msra.mxu0 %v1174
        %v1176 = vand.u32 %v328, 4294901760
        %v1177 = vsub.f32 %v328, %v1176
        %v1178 = vand.u32 %v1177, 4294901760
        %v1179 = vsub.f32 %v1177, %v1178
        %v1180 = vand.u32 %v1179, 4294901760
        %1181 = vmatpush.msra.mxu0 %v1180
        %v1182 = vand.u32 %v312, 4294901760
        %v1183 = vsub.f32 %v312, %v1182
        %v1184 = vand.u32 %v1183, 4294901760
        %v1185 = vsub.f32 %v1183, %v1184
        %v1186 = vand.u32 %v1185, 4294901760
        %1187 = vmatpush.msra.mxu0 %v1186
        %v1188 = vand.u32 %v381, 4294901760
        %1189 = vmatmul.f32.gmra.mxu0 %v1188
        %v1190 = vpop.f32.mrf.mxu0
        %v1191 = vadd.f32 %v1150, %v1190
        %1192 = vdwg.mxu0
        %1193 = vmatpush.msra.mxu0 0.0
        %1194 = vmatpush.msra.mxu0 0.0
        %1195 = vmatpush.msra.mxu0 0.0
        %1196 = vmatpush.msra.mxu0 0.0
        %1197 = vmatpush.msra.mxu0 0.0
        %1198 = vmatpush.msra.mxu0 0.0
        %1199 = vmatpush.msra.mxu0 0.0
        %1200 = vmatpush.msra.mxu0 0.0
        %1201 = vmatpush.msra.mxu0 0.0
        %1202 = vmatpush.msra.mxu0 0.0
        %1203 = vmatpush.msra.mxu0 0.0
        %1204 = vmatpush.msra.mxu0 0.0
        %v1205 = vand.u32 %v360, 4294901760
        %v1206 = vsub.f32 %v360, %v1205
        %1207 = vmatpush.msra.mxu0 %v1206
        %v1208 = vand.u32 %v344, 4294901760
        %v1209 = vsub.f32 %v344, %v1208
        %1210 = vmatpush.msra.mxu0 %v1209
        %v1211 = vand.u32 %v328, 4294901760
        %v1212 = vsub.f32 %v328, %v1211
        %1213 = vmatpush.msra.mxu0 %v1212
        %v1214 = vand.u32 %v312, 4294901760
        %v1215 = vsub.f32 %v312, %v1214
        %1216 = vmatpush.msra.mxu0 %v1215
        %v1217 = vand.u32 %v381, 4294901760
        %v1218 = vsub.f32 %v381, %v1217
        %1219 = vmatmul.f32.gmra.mxu0 %v1218
        %v1220 = vpop.f32.mrf.mxu0
        %v1221 = vadd.f32 %v1191, %v1220
        %1222 = vdwg.mxu0
        %1223 = vmatpush.msra.mxu0 0.0
        %1224 = vmatpush.msra.mxu0 0.0
        %1225 = vmatpush.msra.mxu0 0.0
        %1226 = vmatpush.msra.mxu0 0.0
        %1227 = vmatpush.msra.mxu0 0.0
        %1228 = vmatpush.msra.mxu0 0.0
        %1229 = vmatpush.msra.mxu0 0.0
        %1230 = vmatpush.msra.mxu0 0.0
        %1231 = vmatpush.msra.mxu0 0.0
        %1232 = vmatpush.msra.mxu0 0.0
        %1233 = vmatpush.msra.mxu0 0.0
        %1234 = vmatpush.msra.mxu0 0.0
        %v1235 = vand.u32 %v360, 4294901760
        %1236 = vmatpush.msra.mxu0 %v1235
        %v1237 = vand.u32 %v344, 4294901760
        %1238 = vmatpush.msra.mxu0 %v1237
        %v1239 = vand.u32 %v328, 4294901760
        %1240 = vmatpush.msra.mxu0 %v1239
        %v1241 = vand.u32 %v312, 4294901760
        %1242 = vmatpush.msra.mxu0 %v1241
        %v1243 = vand.u32 %v381, 4294901760
        %v1244 = vsub.f32 %v381, %v1243
        %v1245 = vand.u32 %v1244, 4294901760
        %1246 = vmatmul.f32.gmra.mxu0 %v1245
        %v1247 = vpop.f32.mrf.mxu0
        %v1248 = vadd.f32 %v1221, %v1247
        %1249 = vdwg.mxu0
        %1250 = vmatpush.msra.mxu0 0.0
        %1251 = vmatpush.msra.mxu0 0.0
        %1252 = vmatpush.msra.mxu0 0.0
        %1253 = vmatpush.msra.mxu0 0.0
        %1254 = vmatpush.msra.mxu0 0.0
        %1255 = vmatpush.msra.mxu0 0.0
        %1256 = vmatpush.msra.mxu0 0.0
        %1257 = vmatpush.msra.mxu0 0.0
        %1258 = vmatpush.msra.mxu0 0.0
        %1259 = vmatpush.msra.mxu0 0.0
        %1260 = vmatpush.msra.mxu0 0.0
        %1261 = vmatpush.msra.mxu0 0.0
        %v1262 = vand.u32 %v360, 4294901760
        %v1263 = vsub.f32 %v360, %v1262
        %v1264 = vand.u32 %v1263, 4294901760
        %1265 = vmatpush.msra.mxu0 %v1264
        %v1266 = vand.u32 %v344, 4294901760
        %v1267 = vsub.f32 %v344, %v1266
        %v1268 = vand.u32 %v1267, 4294901760
        %1269 = vmatpush.msra.mxu0 %v1268
        %v1270 = vand.u32 %v328, 4294901760
        %v1271 = vsub.f32 %v328, %v1270
        %v1272 = vand.u32 %v1271, 4294901760
        %1273 = vmatpush.msra.mxu0 %v1272
        %v1274 = vand.u32 %v312, 4294901760
        %v1275 = vsub.f32 %v312, %v1274
        %v1276 = vand.u32 %v1275, 4294901760
        %1277 = vmatpush.msra.mxu0 %v1276
        %v1278 = vand.u32 %v381, 4294901760
        %1279 = vmatmul.f32.gmra.mxu0 %v1278
        %v1280 = vpop.f32.mrf.mxu0
        %v1281 = vadd.f32 %v1248, %v1280
        %1282 = vdwg.mxu0
        %1283 = vmatpush.msra.mxu0 0.0
        %1284 = vmatpush.msra.mxu0 0.0
        %1285 = vmatpush.msra.mxu0 0.0
        %1286 = vmatpush.msra.mxu0 0.0
        %1287 = vmatpush.msra.mxu0 0.0
        %1288 = vmatpush.msra.mxu0 0.0
        %1289 = vmatpush.msra.mxu0 0.0
        %1290 = vmatpush.msra.mxu0 0.0
        %1291 = vmatpush.msra.mxu0 0.0
        %1292 = vmatpush.msra.mxu0 0.0
        %1293 = vmatpush.msra.mxu0 0.0
        %1294 = vmatpush.msra.mxu0 0.0
        %v1295 = vand.u32 %v360, 4294901760
        %1296 = vmatpush.msra.mxu0 %v1295
        %v1297 = vand.u32 %v344, 4294901760
        %1298 = vmatpush.msra.mxu0 %v1297
        %v1299 = vand.u32 %v328, 4294901760
        %1300 = vmatpush.msra.mxu0 %v1299
        %v1301 = vand.u32 %v312, 4294901760
        %1302 = vmatpush.msra.mxu0 %v1301
        %v1303 = vand.u32 %v381, 4294901760
        %1304 = vmatmul.f32.gmra.mxu0 %v1303
        %v1305 = vpop.f32.mrf.mxu0
        %v1306 = vadd.f32 %v1281, %v1305
        %1307 = vdwg.mxu0
        %1308 = vmatpush.msra.mxu0 0.0
        %1309 = vmatpush.msra.mxu0 0.0
        %1310 = vmatpush.msra.mxu0 0.0
        %1311 = vmatpush.msra.mxu0 0.0
        %1312 = vmatpush.msra.mxu0 0.0
        %1313 = vmatpush.msra.mxu0 0.0
        %1314 = vmatpush.msra.mxu0 0.0
        %1315 = vmatpush.msra.mxu0 0.0
        %1316 = vmatpush.msra.mxu0 0.0
        %1317 = vmatpush.msra.mxu0 0.0
        %1318 = vmatpush.msra.mxu0 0.0
        %1319 = vmatpush.msra.mxu0 0.0
        %v1320 = vand.u32 %v361, 4294901760
        %1321 = vmatpush.msra.mxu0 %v1320
        %v1322 = vand.u32 %v345, 4294901760
        %1323 = vmatpush.msra.mxu0 %v1322
        %v1324 = vand.u32 %v329, 4294901760
        %1325 = vmatpush.msra.mxu0 %v1324
        %v1326 = vand.u32 %v313, 4294901760
        %1327 = vmatpush.msra.mxu0 %v1326
        %v1328 = vand.u32 %v381, 4294901760
        %v1329 = vsub.f32 %v381, %v1328
        %v1330 = vand.u32 %v1329, 4294901760
        %v1331 = vsub.f32 %v1329, %v1330
        %v1332 = vand.u32 %v1331, 4294901760
        %1333 = vmatmul.f32.gmra.mxu0 %v1332
        %v1334 = vpop.f32.mrf.mxu0
        %v1335 = vadd.f32 %v377, %v1334
        %1336 = vdwg.mxu0
        %1337 = vmatpush.msra.mxu0 0.0
        %1338 = vmatpush.msra.mxu0 0.0
        %1339 = vmatpush.msra.mxu0 0.0
        %1340 = vmatpush.msra.mxu0 0.0
        %1341 = vmatpush.msra.mxu0 0.0
        %1342 = vmatpush.msra.mxu0 0.0
        %1343 = vmatpush.msra.mxu0 0.0
        %1344 = vmatpush.msra.mxu0 0.0
        %1345 = vmatpush.msra.mxu0 0.0
        %1346 = vmatpush.msra.mxu0 0.0
        %1347 = vmatpush.msra.mxu0 0.0
        %1348 = vmatpush.msra.mxu0 0.0
        %v1349 = vand.u32 %v361, 4294901760
        %v1350 = vsub.f32 %v361, %v1349
        %v1351 = vand.u32 %v1350, 4294901760
        %v1352 = vsub.f32 %v1350, %v1351
        %v1353 = vand.u32 %v1352, 4294901760
        %1354 = vmatpush.msra.mxu0 %v1353
        %v1355 = vand.u32 %v345, 4294901760
        %v1356 = vsub.f32 %v345, %v1355
        %v1357 = vand.u32 %v1356, 4294901760
        %v1358 = vsub.f32 %v1356, %v1357
        %v1359 = vand.u32 %v1358, 4294901760
        %1360 = vmatpush.msra.mxu0 %v1359
        %v1361 = vand.u32 %v329, 4294901760
        %v1362 = vsub.f32 %v329, %v1361
        %v1363 = vand.u32 %v1362, 4294901760
        %v1364 = vsub.f32 %v1362, %v1363
        %v1365 = vand.u32 %v1364, 4294901760
        %1366 = vmatpush.msra.mxu0 %v1365
        %v1367 = vand.u32 %v313, 4294901760
        %v1368 = vsub.f32 %v313, %v1367
        %v1369 = vand.u32 %v1368, 4294901760
        %v1370 = vsub.f32 %v1368, %v1369
        %v1371 = vand.u32 %v1370, 4294901760
        %1372 = vmatpush.msra.mxu0 %v1371
        %v1373 = vand.u32 %v381, 4294901760
        %1374 = vmatmul.f32.gmra.mxu0 %v1373
        %v1375 = vpop.f32.mrf.mxu0
        %v1376 = vadd.f32 %v1335, %v1375
        %1377 = vdwg.mxu0
        %1378 = vmatpush.msra.mxu0 0.0
        %1379 = vmatpush.msra.mxu0 0.0
        %1380 = vmatpush.msra.mxu0 0.0
        %1381 = vmatpush.msra.mxu0 0.0
        %1382 = vmatpush.msra.mxu0 0.0
        %1383 = vmatpush.msra.mxu0 0.0
        %1384 = vmatpush.msra.mxu0 0.0
        %1385 = vmatpush.msra.mxu0 0.0
        %1386 = vmatpush.msra.mxu0 0.0
        %1387 = vmatpush.msra.mxu0 0.0
        %1388 = vmatpush.msra.mxu0 0.0
        %1389 = vmatpush.msra.mxu0 0.0
        %v1390 = vand.u32 %v361, 4294901760
        %v1391 = vsub.f32 %v361, %v1390
        %1392 = vmatpush.msra.mxu0 %v1391
        %v1393 = vand.u32 %v345, 4294901760
        %v1394 = vsub.f32 %v345, %v1393
        %1395 = vmatpush.msra.mxu0 %v1394
        %v1396 = vand.u32 %v329, 4294901760
        %v1397 = vsub.f32 %v329, %v1396
        %1398 = vmatpush.msra.mxu0 %v1397
        %v1399 = vand.u32 %v313, 4294901760
        %v1400 = vsub.f32 %v313, %v1399
        %1401 = vmatpush.msra.mxu0 %v1400
        %v1402 = vand.u32 %v381, 4294901760
        %v1403 = vsub.f32 %v381, %v1402
        %1404 = vmatmul.f32.gmra.mxu0 %v1403
        %v1405 = vpop.f32.mrf.mxu0
        %v1406 = vadd.f32 %v1376, %v1405
        %1407 = vdwg.mxu0
        %1408 = vmatpush.msra.mxu0 0.0
        %1409 = vmatpush.msra.mxu0 0.0
        %1410 = vmatpush.msra.mxu0 0.0
        %1411 = vmatpush.msra.mxu0 0.0
        %1412 = vmatpush.msra.mxu0 0.0
        %1413 = vmatpush.msra.mxu0 0.0
        %1414 = vmatpush.msra.mxu0 0.0
        %1415 = vmatpush.msra.mxu0 0.0
        %1416 = vmatpush.msra.mxu0 0.0
        %1417 = vmatpush.msra.mxu0 0.0
        %1418 = vmatpush.msra.mxu0 0.0
        %1419 = vmatpush.msra.mxu0 0.0
        %v1420 = vand.u32 %v361, 4294901760
        %1421 = vmatpush.msra.mxu0 %v1420
        %v1422 = vand.u32 %v345, 4294901760
        %1423 = vmatpush.msra.mxu0 %v1422
        %v1424 = vand.u32 %v329, 4294901760
        %1425 = vmatpush.msra.mxu0 %v1424
        %v1426 = vand.u32 %v313, 4294901760
        %1427 = vmatpush.msra.mxu0 %v1426
        %v1428 = vand.u32 %v381, 4294901760
        %v1429 = vsub.f32 %v381, %v1428
        %v1430 = vand.u32 %v1429, 4294901760
        %1431 = vmatmul.f32.gmra.mxu0 %v1430
        %v1432 = vpop.f32.mrf.mxu0
        %v1433 = vadd.f32 %v1406, %v1432
        %1434 = vdwg.mxu0
        %1435 = vmatpush.msra.mxu0 0.0
        %1436 = vmatpush.msra.mxu0 0.0
        %1437 = vmatpush.msra.mxu0 0.0
        %1438 = vmatpush.msra.mxu0 0.0
        %1439 = vmatpush.msra.mxu0 0.0
        %1440 = vmatpush.msra.mxu0 0.0
        %1441 = vmatpush.msra.mxu0 0.0
        %1442 = vmatpush.msra.mxu0 0.0
        %1443 = vmatpush.msra.mxu0 0.0
        %1444 = vmatpush.msra.mxu0 0.0
        %1445 = vmatpush.msra.mxu0 0.0
        %1446 = vmatpush.msra.mxu0 0.0
        %v1447 = vand.u32 %v361, 4294901760
        %v1448 = vsub.f32 %v361, %v1447
        %v1449 = vand.u32 %v1448, 4294901760
        %1450 = vmatpush.msra.mxu0 %v1449
        %v1451 = vand.u32 %v345, 4294901760
        %v1452 = vsub.f32 %v345, %v1451
        %v1453 = vand.u32 %v1452, 4294901760
        %1454 = vmatpush.msra.mxu0 %v1453
        %v1455 = vand.u32 %v329, 4294901760
        %v1456 = vsub.f32 %v329, %v1455
        %v1457 = vand.u32 %v1456, 4294901760
        %1458 = vmatpush.msra.mxu0 %v1457
        %v1459 = vand.u32 %v313, 4294901760
        %v1460 = vsub.f32 %v313, %v1459
        %v1461 = vand.u32 %v1460, 4294901760
        %1462 = vmatpush.msra.mxu0 %v1461
        %v1463 = vand.u32 %v381, 4294901760
        %1464 = vmatmul.f32.gmra.mxu0 %v1463
        %v1465 = vpop.f32.mrf.mxu0
        %v1466 = vadd.f32 %v1433, %v1465
        %1467 = vdwg.mxu0
        %1468 = vmatpush.msra.mxu0 0.0
        %1469 = vmatpush.msra.mxu0 0.0
        %1470 = vmatpush.msra.mxu0 0.0
        %1471 = vmatpush.msra.mxu0 0.0
        %1472 = vmatpush.msra.mxu0 0.0
        %1473 = vmatpush.msra.mxu0 0.0
        %1474 = vmatpush.msra.mxu0 0.0
        %1475 = vmatpush.msra.mxu0 0.0
        %1476 = vmatpush.msra.mxu0 0.0
        %1477 = vmatpush.msra.mxu0 0.0
        %1478 = vmatpush.msra.mxu0 0.0
        %1479 = vmatpush.msra.mxu0 0.0
        %v1480 = vand.u32 %v361, 4294901760
        %1481 = vmatpush.msra.mxu0 %v1480
        %v1482 = vand.u32 %v345, 4294901760
        %1483 = vmatpush.msra.mxu0 %v1482
        %v1484 = vand.u32 %v329, 4294901760
        %1485 = vmatpush.msra.mxu0 %v1484
        %v1486 = vand.u32 %v313, 4294901760
        %1487 = vmatpush.msra.mxu0 %v1486
        %v1488 = vand.u32 %v381, 4294901760
        %1489 = vmatmul.f32.gmra.mxu0 %v1488
        %v1490 = vpop.f32.mrf.mxu0
        %v1491 = vadd.f32 %v1466, %v1490
        %1492 = vdwg.mxu0
        %1493 = vmatpush.msra.mxu0 0.0
        %1494 = vmatpush.msra.mxu0 0.0
        %1495 = vmatpush.msra.mxu0 0.0
        %1496 = vmatpush.msra.mxu0 0.0
        %1497 = vmatpush.msra.mxu0 0.0
        %1498 = vmatpush.msra.mxu0 0.0
        %1499 = vmatpush.msra.mxu0 0.0
        %1500 = vmatpush.msra.mxu0 0.0
        %1501 = vmatpush.msra.mxu0 0.0
        %1502 = vmatpush.msra.mxu0 0.0
        %1503 = vmatpush.msra.mxu0 0.0
        %1504 = vmatpush.msra.mxu0 0.0
        %v1505 = vand.u32 %v362, 4294901760
        %1506 = vmatpush.msra.mxu0 %v1505
        %v1507 = vand.u32 %v346, 4294901760
        %1508 = vmatpush.msra.mxu0 %v1507
        %v1509 = vand.u32 %v330, 4294901760
        %1510 = vmatpush.msra.mxu0 %v1509
        %v1511 = vand.u32 %v314, 4294901760
        %1512 = vmatpush.msra.mxu0 %v1511
        %v1513 = vand.u32 %v381, 4294901760
        %v1514 = vsub.f32 %v381, %v1513
        %v1515 = vand.u32 %v1514, 4294901760
        %v1516 = vsub.f32 %v1514, %v1515
        %v1517 = vand.u32 %v1516, 4294901760
        %1518 = vmatmul.f32.gmra.mxu0 %v1517
        %v1519 = vpop.f32.mrf.mxu0
        %v1520 = vadd.f32 %v377, %v1519
        %1521 = vdwg.mxu0
        %1522 = vmatpush.msra.mxu0 0.0
        %1523 = vmatpush.msra.mxu0 0.0
        %1524 = vmatpush.msra.mxu0 0.0
        %1525 = vmatpush.msra.mxu0 0.0
        %1526 = vmatpush.msra.mxu0 0.0
        %1527 = vmatpush.msra.mxu0 0.0
        %1528 = vmatpush.msra.mxu0 0.0
        %1529 = vmatpush.msra.mxu0 0.0
        %1530 = vmatpush.msra.mxu0 0.0
        %1531 = vmatpush.msra.mxu0 0.0
        %1532 = vmatpush.msra.mxu0 0.0
        %1533 = vmatpush.msra.mxu0 0.0
        %v1534 = vand.u32 %v362, 4294901760
        %v1535 = vsub.f32 %v362, %v1534
        %v1536 = vand.u32 %v1535, 4294901760
        %v1537 = vsub.f32 %v1535, %v1536
        %v1538 = vand.u32 %v1537, 4294901760
        %1539 = vmatpush.msra.mxu0 %v1538
        %v1540 = vand.u32 %v346, 4294901760
        %v1541 = vsub.f32 %v346, %v1540
        %v1542 = vand.u32 %v1541, 4294901760
        %v1543 = vsub.f32 %v1541, %v1542
        %v1544 = vand.u32 %v1543, 4294901760
        %1545 = vmatpush.msra.mxu0 %v1544
        %v1546 = vand.u32 %v330, 4294901760
        %v1547 = vsub.f32 %v330, %v1546
        %v1548 = vand.u32 %v1547, 4294901760
        %v1549 = vsub.f32 %v1547, %v1548
        %v1550 = vand.u32 %v1549, 4294901760
        %1551 = vmatpush.msra.mxu0 %v1550
        %v1552 = vand.u32 %v314, 4294901760
        %v1553 = vsub.f32 %v314, %v1552
        %v1554 = vand.u32 %v1553, 4294901760
        %v1555 = vsub.f32 %v1553, %v1554
        %v1556 = vand.u32 %v1555, 4294901760
        %1557 = vmatpush.msra.mxu0 %v1556
        %v1558 = vand.u32 %v381, 4294901760
        %1559 = vmatmul.f32.gmra.mxu0 %v1558
        %v1560 = vpop.f32.mrf.mxu0
        %v1561 = vadd.f32 %v1520, %v1560
        %1562 = vdwg.mxu0
        %1563 = vmatpush.msra.mxu0 0.0
        %1564 = vmatpush.msra.mxu0 0.0
        %1565 = vmatpush.msra.mxu0 0.0
        %1566 = vmatpush.msra.mxu0 0.0
        %1567 = vmatpush.msra.mxu0 0.0
        %1568 = vmatpush.msra.mxu0 0.0
        %1569 = vmatpush.msra.mxu0 0.0
        %1570 = vmatpush.msra.mxu0 0.0
        %1571 = vmatpush.msra.mxu0 0.0
        %1572 = vmatpush.msra.mxu0 0.0
        %1573 = vmatpush.msra.mxu0 0.0
        %1574 = vmatpush.msra.mxu0 0.0
        %v1575 = vand.u32 %v362, 4294901760
        %v1576 = vsub.f32 %v362, %v1575
        %1577 = vmatpush.msra.mxu0 %v1576
        %v1578 = vand.u32 %v346, 4294901760
        %v1579 = vsub.f32 %v346, %v1578
        %1580 = vmatpush.msra.mxu0 %v1579
        %v1581 = vand.u32 %v330, 4294901760
        %v1582 = vsub.f32 %v330, %v1581
        %1583 = vmatpush.msra.mxu0 %v1582
        %v1584 = vand.u32 %v314, 4294901760
        %v1585 = vsub.f32 %v314, %v1584
        %1586 = vmatpush.msra.mxu0 %v1585
        %v1587 = vand.u32 %v381, 4294901760
        %v1588 = vsub.f32 %v381, %v1587
        %1589 = vmatmul.f32.gmra.mxu0 %v1588
        %v1590 = vpop.f32.mrf.mxu0
        %v1591 = vadd.f32 %v1561, %v1590
        %1592 = vdwg.mxu0
        %1593 = vmatpush.msra.mxu0 0.0
        %1594 = vmatpush.msra.mxu0 0.0
        %1595 = vmatpush.msra.mxu0 0.0
        %1596 = vmatpush.msra.mxu0 0.0
        %1597 = vmatpush.msra.mxu0 0.0
        %1598 = vmatpush.msra.mxu0 0.0
        %1599 = vmatpush.msra.mxu0 0.0
        %1600 = vmatpush.msra.mxu0 0.0
        %1601 = vmatpush.msra.mxu0 0.0
        %1602 = vmatpush.msra.mxu0 0.0
        %1603 = vmatpush.msra.mxu0 0.0
        %1604 = vmatpush.msra.mxu0 0.0
        %v1605 = vand.u32 %v362, 4294901760
        %1606 = vmatpush.msra.mxu0 %v1605
        %v1607 = vand.u32 %v346, 4294901760
        %1608 = vmatpush.msra.mxu0 %v1607
        %v1609 = vand.u32 %v330, 4294901760
        %1610 = vmatpush.msra.mxu0 %v1609
        %v1611 = vand.u32 %v314, 4294901760
        %1612 = vmatpush.msra.mxu0 %v1611
        %v1613 = vand.u32 %v381, 4294901760
        %v1614 = vsub.f32 %v381, %v1613
        %v1615 = vand.u32 %v1614, 4294901760
        %1616 = vmatmul.f32.gmra.mxu0 %v1615
        %v1617 = vpop.f32.mrf.mxu0
        %v1618 = vadd.f32 %v1591, %v1617
        %1619 = vdwg.mxu0
        %1620 = vmatpush.msra.mxu0 0.0
        %1621 = vmatpush.msra.mxu0 0.0
        %1622 = vmatpush.msra.mxu0 0.0
        %1623 = vmatpush.msra.mxu0 0.0
        %1624 = vmatpush.msra.mxu0 0.0
        %1625 = vmatpush.msra.mxu0 0.0
        %1626 = vmatpush.msra.mxu0 0.0
        %1627 = vmatpush.msra.mxu0 0.0
        %1628 = vmatpush.msra.mxu0 0.0
        %1629 = vmatpush.msra.mxu0 0.0
        %1630 = vmatpush.msra.mxu0 0.0
        %1631 = vmatpush.msra.mxu0 0.0
        %v1632 = vand.u32 %v362, 4294901760
        %v1633 = vsub.f32 %v362, %v1632
        %v1634 = vand.u32 %v1633, 4294901760
        %1635 = vmatpush.msra.mxu0 %v1634
        %v1636 = vand.u32 %v346, 4294901760
        %v1637 = vsub.f32 %v346, %v1636
        %v1638 = vand.u32 %v1637, 4294901760
        %1639 = vmatpush.msra.mxu0 %v1638
        %v1640 = vand.u32 %v330, 4294901760
        %v1641 = vsub.f32 %v330, %v1640
        %v1642 = vand.u32 %v1641, 4294901760
        %1643 = vmatpush.msra.mxu0 %v1642
        %v1644 = vand.u32 %v314, 4294901760
        %v1645 = vsub.f32 %v314, %v1644
        %v1646 = vand.u32 %v1645, 4294901760
        %1647 = vmatpush.msra.mxu0 %v1646
        %v1648 = vand.u32 %v381, 4294901760
        %1649 = vmatmul.f32.gmra.mxu0 %v1648
        %v1650 = vpop.f32.mrf.mxu0
        %v1651 = vadd.f32 %v1618, %v1650
        %1652 = vdwg.mxu0
        %1653 = vmatpush.msra.mxu0 0.0
        %1654 = vmatpush.msra.mxu0 0.0
        %1655 = vmatpush.msra.mxu0 0.0
        %1656 = vmatpush.msra.mxu0 0.0
        %1657 = vmatpush.msra.mxu0 0.0
        %1658 = vmatpush.msra.mxu0 0.0
        %1659 = vmatpush.msra.mxu0 0.0
        %1660 = vmatpush.msra.mxu0 0.0
        %1661 = vmatpush.msra.mxu0 0.0
        %1662 = vmatpush.msra.mxu0 0.0
        %1663 = vmatpush.msra.mxu0 0.0
        %1664 = vmatpush.msra.mxu0 0.0
        %v1665 = vand.u32 %v362, 4294901760
        %1666 = vmatpush.msra.mxu0 %v1665
        %v1667 = vand.u32 %v346, 4294901760
        %1668 = vmatpush.msra.mxu0 %v1667
        %v1669 = vand.u32 %v330, 4294901760
        %1670 = vmatpush.msra.mxu0 %v1669
        %v1671 = vand.u32 %v314, 4294901760
        %1672 = vmatpush.msra.mxu0 %v1671
        %v1673 = vand.u32 %v381, 4294901760
        %1674 = vmatmul.f32.gmra.mxu0 %v1673
        %v1675 = vpop.f32.mrf.mxu0
        %v1676 = vadd.f32 %v1651, %v1675
        %1677 = vdwg.mxu0
        %1678 = vmatpush.msra.mxu0 0.0
        %1679 = vmatpush.msra.mxu0 0.0
        %1680 = vmatpush.msra.mxu0 0.0
        %1681 = vmatpush.msra.mxu0 0.0
        %1682 = vmatpush.msra.mxu0 0.0
        %1683 = vmatpush.msra.mxu0 0.0
        %1684 = vmatpush.msra.mxu0 0.0
        %1685 = vmatpush.msra.mxu0 0.0
        %1686 = vmatpush.msra.mxu0 0.0
        %1687 = vmatpush.msra.mxu0 0.0
        %1688 = vmatpush.msra.mxu0 0.0
        %1689 = vmatpush.msra.mxu0 0.0
        %v1690 = vand.u32 %v363, 4294901760
        %1691 = vmatpush.msra.mxu0 %v1690
        %v1692 = vand.u32 %v347, 4294901760
        %1693 = vmatpush.msra.mxu0 %v1692
        %v1694 = vand.u32 %v331, 4294901760
        %1695 = vmatpush.msra.mxu0 %v1694
        %v1696 = vand.u32 %v315, 4294901760
        %1697 = vmatpush.msra.mxu0 %v1696
        %v1698 = vand.u32 %v381, 4294901760
        %v1699 = vsub.f32 %v381, %v1698
        %v1700 = vand.u32 %v1699, 4294901760
        %v1701 = vsub.f32 %v1699, %v1700
        %v1702 = vand.u32 %v1701, 4294901760
        %1703 = vmatmul.f32.gmra.mxu0 %v1702
        %v1704 = vpop.f32.mrf.mxu0
        %v1705 = vadd.f32 %v377, %v1704
        %1706 = vdwg.mxu0
        %1707 = vmatpush.msra.mxu0 0.0
        %1708 = vmatpush.msra.mxu0 0.0
        %1709 = vmatpush.msra.mxu0 0.0
        %1710 = vmatpush.msra.mxu0 0.0
        %1711 = vmatpush.msra.mxu0 0.0
        %1712 = vmatpush.msra.mxu0 0.0
        %1713 = vmatpush.msra.mxu0 0.0
        %1714 = vmatpush.msra.mxu0 0.0
        %1715 = vmatpush.msra.mxu0 0.0
        %1716 = vmatpush.msra.mxu0 0.0
        %1717 = vmatpush.msra.mxu0 0.0
        %1718 = vmatpush.msra.mxu0 0.0
        %v1719 = vand.u32 %v363, 4294901760
        %v1720 = vsub.f32 %v363, %v1719
        %v1721 = vand.u32 %v1720, 4294901760
        %v1722 = vsub.f32 %v1720, %v1721
        %v1723 = vand.u32 %v1722, 4294901760
        %1724 = vmatpush.msra.mxu0 %v1723
        %v1725 = vand.u32 %v347, 4294901760
        %v1726 = vsub.f32 %v347, %v1725
        %v1727 = vand.u32 %v1726, 4294901760
        %v1728 = vsub.f32 %v1726, %v1727
        %v1729 = vand.u32 %v1728, 4294901760
        %1730 = vmatpush.msra.mxu0 %v1729
        %v1731 = vand.u32 %v331, 4294901760
        %v1732 = vsub.f32 %v331, %v1731
        %v1733 = vand.u32 %v1732, 4294901760
        %v1734 = vsub.f32 %v1732, %v1733
        %v1735 = vand.u32 %v1734, 4294901760
        %1736 = vmatpush.msra.mxu0 %v1735
        %v1737 = vand.u32 %v315, 4294901760
        %v1738 = vsub.f32 %v315, %v1737
        %v1739 = vand.u32 %v1738, 4294901760
        %v1740 = vsub.f32 %v1738, %v1739
        %v1741 = vand.u32 %v1740, 4294901760
        %1742 = vmatpush.msra.mxu0 %v1741
        %v1743 = vand.u32 %v381, 4294901760
        %1744 = vmatmul.f32.gmra.mxu0 %v1743
        %v1745 = vpop.f32.mrf.mxu0
        %v1746 = vadd.f32 %v1705, %v1745
        %1747 = vdwg.mxu0
        %1748 = vmatpush.msra.mxu0 0.0
        %1749 = vmatpush.msra.mxu0 0.0
        %1750 = vmatpush.msra.mxu0 0.0
        %1751 = vmatpush.msra.mxu0 0.0
        %1752 = vmatpush.msra.mxu0 0.0
        %1753 = vmatpush.msra.mxu0 0.0
        %1754 = vmatpush.msra.mxu0 0.0
        %1755 = vmatpush.msra.mxu0 0.0
        %1756 = vmatpush.msra.mxu0 0.0
        %1757 = vmatpush.msra.mxu0 0.0
        %1758 = vmatpush.msra.mxu0 0.0
        %1759 = vmatpush.msra.mxu0 0.0
        %v1760 = vand.u32 %v363, 4294901760
        %v1761 = vsub.f32 %v363, %v1760
        %1762 = vmatpush.msra.mxu0 %v1761
        %v1763 = vand.u32 %v347, 4294901760
        %v1764 = vsub.f32 %v347, %v1763
        %1765 = vmatpush.msra.mxu0 %v1764
        %v1766 = vand.u32 %v331, 4294901760
        %v1767 = vsub.f32 %v331, %v1766
        %1768 = vmatpush.msra.mxu0 %v1767
        %v1769 = vand.u32 %v315, 4294901760
        %v1770 = vsub.f32 %v315, %v1769
        %1771 = vmatpush.msra.mxu0 %v1770
        %v1772 = vand.u32 %v381, 4294901760
        %v1773 = vsub.f32 %v381, %v1772
        %1774 = vmatmul.f32.gmra.mxu0 %v1773
        %v1775 = vpop.f32.mrf.mxu0
        %v1776 = vadd.f32 %v1746, %v1775
        %1777 = vdwg.mxu0
        %1778 = vmatpush.msra.mxu0 0.0
        %1779 = vmatpush.msra.mxu0 0.0
        %1780 = vmatpush.msra.mxu0 0.0
        %1781 = vmatpush.msra.mxu0 0.0
        %1782 = vmatpush.msra.mxu0 0.0
        %1783 = vmatpush.msra.mxu0 0.0
        %1784 = vmatpush.msra.mxu0 0.0
        %1785 = vmatpush.msra.mxu0 0.0
        %1786 = vmatpush.msra.mxu0 0.0
        %1787 = vmatpush.msra.mxu0 0.0
        %1788 = vmatpush.msra.mxu0 0.0
        %1789 = vmatpush.msra.mxu0 0.0
        %v1790 = vand.u32 %v363, 4294901760
        %1791 = vmatpush.msra.mxu0 %v1790
        %v1792 = vand.u32 %v347, 4294901760
        %1793 = vmatpush.msra.mxu0 %v1792
        %v1794 = vand.u32 %v331, 4294901760
        %1795 = vmatpush.msra.mxu0 %v1794
        %v1796 = vand.u32 %v315, 4294901760
        %1797 = vmatpush.msra.mxu0 %v1796
        %v1798 = vand.u32 %v381, 4294901760
        %v1799 = vsub.f32 %v381, %v1798
        %v1800 = vand.u32 %v1799, 4294901760
        %1801 = vmatmul.f32.gmra.mxu0 %v1800
        %v1802 = vpop.f32.mrf.mxu0
        %v1803 = vadd.f32 %v1776, %v1802
        %1804 = vdwg.mxu0
        %1805 = vmatpush.msra.mxu0 0.0
        %1806 = vmatpush.msra.mxu0 0.0
        %1807 = vmatpush.msra.mxu0 0.0
        %1808 = vmatpush.msra.mxu0 0.0
        %1809 = vmatpush.msra.mxu0 0.0
        %1810 = vmatpush.msra.mxu0 0.0
        %1811 = vmatpush.msra.mxu0 0.0
        %1812 = vmatpush.msra.mxu0 0.0
        %1813 = vmatpush.msra.mxu0 0.0
        %1814 = vmatpush.msra.mxu0 0.0
        %1815 = vmatpush.msra.mxu0 0.0
        %1816 = vmatpush.msra.mxu0 0.0
        %v1817 = vand.u32 %v363, 4294901760
        %v1818 = vsub.f32 %v363, %v1817
        %v1819 = vand.u32 %v1818, 4294901760
        %1820 = vmatpush.msra.mxu0 %v1819
        %v1821 = vand.u32 %v347, 4294901760
        %v1822 = vsub.f32 %v347, %v1821
        %v1823 = vand.u32 %v1822, 4294901760
        %1824 = vmatpush.msra.mxu0 %v1823
        %v1825 = vand.u32 %v331, 4294901760
        %v1826 = vsub.f32 %v331, %v1825
        %v1827 = vand.u32 %v1826, 4294901760
        %1828 = vmatpush.msra.mxu0 %v1827
        %v1829 = vand.u32 %v315, 4294901760
        %v1830 = vsub.f32 %v315, %v1829
        %v1831 = vand.u32 %v1830, 4294901760
        %1832 = vmatpush.msra.mxu0 %v1831
        %v1833 = vand.u32 %v381, 4294901760
        %1834 = vmatmul.f32.gmra.mxu0 %v1833
        %v1835 = vpop.f32.mrf.mxu0
        %v1836 = vadd.f32 %v1803, %v1835
        %1837 = vdwg.mxu0
        %1838 = vmatpush.msra.mxu0 0.0
        %1839 = vmatpush.msra.mxu0 0.0
        %1840 = vmatpush.msra.mxu0 0.0
        %1841 = vmatpush.msra.mxu0 0.0
        %1842 = vmatpush.msra.mxu0 0.0
        %1843 = vmatpush.msra.mxu0 0.0
        %1844 = vmatpush.msra.mxu0 0.0
        %1845 = vmatpush.msra.mxu0 0.0
        %1846 = vmatpush.msra.mxu0 0.0
        %1847 = vmatpush.msra.mxu0 0.0
        %1848 = vmatpush.msra.mxu0 0.0
        %1849 = vmatpush.msra.mxu0 0.0
        %v1850 = vand.u32 %v363, 4294901760
        %1851 = vmatpush.msra.mxu0 %v1850
        %v1852 = vand.u32 %v347, 4294901760
        %1853 = vmatpush.msra.mxu0 %v1852
        %v1854 = vand.u32 %v331, 4294901760
        %1855 = vmatpush.msra.mxu0 %v1854
        %v1856 = vand.u32 %v315, 4294901760
        %1857 = vmatpush.msra.mxu0 %v1856
        %v1858 = vand.u32 %v381, 4294901760
        %1859 = vmatmul.f32.gmra.mxu0 %v1858
        %v1860 = vpop.f32.mrf.mxu0
        %v1861 = vadd.f32 %v1836, %v1860
        %1862 = vdwg.mxu0
        %1863 = vmatpush.msra.mxu0 0.0
        %1864 = vmatpush.msra.mxu0 0.0
        %1865 = vmatpush.msra.mxu0 0.0
        %1866 = vmatpush.msra.mxu0 0.0
        %1867 = vmatpush.msra.mxu0 0.0
        %1868 = vmatpush.msra.mxu0 0.0
        %1869 = vmatpush.msra.mxu0 0.0
        %1870 = vmatpush.msra.mxu0 0.0
        %1871 = vmatpush.msra.mxu0 0.0
        %1872 = vmatpush.msra.mxu0 0.0
        %1873 = vmatpush.msra.mxu0 0.0
        %1874 = vmatpush.msra.mxu0 0.0
        %v1875 = vand.u32 %v364, 4294901760
        %1876 = vmatpush.msra.mxu0 %v1875
        %v1877 = vand.u32 %v348, 4294901760
        %1878 = vmatpush.msra.mxu0 %v1877
        %v1879 = vand.u32 %v332, 4294901760
        %1880 = vmatpush.msra.mxu0 %v1879
        %v1881 = vand.u32 %v316, 4294901760
        %1882 = vmatpush.msra.mxu0 %v1881
        %v1883 = vand.u32 %v381, 4294901760
        %v1884 = vsub.f32 %v381, %v1883
        %v1885 = vand.u32 %v1884, 4294901760
        %v1886 = vsub.f32 %v1884, %v1885
        %v1887 = vand.u32 %v1886, 4294901760
        %1888 = vmatmul.f32.gmra.mxu0 %v1887
        %v1889 = vpop.f32.mrf.mxu0
        %v1890 = vadd.f32 %v377, %v1889
        %1891 = vdwg.mxu0
        %1892 = vmatpush.msra.mxu0 0.0
        %1893 = vmatpush.msra.mxu0 0.0
        %1894 = vmatpush.msra.mxu0 0.0
        %1895 = vmatpush.msra.mxu0 0.0
        %1896 = vmatpush.msra.mxu0 0.0
        %1897 = vmatpush.msra.mxu0 0.0
        %1898 = vmatpush.msra.mxu0 0.0
        %1899 = vmatpush.msra.mxu0 0.0
        %1900 = vmatpush.msra.mxu0 0.0
        %1901 = vmatpush.msra.mxu0 0.0
        %1902 = vmatpush.msra.mxu0 0.0
        %1903 = vmatpush.msra.mxu0 0.0
        %v1904 = vand.u32 %v364, 4294901760
        %v1905 = vsub.f32 %v364, %v1904
        %v1906 = vand.u32 %v1905, 4294901760
        %v1907 = vsub.f32 %v1905, %v1906
        %v1908 = vand.u32 %v1907, 4294901760
        %1909 = vmatpush.msra.mxu0 %v1908
        %v1910 = vand.u32 %v348, 4294901760
        %v1911 = vsub.f32 %v348, %v1910
        %v1912 = vand.u32 %v1911, 4294901760
        %v1913 = vsub.f32 %v1911, %v1912
        %v1914 = vand.u32 %v1913, 4294901760
        %1915 = vmatpush.msra.mxu0 %v1914
        %v1916 = vand.u32 %v332, 4294901760
        %v1917 = vsub.f32 %v332, %v1916
        %v1918 = vand.u32 %v1917, 4294901760
        %v1919 = vsub.f32 %v1917, %v1918
        %v1920 = vand.u32 %v1919, 4294901760
        %1921 = vmatpush.msra.mxu0 %v1920
        %v1922 = vand.u32 %v316, 4294901760
        %v1923 = vsub.f32 %v316, %v1922
        %v1924 = vand.u32 %v1923, 4294901760
        %v1925 = vsub.f32 %v1923, %v1924
        %v1926 = vand.u32 %v1925, 4294901760
        %1927 = vmatpush.msra.mxu0 %v1926
        %v1928 = vand.u32 %v381, 4294901760
        %1929 = vmatmul.f32.gmra.mxu0 %v1928
        %v1930 = vpop.f32.mrf.mxu0
        %v1931 = vadd.f32 %v1890, %v1930
        %1932 = vdwg.mxu0
        %1933 = vmatpush.msra.mxu0 0.0
        %1934 = vmatpush.msra.mxu0 0.0
        %1935 = vmatpush.msra.mxu0 0.0
        %1936 = vmatpush.msra.mxu0 0.0
        %1937 = vmatpush.msra.mxu0 0.0
        %1938 = vmatpush.msra.mxu0 0.0
        %1939 = vmatpush.msra.mxu0 0.0
        %1940 = vmatpush.msra.mxu0 0.0
        %1941 = vmatpush.msra.mxu0 0.0
        %1942 = vmatpush.msra.mxu0 0.0
        %1943 = vmatpush.msra.mxu0 0.0
        %1944 = vmatpush.msra.mxu0 0.0
        %v1945 = vand.u32 %v364, 4294901760
        %v1946 = vsub.f32 %v364, %v1945
        %1947 = vmatpush.msra.mxu0 %v1946
        %v1948 = vand.u32 %v348, 4294901760
        %v1949 = vsub.f32 %v348, %v1948
        %1950 = vmatpush.msra.mxu0 %v1949
        %v1951 = vand.u32 %v332, 4294901760
        %v1952 = vsub.f32 %v332, %v1951
        %1953 = vmatpush.msra.mxu0 %v1952
        %v1954 = vand.u32 %v316, 4294901760
        %v1955 = vsub.f32 %v316, %v1954
        %1956 = vmatpush.msra.mxu0 %v1955
        %v1957 = vand.u32 %v381, 4294901760
        %v1958 = vsub.f32 %v381, %v1957
        %1959 = vmatmul.f32.gmra.mxu0 %v1958
        %v1960 = vpop.f32.mrf.mxu0
        %v1961 = vadd.f32 %v1931, %v1960
        %1962 = vdwg.mxu0
        %1963 = vmatpush.msra.mxu0 0.0
        %1964 = vmatpush.msra.mxu0 0.0
        %1965 = vmatpush.msra.mxu0 0.0
        %1966 = vmatpush.msra.mxu0 0.0
        %1967 = vmatpush.msra.mxu0 0.0
        %1968 = vmatpush.msra.mxu0 0.0
        %1969 = vmatpush.msra.mxu0 0.0
        %1970 = vmatpush.msra.mxu0 0.0
        %1971 = vmatpush.msra.mxu0 0.0
        %1972 = vmatpush.msra.mxu0 0.0
        %1973 = vmatpush.msra.mxu0 0.0
        %1974 = vmatpush.msra.mxu0 0.0
        %v1975 = vand.u32 %v364, 4294901760
        %1976 = vmatpush.msra.mxu0 %v1975
        %v1977 = vand.u32 %v348, 4294901760
        %1978 = vmatpush.msra.mxu0 %v1977
        %v1979 = vand.u32 %v332, 4294901760
        %1980 = vmatpush.msra.mxu0 %v1979
        %v1981 = vand.u32 %v316, 4294901760
        %1982 = vmatpush.msra.mxu0 %v1981
        %v1983 = vand.u32 %v381, 4294901760
        %v1984 = vsub.f32 %v381, %v1983
        %v1985 = vand.u32 %v1984, 4294901760
        %1986 = vmatmul.f32.gmra.mxu0 %v1985
        %v1987 = vpop.f32.mrf.mxu0
        %v1988 = vadd.f32 %v1961, %v1987
        %1989 = vdwg.mxu0
        %1990 = vmatpush.msra.mxu0 0.0
        %1991 = vmatpush.msra.mxu0 0.0
        %1992 = vmatpush.msra.mxu0 0.0
        %1993 = vmatpush.msra.mxu0 0.0
        %1994 = vmatpush.msra.mxu0 0.0
        %1995 = vmatpush.msra.mxu0 0.0
        %1996 = vmatpush.msra.mxu0 0.0
        %1997 = vmatpush.msra.mxu0 0.0
        %1998 = vmatpush.msra.mxu0 0.0
        %1999 = vmatpush.msra.mxu0 0.0
        %2000 = vmatpush.msra.mxu0 0.0
        %2001 = vmatpush.msra.mxu0 0.0
        %v2002 = vand.u32 %v364, 4294901760
        %v2003 = vsub.f32 %v364, %v2002
        %v2004 = vand.u32 %v2003, 4294901760
        %2005 = vmatpush.msra.mxu0 %v2004
        %v2006 = vand.u32 %v348, 4294901760
        %v2007 = vsub.f32 %v348, %v2006
        %v2008 = vand.u32 %v2007, 4294901760
        %2009 = vmatpush.msra.mxu0 %v2008
        %v2010 = vand.u32 %v332, 4294901760
        %v2011 = vsub.f32 %v332, %v2010
        %v2012 = vand.u32 %v2011, 4294901760
        %2013 = vmatpush.msra.mxu0 %v2012
        %v2014 = vand.u32 %v316, 4294901760
        %v2015 = vsub.f32 %v316, %v2014
        %v2016 = vand.u32 %v2015, 4294901760
        %2017 = vmatpush.msra.mxu0 %v2016
        %v2018 = vand.u32 %v381, 4294901760
        %2019 = vmatmul.f32.gmra.mxu0 %v2018
        %v2020 = vpop.f32.mrf.mxu0
        %v2021 = vadd.f32 %v1988, %v2020
        %2022 = vdwg.mxu0
        %2023 = vmatpush.msra.mxu0 0.0
        %2024 = vmatpush.msra.mxu0 0.0
        %2025 = vmatpush.msra.mxu0 0.0
        %2026 = vmatpush.msra.mxu0 0.0
        %2027 = vmatpush.msra.mxu0 0.0
        %2028 = vmatpush.msra.mxu0 0.0
        %2029 = vmatpush.msra.mxu0 0.0
        %2030 = vmatpush.msra.mxu0 0.0
        %2031 = vmatpush.msra.mxu0 0.0
        %2032 = vmatpush.msra.mxu0 0.0
        %2033 = vmatpush.msra.mxu0 0.0
        %2034 = vmatpush.msra.mxu0 0.0
        %v2035 = vand.u32 %v364, 4294901760
        %2036 = vmatpush.msra.mxu0 %v2035
        %v2037 = vand.u32 %v348, 4294901760
        %2038 = vmatpush.msra.mxu0 %v2037
        %v2039 = vand.u32 %v332, 4294901760
        %2040 = vmatpush.msra.mxu0 %v2039
        %v2041 = vand.u32 %v316, 4294901760
        %2042 = vmatpush.msra.mxu0 %v2041
        %v2043 = vand.u32 %v381, 4294901760
        %2044 = vmatmul.f32.gmra.mxu0 %v2043
        %v2045 = vpop.f32.mrf.mxu0
        %v2046 = vadd.f32 %v2021, %v2045
        %2047 = vdwg.mxu0
        %2048 = vmatpush.msra.mxu0 0.0
        %2049 = vmatpush.msra.mxu0 0.0
        %2050 = vmatpush.msra.mxu0 0.0
        %2051 = vmatpush.msra.mxu0 0.0
        %2052 = vmatpush.msra.mxu0 0.0
        %2053 = vmatpush.msra.mxu0 0.0
        %2054 = vmatpush.msra.mxu0 0.0
        %2055 = vmatpush.msra.mxu0 0.0
        %2056 = vmatpush.msra.mxu0 0.0
        %2057 = vmatpush.msra.mxu0 0.0
        %2058 = vmatpush.msra.mxu0 0.0
        %2059 = vmatpush.msra.mxu0 0.0
        %v2060 = vand.u32 %v365, 4294901760
        %2061 = vmatpush.msra.mxu0 %v2060
        %v2062 = vand.u32 %v349, 4294901760
        %2063 = vmatpush.msra.mxu0 %v2062
        %v2064 = vand.u32 %v333, 4294901760
        %2065 = vmatpush.msra.mxu0 %v2064
        %v2066 = vand.u32 %v317, 4294901760
        %2067 = vmatpush.msra.mxu0 %v2066
        %v2068 = vand.u32 %v381, 4294901760
        %v2069 = vsub.f32 %v381, %v2068
        %v2070 = vand.u32 %v2069, 4294901760
        %v2071 = vsub.f32 %v2069, %v2070
        %v2072 = vand.u32 %v2071, 4294901760
        %2073 = vmatmul.f32.gmra.mxu0 %v2072
        %v2074 = vpop.f32.mrf.mxu0
        %v2075 = vadd.f32 %v377, %v2074
        %2076 = vdwg.mxu0
        %2077 = vmatpush.msra.mxu0 0.0
        %2078 = vmatpush.msra.mxu0 0.0
        %2079 = vmatpush.msra.mxu0 0.0
        %2080 = vmatpush.msra.mxu0 0.0
        %2081 = vmatpush.msra.mxu0 0.0
        %2082 = vmatpush.msra.mxu0 0.0
        %2083 = vmatpush.msra.mxu0 0.0
        %2084 = vmatpush.msra.mxu0 0.0
        %2085 = vmatpush.msra.mxu0 0.0
        %2086 = vmatpush.msra.mxu0 0.0
        %2087 = vmatpush.msra.mxu0 0.0
        %2088 = vmatpush.msra.mxu0 0.0
        %v2089 = vand.u32 %v365, 4294901760
        %v2090 = vsub.f32 %v365, %v2089
        %v2091 = vand.u32 %v2090, 4294901760
        %v2092 = vsub.f32 %v2090, %v2091
        %v2093 = vand.u32 %v2092, 4294901760
        %2094 = vmatpush.msra.mxu0 %v2093
        %v2095 = vand.u32 %v349, 4294901760
        %v2096 = vsub.f32 %v349, %v2095
        %v2097 = vand.u32 %v2096, 4294901760
        %v2098 = vsub.f32 %v2096, %v2097
        %v2099 = vand.u32 %v2098, 4294901760
        %2100 = vmatpush.msra.mxu0 %v2099
        %v2101 = vand.u32 %v333, 4294901760
        %v2102 = vsub.f32 %v333, %v2101
        %v2103 = vand.u32 %v2102, 4294901760
        %v2104 = vsub.f32 %v2102, %v2103
        %v2105 = vand.u32 %v2104, 4294901760
        %2106 = vmatpush.msra.mxu0 %v2105
        %v2107 = vand.u32 %v317, 4294901760
        %v2108 = vsub.f32 %v317, %v2107
        %v2109 = vand.u32 %v2108, 4294901760
        %v2110 = vsub.f32 %v2108, %v2109
        %v2111 = vand.u32 %v2110, 4294901760
        %2112 = vmatpush.msra.mxu0 %v2111
        %v2113 = vand.u32 %v381, 4294901760
        %2114 = vmatmul.f32.gmra.mxu0 %v2113
        %v2115 = vpop.f32.mrf.mxu0
        %v2116 = vadd.f32 %v2075, %v2115
        %2117 = vdwg.mxu0
        %2118 = vmatpush.msra.mxu0 0.0
        %2119 = vmatpush.msra.mxu0 0.0
        %2120 = vmatpush.msra.mxu0 0.0
        %2121 = vmatpush.msra.mxu0 0.0
        %2122 = vmatpush.msra.mxu0 0.0
        %2123 = vmatpush.msra.mxu0 0.0
        %2124 = vmatpush.msra.mxu0 0.0
        %2125 = vmatpush.msra.mxu0 0.0
        %2126 = vmatpush.msra.mxu0 0.0
        %2127 = vmatpush.msra.mxu0 0.0
        %2128 = vmatpush.msra.mxu0 0.0
        %2129 = vmatpush.msra.mxu0 0.0
        %v2130 = vand.u32 %v365, 4294901760
        %v2131 = vsub.f32 %v365, %v2130
        %2132 = vmatpush.msra.mxu0 %v2131
        %v2133 = vand.u32 %v349, 4294901760
        %v2134 = vsub.f32 %v349, %v2133
        %2135 = vmatpush.msra.mxu0 %v2134
        %v2136 = vand.u32 %v333, 4294901760
        %v2137 = vsub.f32 %v333, %v2136
        %2138 = vmatpush.msra.mxu0 %v2137
        %v2139 = vand.u32 %v317, 4294901760
        %v2140 = vsub.f32 %v317, %v2139
        %2141 = vmatpush.msra.mxu0 %v2140
        %v2142 = vand.u32 %v381, 4294901760
        %v2143 = vsub.f32 %v381, %v2142
        %2144 = vmatmul.f32.gmra.mxu0 %v2143
        %v2145 = vpop.f32.mrf.mxu0
        %v2146 = vadd.f32 %v2116, %v2145
        %2147 = vdwg.mxu0
        %2148 = vmatpush.msra.mxu0 0.0
        %2149 = vmatpush.msra.mxu0 0.0
        %2150 = vmatpush.msra.mxu0 0.0
        %2151 = vmatpush.msra.mxu0 0.0
        %2152 = vmatpush.msra.mxu0 0.0
        %2153 = vmatpush.msra.mxu0 0.0
        %2154 = vmatpush.msra.mxu0 0.0
        %2155 = vmatpush.msra.mxu0 0.0
        %2156 = vmatpush.msra.mxu0 0.0
        %2157 = vmatpush.msra.mxu0 0.0
        %2158 = vmatpush.msra.mxu0 0.0
        %2159 = vmatpush.msra.mxu0 0.0
        %v2160 = vand.u32 %v365, 4294901760
        %2161 = vmatpush.msra.mxu0 %v2160
        %v2162 = vand.u32 %v349, 4294901760
        %2163 = vmatpush.msra.mxu0 %v2162
        %v2164 = vand.u32 %v333, 4294901760
        %2165 = vmatpush.msra.mxu0 %v2164
        %v2166 = vand.u32 %v317, 4294901760
        %2167 = vmatpush.msra.mxu0 %v2166
        %v2168 = vand.u32 %v381, 4294901760
        %v2169 = vsub.f32 %v381, %v2168
        %v2170 = vand.u32 %v2169, 4294901760
        %2171 = vmatmul.f32.gmra.mxu0 %v2170
        %v2172 = vpop.f32.mrf.mxu0
        %v2173 = vadd.f32 %v2146, %v2172
        %2174 = vdwg.mxu0
        %2175 = vmatpush.msra.mxu0 0.0
        %2176 = vmatpush.msra.mxu0 0.0
        %2177 = vmatpush.msra.mxu0 0.0
        %2178 = vmatpush.msra.mxu0 0.0
        %2179 = vmatpush.msra.mxu0 0.0
        %2180 = vmatpush.msra.mxu0 0.0
        %2181 = vmatpush.msra.mxu0 0.0
        %2182 = vmatpush.msra.mxu0 0.0
        %2183 = vmatpush.msra.mxu0 0.0
        %2184 = vmatpush.msra.mxu0 0.0
        %2185 = vmatpush.msra.mxu0 0.0
        %2186 = vmatpush.msra.mxu0 0.0
        %v2187 = vand.u32 %v365, 4294901760
        %v2188 = vsub.f32 %v365, %v2187
        %v2189 = vand.u32 %v2188, 4294901760
        %2190 = vmatpush.msra.mxu0 %v2189
        %v2191 = vand.u32 %v349, 4294901760
        %v2192 = vsub.f32 %v349, %v2191
        %v2193 = vand.u32 %v2192, 4294901760
        %2194 = vmatpush.msra.mxu0 %v2193
        %v2195 = vand.u32 %v333, 4294901760
        %v2196 = vsub.f32 %v333, %v2195
        %v2197 = vand.u32 %v2196, 4294901760
        %2198 = vmatpush.msra.mxu0 %v2197
        %v2199 = vand.u32 %v317, 4294901760
        %v2200 = vsub.f32 %v317, %v2199
        %v2201 = vand.u32 %v2200, 4294901760
        %2202 = vmatpush.msra.mxu0 %v2201
        %v2203 = vand.u32 %v381, 4294901760
        %2204 = vmatmul.f32.gmra.mxu0 %v2203
        %v2205 = vpop.f32.mrf.mxu0
        %v2206 = vadd.f32 %v2173, %v2205
        %2207 = vdwg.mxu0
        %2208 = vmatpush.msra.mxu0 0.0
        %2209 = vmatpush.msra.mxu0 0.0
        %2210 = vmatpush.msra.mxu0 0.0
        %2211 = vmatpush.msra.mxu0 0.0
        %2212 = vmatpush.msra.mxu0 0.0
        %2213 = vmatpush.msra.mxu0 0.0
        %2214 = vmatpush.msra.mxu0 0.0
        %2215 = vmatpush.msra.mxu0 0.0
        %2216 = vmatpush.msra.mxu0 0.0
        %2217 = vmatpush.msra.mxu0 0.0
        %2218 = vmatpush.msra.mxu0 0.0
        %2219 = vmatpush.msra.mxu0 0.0
        %v2220 = vand.u32 %v365, 4294901760
        %2221 = vmatpush.msra.mxu0 %v2220
        %v2222 = vand.u32 %v349, 4294901760
        %2223 = vmatpush.msra.mxu0 %v2222
        %v2224 = vand.u32 %v333, 4294901760
        %2225 = vmatpush.msra.mxu0 %v2224
        %v2226 = vand.u32 %v317, 4294901760
        %2227 = vmatpush.msra.mxu0 %v2226
        %v2228 = vand.u32 %v381, 4294901760
        %2229 = vmatmul.f32.gmra.mxu0 %v2228
        %v2230 = vpop.f32.mrf.mxu0
        %v2231 = vadd.f32 %v2206, %v2230
        %2232 = vdwg.mxu0
        %2233 = vmatpush.msra.mxu0 0.0
        %2234 = vmatpush.msra.mxu0 0.0
        %2235 = vmatpush.msra.mxu0 0.0
        %2236 = vmatpush.msra.mxu0 0.0
        %2237 = vmatpush.msra.mxu0 0.0
        %2238 = vmatpush.msra.mxu0 0.0
        %2239 = vmatpush.msra.mxu0 0.0
        %2240 = vmatpush.msra.mxu0 0.0
        %2241 = vmatpush.msra.mxu0 0.0
        %2242 = vmatpush.msra.mxu0 0.0
        %2243 = vmatpush.msra.mxu0 0.0
        %2244 = vmatpush.msra.mxu0 0.0
        %v2245 = vand.u32 %v366, 4294901760
        %2246 = vmatpush.msra.mxu0 %v2245
        %v2247 = vand.u32 %v350, 4294901760
        %2248 = vmatpush.msra.mxu0 %v2247
        %v2249 = vand.u32 %v334, 4294901760
        %2250 = vmatpush.msra.mxu0 %v2249
        %v2251 = vand.u32 %v318, 4294901760
        %2252 = vmatpush.msra.mxu0 %v2251
        %v2253 = vand.u32 %v381, 4294901760
        %v2254 = vsub.f32 %v381, %v2253
        %v2255 = vand.u32 %v2254, 4294901760
        %v2256 = vsub.f32 %v2254, %v2255
        %v2257 = vand.u32 %v2256, 4294901760
        %2258 = vmatmul.f32.gmra.mxu0 %v2257
        %v2259 = vpop.f32.mrf.mxu0
        %v2260 = vadd.f32 %v377, %v2259
        %2261 = vdwg.mxu0
        %2262 = vmatpush.msra.mxu0 0.0
        %2263 = vmatpush.msra.mxu0 0.0
        %2264 = vmatpush.msra.mxu0 0.0
        %2265 = vmatpush.msra.mxu0 0.0
        %2266 = vmatpush.msra.mxu0 0.0
        %2267 = vmatpush.msra.mxu0 0.0
        %2268 = vmatpush.msra.mxu0 0.0
        %2269 = vmatpush.msra.mxu0 0.0
        %2270 = vmatpush.msra.mxu0 0.0
        %2271 = vmatpush.msra.mxu0 0.0
        %2272 = vmatpush.msra.mxu0 0.0
        %2273 = vmatpush.msra.mxu0 0.0
        %v2274 = vand.u32 %v366, 4294901760
        %v2275 = vsub.f32 %v366, %v2274
        %v2276 = vand.u32 %v2275, 4294901760
        %v2277 = vsub.f32 %v2275, %v2276
        %v2278 = vand.u32 %v2277, 4294901760
        %2279 = vmatpush.msra.mxu0 %v2278
        %v2280 = vand.u32 %v350, 4294901760
        %v2281 = vsub.f32 %v350, %v2280
        %v2282 = vand.u32 %v2281, 4294901760
        %v2283 = vsub.f32 %v2281, %v2282
        %v2284 = vand.u32 %v2283, 4294901760
        %2285 = vmatpush.msra.mxu0 %v2284
        %v2286 = vand.u32 %v334, 4294901760
        %v2287 = vsub.f32 %v334, %v2286
        %v2288 = vand.u32 %v2287, 4294901760
        %v2289 = vsub.f32 %v2287, %v2288
        %v2290 = vand.u32 %v2289, 4294901760
        %2291 = vmatpush.msra.mxu0 %v2290
        %v2292 = vand.u32 %v318, 4294901760
        %v2293 = vsub.f32 %v318, %v2292
        %v2294 = vand.u32 %v2293, 4294901760
        %v2295 = vsub.f32 %v2293, %v2294
        %v2296 = vand.u32 %v2295, 4294901760
        %2297 = vmatpush.msra.mxu0 %v2296
        %v2298 = vand.u32 %v381, 4294901760
        %2299 = vmatmul.f32.gmra.mxu0 %v2298
        %v2300 = vpop.f32.mrf.mxu0
        %v2301 = vadd.f32 %v2260, %v2300
        %2302 = vdwg.mxu0
        %2303 = vmatpush.msra.mxu0 0.0
        %2304 = vmatpush.msra.mxu0 0.0
        %2305 = vmatpush.msra.mxu0 0.0
        %2306 = vmatpush.msra.mxu0 0.0
        %2307 = vmatpush.msra.mxu0 0.0
        %2308 = vmatpush.msra.mxu0 0.0
        %2309 = vmatpush.msra.mxu0 0.0
        %2310 = vmatpush.msra.mxu0 0.0
        %2311 = vmatpush.msra.mxu0 0.0
        %2312 = vmatpush.msra.mxu0 0.0
        %2313 = vmatpush.msra.mxu0 0.0
        %2314 = vmatpush.msra.mxu0 0.0
        %v2315 = vand.u32 %v366, 4294901760
        %v2316 = vsub.f32 %v366, %v2315
        %2317 = vmatpush.msra.mxu0 %v2316
        %v2318 = vand.u32 %v350, 4294901760
        %v2319 = vsub.f32 %v350, %v2318
        %2320 = vmatpush.msra.mxu0 %v2319
        %v2321 = vand.u32 %v334, 4294901760
        %v2322 = vsub.f32 %v334, %v2321
        %2323 = vmatpush.msra.mxu0 %v2322
        %v2324 = vand.u32 %v318, 4294901760
        %v2325 = vsub.f32 %v318, %v2324
        %2326 = vmatpush.msra.mxu0 %v2325
        %v2327 = vand.u32 %v381, 4294901760
        %v2328 = vsub.f32 %v381, %v2327
        %2329 = vmatmul.f32.gmra.mxu0 %v2328
        %v2330 = vpop.f32.mrf.mxu0
        %v2331 = vadd.f32 %v2301, %v2330
        %2332 = vdwg.mxu0
        %2333 = vmatpush.msra.mxu0 0.0
        %2334 = vmatpush.msra.mxu0 0.0
        %2335 = vmatpush.msra.mxu0 0.0
        %2336 = vmatpush.msra.mxu0 0.0
        %2337 = vmatpush.msra.mxu0 0.0
        %2338 = vmatpush.msra.mxu0 0.0
        %2339 = vmatpush.msra.mxu0 0.0
        %2340 = vmatpush.msra.mxu0 0.0
        %2341 = vmatpush.msra.mxu0 0.0
        %2342 = vmatpush.msra.mxu0 0.0
        %2343 = vmatpush.msra.mxu0 0.0
        %2344 = vmatpush.msra.mxu0 0.0
        %v2345 = vand.u32 %v366, 4294901760
        %2346 = vmatpush.msra.mxu0 %v2345
        %v2347 = vand.u32 %v350, 4294901760
        %2348 = vmatpush.msra.mxu0 %v2347
        %v2349 = vand.u32 %v334, 4294901760
        %2350 = vmatpush.msra.mxu0 %v2349
        %v2351 = vand.u32 %v318, 4294901760
        %2352 = vmatpush.msra.mxu0 %v2351
        %v2353 = vand.u32 %v381, 4294901760
        %v2354 = vsub.f32 %v381, %v2353
        %v2355 = vand.u32 %v2354, 4294901760
        %2356 = vmatmul.f32.gmra.mxu0 %v2355
        %v2357 = vpop.f32.mrf.mxu0
        %v2358 = vadd.f32 %v2331, %v2357
        %2359 = vdwg.mxu0
        %2360 = vmatpush.msra.mxu0 0.0
        %2361 = vmatpush.msra.mxu0 0.0
        %2362 = vmatpush.msra.mxu0 0.0
        %2363 = vmatpush.msra.mxu0 0.0
        %2364 = vmatpush.msra.mxu0 0.0
        %2365 = vmatpush.msra.mxu0 0.0
        %2366 = vmatpush.msra.mxu0 0.0
        %2367 = vmatpush.msra.mxu0 0.0
        %2368 = vmatpush.msra.mxu0 0.0
        %2369 = vmatpush.msra.mxu0 0.0
        %2370 = vmatpush.msra.mxu0 0.0
        %2371 = vmatpush.msra.mxu0 0.0
        %v2372 = vand.u32 %v366, 4294901760
        %v2373 = vsub.f32 %v366, %v2372
        %v2374 = vand.u32 %v2373, 4294901760
        %2375 = vmatpush.msra.mxu0 %v2374
        %v2376 = vand.u32 %v350, 4294901760
        %v2377 = vsub.f32 %v350, %v2376
        %v2378 = vand.u32 %v2377, 4294901760
        %2379 = vmatpush.msra.mxu0 %v2378
        %v2380 = vand.u32 %v334, 4294901760
        %v2381 = vsub.f32 %v334, %v2380
        %v2382 = vand.u32 %v2381, 4294901760
        %2383 = vmatpush.msra.mxu0 %v2382
        %v2384 = vand.u32 %v318, 4294901760
        %v2385 = vsub.f32 %v318, %v2384
        %v2386 = vand.u32 %v2385, 4294901760
        %2387 = vmatpush.msra.mxu0 %v2386
        %v2388 = vand.u32 %v381, 4294901760
        %2389 = vmatmul.f32.gmra.mxu0 %v2388
        %v2390 = vpop.f32.mrf.mxu0
        %v2391 = vadd.f32 %v2358, %v2390
        %2392 = vdwg.mxu0
        %2393 = vmatpush.msra.mxu0 0.0
        %2394 = vmatpush.msra.mxu0 0.0
        %2395 = vmatpush.msra.mxu0 0.0
        %2396 = vmatpush.msra.mxu0 0.0
        %2397 = vmatpush.msra.mxu0 0.0
        %2398 = vmatpush.msra.mxu0 0.0
        %2399 = vmatpush.msra.mxu0 0.0
        %2400 = vmatpush.msra.mxu0 0.0
        %2401 = vmatpush.msra.mxu0 0.0
        %2402 = vmatpush.msra.mxu0 0.0
        %2403 = vmatpush.msra.mxu0 0.0
        %2404 = vmatpush.msra.mxu0 0.0
        %v2405 = vand.u32 %v366, 4294901760
        %2406 = vmatpush.msra.mxu0 %v2405
        %v2407 = vand.u32 %v350, 4294901760
        %2408 = vmatpush.msra.mxu0 %v2407
        %v2409 = vand.u32 %v334, 4294901760
        %2410 = vmatpush.msra.mxu0 %v2409
        %v2411 = vand.u32 %v318, 4294901760
        %2412 = vmatpush.msra.mxu0 %v2411
        %v2413 = vand.u32 %v381, 4294901760
        %2414 = vmatmul.f32.gmra.mxu0 %v2413
        %v2415 = vpop.f32.mrf.mxu0
        %v2416 = vadd.f32 %v2391, %v2415
        %2417 = vdwg.mxu0
        %2418 = vmatpush.msra.mxu0 0.0
        %2419 = vmatpush.msra.mxu0 0.0
        %2420 = vmatpush.msra.mxu0 0.0
        %2421 = vmatpush.msra.mxu0 0.0
        %2422 = vmatpush.msra.mxu0 0.0
        %2423 = vmatpush.msra.mxu0 0.0
        %2424 = vmatpush.msra.mxu0 0.0
        %2425 = vmatpush.msra.mxu0 0.0
        %2426 = vmatpush.msra.mxu0 0.0
        %2427 = vmatpush.msra.mxu0 0.0
        %2428 = vmatpush.msra.mxu0 0.0
        %2429 = vmatpush.msra.mxu0 0.0
        %v2430 = vand.u32 %v367, 4294901760
        %2431 = vmatpush.msra.mxu0 %v2430
        %v2432 = vand.u32 %v351, 4294901760
        %2433 = vmatpush.msra.mxu0 %v2432
        %v2434 = vand.u32 %v335, 4294901760
        %2435 = vmatpush.msra.mxu0 %v2434
        %v2436 = vand.u32 %v319, 4294901760
        %2437 = vmatpush.msra.mxu0 %v2436
        %v2438 = vand.u32 %v381, 4294901760
        %v2439 = vsub.f32 %v381, %v2438
        %v2440 = vand.u32 %v2439, 4294901760
        %v2441 = vsub.f32 %v2439, %v2440
        %v2442 = vand.u32 %v2441, 4294901760
        %2443 = vmatmul.f32.gmra.mxu0 %v2442
        %v2444 = vpop.f32.mrf.mxu0
        %v2445 = vadd.f32 %v377, %v2444
        %2446 = vdwg.mxu0
        %2447 = vmatpush.msra.mxu0 0.0
        %2448 = vmatpush.msra.mxu0 0.0
        %2449 = vmatpush.msra.mxu0 0.0
        %2450 = vmatpush.msra.mxu0 0.0
        %2451 = vmatpush.msra.mxu0 0.0
        %2452 = vmatpush.msra.mxu0 0.0
        %2453 = vmatpush.msra.mxu0 0.0
        %2454 = vmatpush.msra.mxu0 0.0
        %2455 = vmatpush.msra.mxu0 0.0
        %2456 = vmatpush.msra.mxu0 0.0
        %2457 = vmatpush.msra.mxu0 0.0
        %2458 = vmatpush.msra.mxu0 0.0
        %v2459 = vand.u32 %v367, 4294901760
        %v2460 = vsub.f32 %v367, %v2459
        %v2461 = vand.u32 %v2460, 4294901760
        %v2462 = vsub.f32 %v2460, %v2461
        %v2463 = vand.u32 %v2462, 4294901760
        %2464 = vmatpush.msra.mxu0 %v2463
        %v2465 = vand.u32 %v351, 4294901760
        %v2466 = vsub.f32 %v351, %v2465
        %v2467 = vand.u32 %v2466, 4294901760
        %v2468 = vsub.f32 %v2466, %v2467
        %v2469 = vand.u32 %v2468, 4294901760
        %2470 = vmatpush.msra.mxu0 %v2469
        %v2471 = vand.u32 %v335, 4294901760
        %v2472 = vsub.f32 %v335, %v2471
        %v2473 = vand.u32 %v2472, 4294901760
        %v2474 = vsub.f32 %v2472, %v2473
        %v2475 = vand.u32 %v2474, 4294901760
        %2476 = vmatpush.msra.mxu0 %v2475
        %v2477 = vand.u32 %v319, 4294901760
        %v2478 = vsub.f32 %v319, %v2477
        %v2479 = vand.u32 %v2478, 4294901760
        %v2480 = vsub.f32 %v2478, %v2479
        %v2481 = vand.u32 %v2480, 4294901760
        %2482 = vmatpush.msra.mxu0 %v2481
        %v2483 = vand.u32 %v381, 4294901760
        %2484 = vmatmul.f32.gmra.mxu0 %v2483
        %v2485 = vpop.f32.mrf.mxu0
        %v2486 = vadd.f32 %v2445, %v2485
        %2487 = vdwg.mxu0
        %2488 = vmatpush.msra.mxu0 0.0
        %2489 = vmatpush.msra.mxu0 0.0
        %2490 = vmatpush.msra.mxu0 0.0
        %2491 = vmatpush.msra.mxu0 0.0
        %2492 = vmatpush.msra.mxu0 0.0
        %2493 = vmatpush.msra.mxu0 0.0
        %2494 = vmatpush.msra.mxu0 0.0
        %2495 = vmatpush.msra.mxu0 0.0
        %2496 = vmatpush.msra.mxu0 0.0
        %2497 = vmatpush.msra.mxu0 0.0
        %2498 = vmatpush.msra.mxu0 0.0
        %2499 = vmatpush.msra.mxu0 0.0
        %v2500 = vand.u32 %v367, 4294901760
        %v2501 = vsub.f32 %v367, %v2500
        %2502 = vmatpush.msra.mxu0 %v2501
        %v2503 = vand.u32 %v351, 4294901760
        %v2504 = vsub.f32 %v351, %v2503
        %2505 = vmatpush.msra.mxu0 %v2504
        %v2506 = vand.u32 %v335, 4294901760
        %v2507 = vsub.f32 %v335, %v2506
        %2508 = vmatpush.msra.mxu0 %v2507
        %v2509 = vand.u32 %v319, 4294901760
        %v2510 = vsub.f32 %v319, %v2509
        %2511 = vmatpush.msra.mxu0 %v2510
        %v2512 = vand.u32 %v381, 4294901760
        %v2513 = vsub.f32 %v381, %v2512
        %2514 = vmatmul.f32.gmra.mxu0 %v2513
        %v2515 = vpop.f32.mrf.mxu0
        %v2516 = vadd.f32 %v2486, %v2515
        %2517 = vdwg.mxu0
        %2518 = vmatpush.msra.mxu0 0.0
        %2519 = vmatpush.msra.mxu0 0.0
        %2520 = vmatpush.msra.mxu0 0.0
        %2521 = vmatpush.msra.mxu0 0.0
        %2522 = vmatpush.msra.mxu0 0.0
        %2523 = vmatpush.msra.mxu0 0.0
        %2524 = vmatpush.msra.mxu0 0.0
        %2525 = vmatpush.msra.mxu0 0.0
        %2526 = vmatpush.msra.mxu0 0.0
        %2527 = vmatpush.msra.mxu0 0.0
        %2528 = vmatpush.msra.mxu0 0.0
        %2529 = vmatpush.msra.mxu0 0.0
        %v2530 = vand.u32 %v367, 4294901760
        %2531 = vmatpush.msra.mxu0 %v2530
        %v2532 = vand.u32 %v351, 4294901760
        %2533 = vmatpush.msra.mxu0 %v2532
        %v2534 = vand.u32 %v335, 4294901760
        %2535 = vmatpush.msra.mxu0 %v2534
        %v2536 = vand.u32 %v319, 4294901760
        %2537 = vmatpush.msra.mxu0 %v2536
        %v2538 = vand.u32 %v381, 4294901760
        %v2539 = vsub.f32 %v381, %v2538
        %v2540 = vand.u32 %v2539, 4294901760
        %2541 = vmatmul.f32.gmra.mxu0 %v2540
        %v2542 = vpop.f32.mrf.mxu0
        %v2543 = vadd.f32 %v2516, %v2542
        %2544 = vdwg.mxu0
        %2545 = vmatpush.msra.mxu0 0.0
        %2546 = vmatpush.msra.mxu0 0.0
        %2547 = vmatpush.msra.mxu0 0.0
        %2548 = vmatpush.msra.mxu0 0.0
        %2549 = vmatpush.msra.mxu0 0.0
        %2550 = vmatpush.msra.mxu0 0.0
        %2551 = vmatpush.msra.mxu0 0.0
        %2552 = vmatpush.msra.mxu0 0.0
        %2553 = vmatpush.msra.mxu0 0.0
        %2554 = vmatpush.msra.mxu0 0.0
        %2555 = vmatpush.msra.mxu0 0.0
        %2556 = vmatpush.msra.mxu0 0.0
        %v2557 = vand.u32 %v367, 4294901760
        %v2558 = vsub.f32 %v367, %v2557
        %v2559 = vand.u32 %v2558, 4294901760
        %2560 = vmatpush.msra.mxu0 %v2559
        %v2561 = vand.u32 %v351, 4294901760
        %v2562 = vsub.f32 %v351, %v2561
        %v2563 = vand.u32 %v2562, 4294901760
        %2564 = vmatpush.msra.mxu0 %v2563
        %v2565 = vand.u32 %v335, 4294901760
        %v2566 = vsub.f32 %v335, %v2565
        %v2567 = vand.u32 %v2566, 4294901760
        %2568 = vmatpush.msra.mxu0 %v2567
        %v2569 = vand.u32 %v319, 4294901760
        %v2570 = vsub.f32 %v319, %v2569
        %v2571 = vand.u32 %v2570, 4294901760
        %2572 = vmatpush.msra.mxu0 %v2571
        %v2573 = vand.u32 %v381, 4294901760
        %2574 = vmatmul.f32.gmra.mxu0 %v2573
        %v2575 = vpop.f32.mrf.mxu0
        %v2576 = vadd.f32 %v2543, %v2575
        %2577 = vdwg.mxu0
        %2578 = vmatpush.msra.mxu0 0.0
        %2579 = vmatpush.msra.mxu0 0.0
        %2580 = vmatpush.msra.mxu0 0.0
        %2581 = vmatpush.msra.mxu0 0.0
        %2582 = vmatpush.msra.mxu0 0.0
        %2583 = vmatpush.msra.mxu0 0.0
        %2584 = vmatpush.msra.mxu0 0.0
        %2585 = vmatpush.msra.mxu0 0.0
        %2586 = vmatpush.msra.mxu0 0.0
        %2587 = vmatpush.msra.mxu0 0.0
        %2588 = vmatpush.msra.mxu0 0.0
        %2589 = vmatpush.msra.mxu0 0.0
        %v2590 = vand.u32 %v367, 4294901760
        %2591 = vmatpush.msra.mxu0 %v2590
        %v2592 = vand.u32 %v351, 4294901760
        %2593 = vmatpush.msra.mxu0 %v2592
        %v2594 = vand.u32 %v335, 4294901760
        %2595 = vmatpush.msra.mxu0 %v2594
        %v2596 = vand.u32 %v319, 4294901760
        %2597 = vmatpush.msra.mxu0 %v2596
        %v2598 = vand.u32 %v381, 4294901760
        %2599 = vmatmul.f32.gmra.mxu0 %v2598
        %v2600 = vpop.f32.mrf.mxu0
        %v2601 = vadd.f32 %v2576, %v2600
        %2602 = vdwg.mxu0
        %2603 = vmatpush.msra.mxu0 0.0
        %2604 = vmatpush.msra.mxu0 0.0
        %2605 = vmatpush.msra.mxu0 0.0
        %2606 = vmatpush.msra.mxu0 0.0
        %2607 = vmatpush.msra.mxu0 0.0
        %2608 = vmatpush.msra.mxu0 0.0
        %2609 = vmatpush.msra.mxu0 0.0
        %2610 = vmatpush.msra.mxu0 0.0
        %2611 = vmatpush.msra.mxu0 0.0
        %2612 = vmatpush.msra.mxu0 0.0
        %2613 = vmatpush.msra.mxu0 0.0
        %2614 = vmatpush.msra.mxu0 0.0
        %v2615 = vand.u32 %v368, 4294901760
        %2616 = vmatpush.msra.mxu0 %v2615
        %v2617 = vand.u32 %v352, 4294901760
        %2618 = vmatpush.msra.mxu0 %v2617
        %v2619 = vand.u32 %v336, 4294901760
        %2620 = vmatpush.msra.mxu0 %v2619
        %v2621 = vand.u32 %v320, 4294901760
        %2622 = vmatpush.msra.mxu0 %v2621
        %v2623 = vand.u32 %v381, 4294901760
        %v2624 = vsub.f32 %v381, %v2623
        %v2625 = vand.u32 %v2624, 4294901760
        %v2626 = vsub.f32 %v2624, %v2625
        %v2627 = vand.u32 %v2626, 4294901760
        %2628 = vmatmul.f32.gmra.mxu0 %v2627
        %v2629 = vpop.f32.mrf.mxu0
        %v2630 = vadd.f32 %v377, %v2629
        %2631 = vdwg.mxu0
        %2632 = vmatpush.msra.mxu0 0.0
        %2633 = vmatpush.msra.mxu0 0.0
        %2634 = vmatpush.msra.mxu0 0.0
        %2635 = vmatpush.msra.mxu0 0.0
        %2636 = vmatpush.msra.mxu0 0.0
        %2637 = vmatpush.msra.mxu0 0.0
        %2638 = vmatpush.msra.mxu0 0.0
        %2639 = vmatpush.msra.mxu0 0.0
        %2640 = vmatpush.msra.mxu0 0.0
        %2641 = vmatpush.msra.mxu0 0.0
        %2642 = vmatpush.msra.mxu0 0.0
        %2643 = vmatpush.msra.mxu0 0.0
        %v2644 = vand.u32 %v368, 4294901760
        %v2645 = vsub.f32 %v368, %v2644
        %v2646 = vand.u32 %v2645, 4294901760
        %v2647 = vsub.f32 %v2645, %v2646
        %v2648 = vand.u32 %v2647, 4294901760
        %2649 = vmatpush.msra.mxu0 %v2648
        %v2650 = vand.u32 %v352, 4294901760
        %v2651 = vsub.f32 %v352, %v2650
        %v2652 = vand.u32 %v2651, 4294901760
        %v2653 = vsub.f32 %v2651, %v2652
        %v2654 = vand.u32 %v2653, 4294901760
        %2655 = vmatpush.msra.mxu0 %v2654
        %v2656 = vand.u32 %v336, 4294901760
        %v2657 = vsub.f32 %v336, %v2656
        %v2658 = vand.u32 %v2657, 4294901760
        %v2659 = vsub.f32 %v2657, %v2658
        %v2660 = vand.u32 %v2659, 4294901760
        %2661 = vmatpush.msra.mxu0 %v2660
        %v2662 = vand.u32 %v320, 4294901760
        %v2663 = vsub.f32 %v320, %v2662
        %v2664 = vand.u32 %v2663, 4294901760
        %v2665 = vsub.f32 %v2663, %v2664
        %v2666 = vand.u32 %v2665, 4294901760
        %2667 = vmatpush.msra.mxu0 %v2666
        %v2668 = vand.u32 %v381, 4294901760
        %2669 = vmatmul.f32.gmra.mxu0 %v2668
        %v2670 = vpop.f32.mrf.mxu0
        %v2671 = vadd.f32 %v2630, %v2670
        %2672 = vdwg.mxu0
        %2673 = vmatpush.msra.mxu0 0.0
        %2674 = vmatpush.msra.mxu0 0.0
        %2675 = vmatpush.msra.mxu0 0.0
        %2676 = vmatpush.msra.mxu0 0.0
        %2677 = vmatpush.msra.mxu0 0.0
        %2678 = vmatpush.msra.mxu0 0.0
        %2679 = vmatpush.msra.mxu0 0.0
        %2680 = vmatpush.msra.mxu0 0.0
        %2681 = vmatpush.msra.mxu0 0.0
        %2682 = vmatpush.msra.mxu0 0.0
        %2683 = vmatpush.msra.mxu0 0.0
        %2684 = vmatpush.msra.mxu0 0.0
        %v2685 = vand.u32 %v368, 4294901760
        %v2686 = vsub.f32 %v368, %v2685
        %2687 = vmatpush.msra.mxu0 %v2686
        %v2688 = vand.u32 %v352, 4294901760
        %v2689 = vsub.f32 %v352, %v2688
        %2690 = vmatpush.msra.mxu0 %v2689
        %v2691 = vand.u32 %v336, 4294901760
        %v2692 = vsub.f32 %v336, %v2691
        %2693 = vmatpush.msra.mxu0 %v2692
        %v2694 = vand.u32 %v320, 4294901760
        %v2695 = vsub.f32 %v320, %v2694
        %2696 = vmatpush.msra.mxu0 %v2695
        %v2697 = vand.u32 %v381, 4294901760
        %v2698 = vsub.f32 %v381, %v2697
        %2699 = vmatmul.f32.gmra.mxu0 %v2698
        %v2700 = vpop.f32.mrf.mxu0
        %v2701 = vadd.f32 %v2671, %v2700
        %2702 = vdwg.mxu0
        %2703 = vmatpush.msra.mxu0 0.0
        %2704 = vmatpush.msra.mxu0 0.0
        %2705 = vmatpush.msra.mxu0 0.0
        %2706 = vmatpush.msra.mxu0 0.0
        %2707 = vmatpush.msra.mxu0 0.0
        %2708 = vmatpush.msra.mxu0 0.0
        %2709 = vmatpush.msra.mxu0 0.0
        %2710 = vmatpush.msra.mxu0 0.0
        %2711 = vmatpush.msra.mxu0 0.0
        %2712 = vmatpush.msra.mxu0 0.0
        %2713 = vmatpush.msra.mxu0 0.0
        %2714 = vmatpush.msra.mxu0 0.0
        %v2715 = vand.u32 %v368, 4294901760
        %2716 = vmatpush.msra.mxu0 %v2715
        %v2717 = vand.u32 %v352, 4294901760
        %2718 = vmatpush.msra.mxu0 %v2717
        %v2719 = vand.u32 %v336, 4294901760
        %2720 = vmatpush.msra.mxu0 %v2719
        %v2721 = vand.u32 %v320, 4294901760
        %2722 = vmatpush.msra.mxu0 %v2721
        %v2723 = vand.u32 %v381, 4294901760
        %v2724 = vsub.f32 %v381, %v2723
        %v2725 = vand.u32 %v2724, 4294901760
        %2726 = vmatmul.f32.gmra.mxu0 %v2725
        %v2727 = vpop.f32.mrf.mxu0
        %v2728 = vadd.f32 %v2701, %v2727
        %2729 = vdwg.mxu0
        %2730 = vmatpush.msra.mxu0 0.0
        %2731 = vmatpush.msra.mxu0 0.0
        %2732 = vmatpush.msra.mxu0 0.0
        %2733 = vmatpush.msra.mxu0 0.0
        %2734 = vmatpush.msra.mxu0 0.0
        %2735 = vmatpush.msra.mxu0 0.0
        %2736 = vmatpush.msra.mxu0 0.0
        %2737 = vmatpush.msra.mxu0 0.0
        %2738 = vmatpush.msra.mxu0 0.0
        %2739 = vmatpush.msra.mxu0 0.0
        %2740 = vmatpush.msra.mxu0 0.0
        %2741 = vmatpush.msra.mxu0 0.0
        %v2742 = vand.u32 %v368, 4294901760
        %v2743 = vsub.f32 %v368, %v2742
        %v2744 = vand.u32 %v2743, 4294901760
        %2745 = vmatpush.msra.mxu0 %v2744
        %v2746 = vand.u32 %v352, 4294901760
        %v2747 = vsub.f32 %v352, %v2746
        %v2748 = vand.u32 %v2747, 4294901760
        %2749 = vmatpush.msra.mxu0 %v2748
        %v2750 = vand.u32 %v336, 4294901760
        %v2751 = vsub.f32 %v336, %v2750
        %v2752 = vand.u32 %v2751, 4294901760
        %2753 = vmatpush.msra.mxu0 %v2752
        %v2754 = vand.u32 %v320, 4294901760
        %v2755 = vsub.f32 %v320, %v2754
        %v2756 = vand.u32 %v2755, 4294901760
        %2757 = vmatpush.msra.mxu0 %v2756
        %v2758 = vand.u32 %v381, 4294901760
        %2759 = vmatmul.f32.gmra.mxu0 %v2758
        %v2760 = vpop.f32.mrf.mxu0
        %v2761 = vadd.f32 %v2728, %v2760
        %2762 = vdwg.mxu0
        %2763 = vmatpush.msra.mxu0 0.0
        %2764 = vmatpush.msra.mxu0 0.0
        %2765 = vmatpush.msra.mxu0 0.0
        %2766 = vmatpush.msra.mxu0 0.0
        %2767 = vmatpush.msra.mxu0 0.0
        %2768 = vmatpush.msra.mxu0 0.0
        %2769 = vmatpush.msra.mxu0 0.0
        %2770 = vmatpush.msra.mxu0 0.0
        %2771 = vmatpush.msra.mxu0 0.0
        %2772 = vmatpush.msra.mxu0 0.0
        %2773 = vmatpush.msra.mxu0 0.0
        %2774 = vmatpush.msra.mxu0 0.0
        %v2775 = vand.u32 %v368, 4294901760
        %2776 = vmatpush.msra.mxu0 %v2775
        %v2777 = vand.u32 %v352, 4294901760
        %2778 = vmatpush.msra.mxu0 %v2777
        %v2779 = vand.u32 %v336, 4294901760
        %2780 = vmatpush.msra.mxu0 %v2779
        %v2781 = vand.u32 %v320, 4294901760
        %2782 = vmatpush.msra.mxu0 %v2781
        %v2783 = vand.u32 %v381, 4294901760
        %2784 = vmatmul.f32.gmra.mxu0 %v2783
        %v2785 = vpop.f32.mrf.mxu0
        %v2786 = vadd.f32 %v2761, %v2785
        %2787 = vdwg.mxu0
        %2788 = vmatpush.msra.mxu0 0.0
        %2789 = vmatpush.msra.mxu0 0.0
        %2790 = vmatpush.msra.mxu0 0.0
        %2791 = vmatpush.msra.mxu0 0.0
        %2792 = vmatpush.msra.mxu0 0.0
        %2793 = vmatpush.msra.mxu0 0.0
        %2794 = vmatpush.msra.mxu0 0.0
        %2795 = vmatpush.msra.mxu0 0.0
        %2796 = vmatpush.msra.mxu0 0.0
        %2797 = vmatpush.msra.mxu0 0.0
        %2798 = vmatpush.msra.mxu0 0.0
        %2799 = vmatpush.msra.mxu0 0.0
        %v2800 = vand.u32 %v369, 4294901760
        %2801 = vmatpush.msra.mxu0 %v2800
        %v2802 = vand.u32 %v353, 4294901760
        %2803 = vmatpush.msra.mxu0 %v2802
        %v2804 = vand.u32 %v337, 4294901760
        %2805 = vmatpush.msra.mxu0 %v2804
        %v2806 = vand.u32 %v321, 4294901760
        %2807 = vmatpush.msra.mxu0 %v2806
        %v2808 = vand.u32 %v381, 4294901760
        %v2809 = vsub.f32 %v381, %v2808
        %v2810 = vand.u32 %v2809, 4294901760
        %v2811 = vsub.f32 %v2809, %v2810
        %v2812 = vand.u32 %v2811, 4294901760
        %2813 = vmatmul.f32.gmra.mxu0 %v2812
        %v2814 = vpop.f32.mrf.mxu0
        %v2815 = vadd.f32 %v377, %v2814
        %2816 = vdwg.mxu0
        %2817 = vmatpush.msra.mxu0 0.0
        %2818 = vmatpush.msra.mxu0 0.0
        %2819 = vmatpush.msra.mxu0 0.0
        %2820 = vmatpush.msra.mxu0 0.0
        %2821 = vmatpush.msra.mxu0 0.0
        %2822 = vmatpush.msra.mxu0 0.0
        %2823 = vmatpush.msra.mxu0 0.0
        %2824 = vmatpush.msra.mxu0 0.0
        %2825 = vmatpush.msra.mxu0 0.0
        %2826 = vmatpush.msra.mxu0 0.0
        %2827 = vmatpush.msra.mxu0 0.0
        %2828 = vmatpush.msra.mxu0 0.0
        %v2829 = vand.u32 %v369, 4294901760
        %v2830 = vsub.f32 %v369, %v2829
        %v2831 = vand.u32 %v2830, 4294901760
        %v2832 = vsub.f32 %v2830, %v2831
        %v2833 = vand.u32 %v2832, 4294901760
        %2834 = vmatpush.msra.mxu0 %v2833
        %v2835 = vand.u32 %v353, 4294901760
        %v2836 = vsub.f32 %v353, %v2835
        %v2837 = vand.u32 %v2836, 4294901760
        %v2838 = vsub.f32 %v2836, %v2837
        %v2839 = vand.u32 %v2838, 4294901760
        %2840 = vmatpush.msra.mxu0 %v2839
        %v2841 = vand.u32 %v337, 4294901760
        %v2842 = vsub.f32 %v337, %v2841
        %v2843 = vand.u32 %v2842, 4294901760
        %v2844 = vsub.f32 %v2842, %v2843
        %v2845 = vand.u32 %v2844, 4294901760
        %2846 = vmatpush.msra.mxu0 %v2845
        %v2847 = vand.u32 %v321, 4294901760
        %v2848 = vsub.f32 %v321, %v2847
        %v2849 = vand.u32 %v2848, 4294901760
        %v2850 = vsub.f32 %v2848, %v2849
        %v2851 = vand.u32 %v2850, 4294901760
        %2852 = vmatpush.msra.mxu0 %v2851
        %v2853 = vand.u32 %v381, 4294901760
        %2854 = vmatmul.f32.gmra.mxu0 %v2853
        %v2855 = vpop.f32.mrf.mxu0
        %v2856 = vadd.f32 %v2815, %v2855
        %2857 = vdwg.mxu0
        %2858 = vmatpush.msra.mxu0 0.0
        %2859 = vmatpush.msra.mxu0 0.0
        %2860 = vmatpush.msra.mxu0 0.0
        %2861 = vmatpush.msra.mxu0 0.0
        %2862 = vmatpush.msra.mxu0 0.0
        %2863 = vmatpush.msra.mxu0 0.0
        %2864 = vmatpush.msra.mxu0 0.0
        %2865 = vmatpush.msra.mxu0 0.0
        %2866 = vmatpush.msra.mxu0 0.0
        %2867 = vmatpush.msra.mxu0 0.0
        %2868 = vmatpush.msra.mxu0 0.0
        %2869 = vmatpush.msra.mxu0 0.0
        %v2870 = vand.u32 %v369, 4294901760
        %v2871 = vsub.f32 %v369, %v2870
        %2872 = vmatpush.msra.mxu0 %v2871
        %v2873 = vand.u32 %v353, 4294901760
        %v2874 = vsub.f32 %v353, %v2873
        %2875 = vmatpush.msra.mxu0 %v2874
        %v2876 = vand.u32 %v337, 4294901760
        %v2877 = vsub.f32 %v337, %v2876
        %2878 = vmatpush.msra.mxu0 %v2877
        %v2879 = vand.u32 %v321, 4294901760
        %v2880 = vsub.f32 %v321, %v2879
        %2881 = vmatpush.msra.mxu0 %v2880
        %v2882 = vand.u32 %v381, 4294901760
        %v2883 = vsub.f32 %v381, %v2882
        %2884 = vmatmul.f32.gmra.mxu0 %v2883
        %v2885 = vpop.f32.mrf.mxu0
        %v2886 = vadd.f32 %v2856, %v2885
        %2887 = vdwg.mxu0
        %2888 = vmatpush.msra.mxu0 0.0
        %2889 = vmatpush.msra.mxu0 0.0
        %2890 = vmatpush.msra.mxu0 0.0
        %2891 = vmatpush.msra.mxu0 0.0
        %2892 = vmatpush.msra.mxu0 0.0
        %2893 = vmatpush.msra.mxu0 0.0
        %2894 = vmatpush.msra.mxu0 0.0
        %2895 = vmatpush.msra.mxu0 0.0
        %2896 = vmatpush.msra.mxu0 0.0
        %2897 = vmatpush.msra.mxu0 0.0
        %2898 = vmatpush.msra.mxu0 0.0
        %2899 = vmatpush.msra.mxu0 0.0
        %v2900 = vand.u32 %v369, 4294901760
        %2901 = vmatpush.msra.mxu0 %v2900
        %v2902 = vand.u32 %v353, 4294901760
        %2903 = vmatpush.msra.mxu0 %v2902
        %v2904 = vand.u32 %v337, 4294901760
        %2905 = vmatpush.msra.mxu0 %v2904
        %v2906 = vand.u32 %v321, 4294901760
        %2907 = vmatpush.msra.mxu0 %v2906
        %v2908 = vand.u32 %v381, 4294901760
        %v2909 = vsub.f32 %v381, %v2908
        %v2910 = vand.u32 %v2909, 4294901760
        %2911 = vmatmul.f32.gmra.mxu0 %v2910
        %v2912 = vpop.f32.mrf.mxu0
        %v2913 = vadd.f32 %v2886, %v2912
        %2914 = vdwg.mxu0
        %2915 = vmatpush.msra.mxu0 0.0
        %2916 = vmatpush.msra.mxu0 0.0
        %2917 = vmatpush.msra.mxu0 0.0
        %2918 = vmatpush.msra.mxu0 0.0
        %2919 = vmatpush.msra.mxu0 0.0
        %2920 = vmatpush.msra.mxu0 0.0
        %2921 = vmatpush.msra.mxu0 0.0
        %2922 = vmatpush.msra.mxu0 0.0
        %2923 = vmatpush.msra.mxu0 0.0
        %2924 = vmatpush.msra.mxu0 0.0
        %2925 = vmatpush.msra.mxu0 0.0
        %2926 = vmatpush.msra.mxu0 0.0
        %v2927 = vand.u32 %v369, 4294901760
        %v2928 = vsub.f32 %v369, %v2927
        %v2929 = vand.u32 %v2928, 4294901760
        %2930 = vmatpush.msra.mxu0 %v2929
        %v2931 = vand.u32 %v353, 4294901760
        %v2932 = vsub.f32 %v353, %v2931
        %v2933 = vand.u32 %v2932, 4294901760
        %2934 = vmatpush.msra.mxu0 %v2933
        %v2935 = vand.u32 %v337, 4294901760
        %v2936 = vsub.f32 %v337, %v2935
        %v2937 = vand.u32 %v2936, 4294901760
        %2938 = vmatpush.msra.mxu0 %v2937
        %v2939 = vand.u32 %v321, 4294901760
        %v2940 = vsub.f32 %v321, %v2939
        %v2941 = vand.u32 %v2940, 4294901760
        %2942 = vmatpush.msra.mxu0 %v2941
        %v2943 = vand.u32 %v381, 4294901760
        %2944 = vmatmul.f32.gmra.mxu0 %v2943
        %v2945 = vpop.f32.mrf.mxu0
        %v2946 = vadd.f32 %v2913, %v2945
        %2947 = vdwg.mxu0
        %2948 = vmatpush.msra.mxu0 0.0
        %2949 = vmatpush.msra.mxu0 0.0
        %2950 = vmatpush.msra.mxu0 0.0
        %2951 = vmatpush.msra.mxu0 0.0
        %2952 = vmatpush.msra.mxu0 0.0
        %2953 = vmatpush.msra.mxu0 0.0
        %2954 = vmatpush.msra.mxu0 0.0
        %2955 = vmatpush.msra.mxu0 0.0
        %2956 = vmatpush.msra.mxu0 0.0
        %2957 = vmatpush.msra.mxu0 0.0
        %2958 = vmatpush.msra.mxu0 0.0
        %2959 = vmatpush.msra.mxu0 0.0
        %v2960 = vand.u32 %v369, 4294901760
        %2961 = vmatpush.msra.mxu0 %v2960
        %v2962 = vand.u32 %v353, 4294901760
        %2963 = vmatpush.msra.mxu0 %v2962
        %v2964 = vand.u32 %v337, 4294901760
        %2965 = vmatpush.msra.mxu0 %v2964
        %v2966 = vand.u32 %v321, 4294901760
        %2967 = vmatpush.msra.mxu0 %v2966
        %v2968 = vand.u32 %v381, 4294901760
        %2969 = vmatmul.f32.gmra.mxu0 %v2968
        %v2970 = vpop.f32.mrf.mxu0
        %v2971 = vadd.f32 %v2946, %v2970
        %2972 = vdwg.mxu0
        %2973 = vmatpush.msra.mxu0 0.0
        %2974 = vmatpush.msra.mxu0 0.0
        %2975 = vmatpush.msra.mxu0 0.0
        %2976 = vmatpush.msra.mxu0 0.0
        %2977 = vmatpush.msra.mxu0 0.0
        %2978 = vmatpush.msra.mxu0 0.0
        %2979 = vmatpush.msra.mxu0 0.0
        %2980 = vmatpush.msra.mxu0 0.0
        %2981 = vmatpush.msra.mxu0 0.0
        %2982 = vmatpush.msra.mxu0 0.0
        %2983 = vmatpush.msra.mxu0 0.0
        %2984 = vmatpush.msra.mxu0 0.0
        %v2985 = vand.u32 %v370, 4294901760
        %2986 = vmatpush.msra.mxu0 %v2985
        %v2987 = vand.u32 %v354, 4294901760
        %2988 = vmatpush.msra.mxu0 %v2987
        %v2989 = vand.u32 %v338, 4294901760
        %2990 = vmatpush.msra.mxu0 %v2989
        %v2991 = vand.u32 %v322, 4294901760
        %2992 = vmatpush.msra.mxu0 %v2991
        %v2993 = vand.u32 %v381, 4294901760
        %v2994 = vsub.f32 %v381, %v2993
        %v2995 = vand.u32 %v2994, 4294901760
        %v2996 = vsub.f32 %v2994, %v2995
        %v2997 = vand.u32 %v2996, 4294901760
        %2998 = vmatmul.f32.gmra.mxu0 %v2997
        %v2999 = vpop.f32.mrf.mxu0
        %v3000 = vadd.f32 %v377, %v2999
        %3001 = vdwg.mxu0
        %3002 = vmatpush.msra.mxu0 0.0
        %3003 = vmatpush.msra.mxu0 0.0
        %3004 = vmatpush.msra.mxu0 0.0
        %3005 = vmatpush.msra.mxu0 0.0
        %3006 = vmatpush.msra.mxu0 0.0
        %3007 = vmatpush.msra.mxu0 0.0
        %3008 = vmatpush.msra.mxu0 0.0
        %3009 = vmatpush.msra.mxu0 0.0
        %3010 = vmatpush.msra.mxu0 0.0
        %3011 = vmatpush.msra.mxu0 0.0
        %3012 = vmatpush.msra.mxu0 0.0
        %3013 = vmatpush.msra.mxu0 0.0
        %v3014 = vand.u32 %v370, 4294901760
        %v3015 = vsub.f32 %v370, %v3014
        %v3016 = vand.u32 %v3015, 4294901760
        %v3017 = vsub.f32 %v3015, %v3016
        %v3018 = vand.u32 %v3017, 4294901760
        %3019 = vmatpush.msra.mxu0 %v3018
        %v3020 = vand.u32 %v354, 4294901760
        %v3021 = vsub.f32 %v354, %v3020
        %v3022 = vand.u32 %v3021, 4294901760
        %v3023 = vsub.f32 %v3021, %v3022
        %v3024 = vand.u32 %v3023, 4294901760
        %3025 = vmatpush.msra.mxu0 %v3024
        %v3026 = vand.u32 %v338, 4294901760
        %v3027 = vsub.f32 %v338, %v3026
        %v3028 = vand.u32 %v3027, 4294901760
        %v3029 = vsub.f32 %v3027, %v3028
        %v3030 = vand.u32 %v3029, 4294901760
        %3031 = vmatpush.msra.mxu0 %v3030
        %v3032 = vand.u32 %v322, 4294901760
        %v3033 = vsub.f32 %v322, %v3032
        %v3034 = vand.u32 %v3033, 4294901760
        %v3035 = vsub.f32 %v3033, %v3034
        %v3036 = vand.u32 %v3035, 4294901760
        %3037 = vmatpush.msra.mxu0 %v3036
        %v3038 = vand.u32 %v381, 4294901760
        %3039 = vmatmul.f32.gmra.mxu0 %v3038
        %v3040 = vpop.f32.mrf.mxu0
        %v3041 = vadd.f32 %v3000, %v3040
        %3042 = vdwg.mxu0
        %3043 = vmatpush.msra.mxu0 0.0
        %3044 = vmatpush.msra.mxu0 0.0
        %3045 = vmatpush.msra.mxu0 0.0
        %3046 = vmatpush.msra.mxu0 0.0
        %3047 = vmatpush.msra.mxu0 0.0
        %3048 = vmatpush.msra.mxu0 0.0
        %3049 = vmatpush.msra.mxu0 0.0
        %3050 = vmatpush.msra.mxu0 0.0
        %3051 = vmatpush.msra.mxu0 0.0
        %3052 = vmatpush.msra.mxu0 0.0
        %3053 = vmatpush.msra.mxu0 0.0
        %3054 = vmatpush.msra.mxu0 0.0
        %v3055 = vand.u32 %v370, 4294901760
        %v3056 = vsub.f32 %v370, %v3055
        %3057 = vmatpush.msra.mxu0 %v3056
        %v3058 = vand.u32 %v354, 4294901760
        %v3059 = vsub.f32 %v354, %v3058
        %3060 = vmatpush.msra.mxu0 %v3059
        %v3061 = vand.u32 %v338, 4294901760
        %v3062 = vsub.f32 %v338, %v3061
        %3063 = vmatpush.msra.mxu0 %v3062
        %v3064 = vand.u32 %v322, 4294901760
        %v3065 = vsub.f32 %v322, %v3064
        %3066 = vmatpush.msra.mxu0 %v3065
        %v3067 = vand.u32 %v381, 4294901760
        %v3068 = vsub.f32 %v381, %v3067
        %3069 = vmatmul.f32.gmra.mxu0 %v3068
        %v3070 = vpop.f32.mrf.mxu0
        %v3071 = vadd.f32 %v3041, %v3070
        %3072 = vdwg.mxu0
        %3073 = vmatpush.msra.mxu0 0.0
        %3074 = vmatpush.msra.mxu0 0.0
        %3075 = vmatpush.msra.mxu0 0.0
        %3076 = vmatpush.msra.mxu0 0.0
        %3077 = vmatpush.msra.mxu0 0.0
        %3078 = vmatpush.msra.mxu0 0.0
        %3079 = vmatpush.msra.mxu0 0.0
        %3080 = vmatpush.msra.mxu0 0.0
        %3081 = vmatpush.msra.mxu0 0.0
        %3082 = vmatpush.msra.mxu0 0.0
        %3083 = vmatpush.msra.mxu0 0.0
        %3084 = vmatpush.msra.mxu0 0.0
        %v3085 = vand.u32 %v370, 4294901760
        %3086 = vmatpush.msra.mxu0 %v3085
        %v3087 = vand.u32 %v354, 4294901760
        %3088 = vmatpush.msra.mxu0 %v3087
        %v3089 = vand.u32 %v338, 4294901760
        %3090 = vmatpush.msra.mxu0 %v3089
        %v3091 = vand.u32 %v322, 4294901760
        %3092 = vmatpush.msra.mxu0 %v3091
        %v3093 = vand.u32 %v381, 4294901760
        %v3094 = vsub.f32 %v381, %v3093
        %v3095 = vand.u32 %v3094, 4294901760
        %3096 = vmatmul.f32.gmra.mxu0 %v3095
        %v3097 = vpop.f32.mrf.mxu0
        %v3098 = vadd.f32 %v3071, %v3097
        %3099 = vdwg.mxu0
        %3100 = vmatpush.msra.mxu0 0.0
        %3101 = vmatpush.msra.mxu0 0.0
        %3102 = vmatpush.msra.mxu0 0.0
        %3103 = vmatpush.msra.mxu0 0.0
        %3104 = vmatpush.msra.mxu0 0.0
        %3105 = vmatpush.msra.mxu0 0.0
        %3106 = vmatpush.msra.mxu0 0.0
        %3107 = vmatpush.msra.mxu0 0.0
        %3108 = vmatpush.msra.mxu0 0.0
        %3109 = vmatpush.msra.mxu0 0.0
        %3110 = vmatpush.msra.mxu0 0.0
        %3111 = vmatpush.msra.mxu0 0.0
        %v3112 = vand.u32 %v370, 4294901760
        %v3113 = vsub.f32 %v370, %v3112
        %v3114 = vand.u32 %v3113, 4294901760
        %3115 = vmatpush.msra.mxu0 %v3114
        %v3116 = vand.u32 %v354, 4294901760
        %v3117 = vsub.f32 %v354, %v3116
        %v3118 = vand.u32 %v3117, 4294901760
        %3119 = vmatpush.msra.mxu0 %v3118
        %v3120 = vand.u32 %v338, 4294901760
        %v3121 = vsub.f32 %v338, %v3120
        %v3122 = vand.u32 %v3121, 4294901760
        %3123 = vmatpush.msra.mxu0 %v3122
        %v3124 = vand.u32 %v322, 4294901760
        %v3125 = vsub.f32 %v322, %v3124
        %v3126 = vand.u32 %v3125, 4294901760
        %3127 = vmatpush.msra.mxu0 %v3126
        %v3128 = vand.u32 %v381, 4294901760
        %3129 = vmatmul.f32.gmra.mxu0 %v3128
        %v3130 = vpop.f32.mrf.mxu0
        %v3131 = vadd.f32 %v3098, %v3130
        %3132 = vdwg.mxu0
        %3133 = vmatpush.msra.mxu0 0.0
        %3134 = vmatpush.msra.mxu0 0.0
        %3135 = vmatpush.msra.mxu0 0.0
        %3136 = vmatpush.msra.mxu0 0.0
        %3137 = vmatpush.msra.mxu0 0.0
        %3138 = vmatpush.msra.mxu0 0.0
        %3139 = vmatpush.msra.mxu0 0.0
        %3140 = vmatpush.msra.mxu0 0.0
        %3141 = vmatpush.msra.mxu0 0.0
        %3142 = vmatpush.msra.mxu0 0.0
        %3143 = vmatpush.msra.mxu0 0.0
        %3144 = vmatpush.msra.mxu0 0.0
        %v3145 = vand.u32 %v370, 4294901760
        %3146 = vmatpush.msra.mxu0 %v3145
        %v3147 = vand.u32 %v354, 4294901760
        %3148 = vmatpush.msra.mxu0 %v3147
        %v3149 = vand.u32 %v338, 4294901760
        %3150 = vmatpush.msra.mxu0 %v3149
        %v3151 = vand.u32 %v322, 4294901760
        %3152 = vmatpush.msra.mxu0 %v3151
        %v3153 = vand.u32 %v381, 4294901760
        %3154 = vmatmul.f32.gmra.mxu0 %v3153
        %v3155 = vpop.f32.mrf.mxu0
        %v3156 = vadd.f32 %v3131, %v3155
        %3157 = vdwg.mxu0
        %3158 = vmatpush.msra.mxu0 0.0
        %3159 = vmatpush.msra.mxu0 0.0
        %3160 = vmatpush.msra.mxu0 0.0
        %3161 = vmatpush.msra.mxu0 0.0
        %3162 = vmatpush.msra.mxu0 0.0
        %3163 = vmatpush.msra.mxu0 0.0
        %3164 = vmatpush.msra.mxu0 0.0
        %3165 = vmatpush.msra.mxu0 0.0
        %3166 = vmatpush.msra.mxu0 0.0
        %3167 = vmatpush.msra.mxu0 0.0
        %3168 = vmatpush.msra.mxu0 0.0
        %3169 = vmatpush.msra.mxu0 0.0
        %v3170 = vand.u32 %v371, 4294901760
        %3171 = vmatpush.msra.mxu0 %v3170
        %v3172 = vand.u32 %v355, 4294901760
        %3173 = vmatpush.msra.mxu0 %v3172
        %v3174 = vand.u32 %v339, 4294901760
        %3175 = vmatpush.msra.mxu0 %v3174
        %v3176 = vand.u32 %v323, 4294901760
        %3177 = vmatpush.msra.mxu0 %v3176
        %v3178 = vand.u32 %v381, 4294901760
        %v3179 = vsub.f32 %v381, %v3178
        %v3180 = vand.u32 %v3179, 4294901760
        %v3181 = vsub.f32 %v3179, %v3180
        %v3182 = vand.u32 %v3181, 4294901760
        %3183 = vmatmul.f32.gmra.mxu0 %v3182
        %v3184 = vpop.f32.mrf.mxu0
        %v3185 = vadd.f32 %v377, %v3184
        %3186 = vdwg.mxu0
        %3187 = vmatpush.msra.mxu0 0.0
        %3188 = vmatpush.msra.mxu0 0.0
        %3189 = vmatpush.msra.mxu0 0.0
        %3190 = vmatpush.msra.mxu0 0.0
        %3191 = vmatpush.msra.mxu0 0.0
        %3192 = vmatpush.msra.mxu0 0.0
        %3193 = vmatpush.msra.mxu0 0.0
        %3194 = vmatpush.msra.mxu0 0.0
        %3195 = vmatpush.msra.mxu0 0.0
        %3196 = vmatpush.msra.mxu0 0.0
        %3197 = vmatpush.msra.mxu0 0.0
        %3198 = vmatpush.msra.mxu0 0.0
        %v3199 = vand.u32 %v371, 4294901760
        %v3200 = vsub.f32 %v371, %v3199
        %v3201 = vand.u32 %v3200, 4294901760
        %v3202 = vsub.f32 %v3200, %v3201
        %v3203 = vand.u32 %v3202, 4294901760
        %3204 = vmatpush.msra.mxu0 %v3203
        %v3205 = vand.u32 %v355, 4294901760
        %v3206 = vsub.f32 %v355, %v3205
        %v3207 = vand.u32 %v3206, 4294901760
        %v3208 = vsub.f32 %v3206, %v3207
        %v3209 = vand.u32 %v3208, 4294901760
        %3210 = vmatpush.msra.mxu0 %v3209
        %v3211 = vand.u32 %v339, 4294901760
        %v3212 = vsub.f32 %v339, %v3211
        %v3213 = vand.u32 %v3212, 4294901760
        %v3214 = vsub.f32 %v3212, %v3213
        %v3215 = vand.u32 %v3214, 4294901760
        %3216 = vmatpush.msra.mxu0 %v3215
        %v3217 = vand.u32 %v323, 4294901760
        %v3218 = vsub.f32 %v323, %v3217
        %v3219 = vand.u32 %v3218, 4294901760
        %v3220 = vsub.f32 %v3218, %v3219
        %v3221 = vand.u32 %v3220, 4294901760
        %3222 = vmatpush.msra.mxu0 %v3221
        %v3223 = vand.u32 %v381, 4294901760
        %3224 = vmatmul.f32.gmra.mxu0 %v3223
        %v3225 = vpop.f32.mrf.mxu0
        %v3226 = vadd.f32 %v3185, %v3225
        %3227 = vdwg.mxu0
        %3228 = vmatpush.msra.mxu0 0.0
        %3229 = vmatpush.msra.mxu0 0.0
        %3230 = vmatpush.msra.mxu0 0.0
        %3231 = vmatpush.msra.mxu0 0.0
        %3232 = vmatpush.msra.mxu0 0.0
        %3233 = vmatpush.msra.mxu0 0.0
        %3234 = vmatpush.msra.mxu0 0.0
        %3235 = vmatpush.msra.mxu0 0.0
        %3236 = vmatpush.msra.mxu0 0.0
        %3237 = vmatpush.msra.mxu0 0.0
        %3238 = vmatpush.msra.mxu0 0.0
        %3239 = vmatpush.msra.mxu0 0.0
        %v3240 = vand.u32 %v371, 4294901760
        %v3241 = vsub.f32 %v371, %v3240
        %3242 = vmatpush.msra.mxu0 %v3241
        %v3243 = vand.u32 %v355, 4294901760
        %v3244 = vsub.f32 %v355, %v3243
        %3245 = vmatpush.msra.mxu0 %v3244
        %v3246 = vand.u32 %v339, 4294901760
        %v3247 = vsub.f32 %v339, %v3246
        %3248 = vmatpush.msra.mxu0 %v3247
        %v3249 = vand.u32 %v323, 4294901760
        %v3250 = vsub.f32 %v323, %v3249
        %3251 = vmatpush.msra.mxu0 %v3250
        %v3252 = vand.u32 %v381, 4294901760
        %v3253 = vsub.f32 %v381, %v3252
        %3254 = vmatmul.f32.gmra.mxu0 %v3253
        %v3255 = vpop.f32.mrf.mxu0
        %v3256 = vadd.f32 %v3226, %v3255
        %3257 = vdwg.mxu0
        %3258 = vmatpush.msra.mxu0 0.0
        %3259 = vmatpush.msra.mxu0 0.0
        %3260 = vmatpush.msra.mxu0 0.0
        %3261 = vmatpush.msra.mxu0 0.0
        %3262 = vmatpush.msra.mxu0 0.0
        %3263 = vmatpush.msra.mxu0 0.0
        %3264 = vmatpush.msra.mxu0 0.0
        %3265 = vmatpush.msra.mxu0 0.0
        %3266 = vmatpush.msra.mxu0 0.0
        %3267 = vmatpush.msra.mxu0 0.0
        %3268 = vmatpush.msra.mxu0 0.0
        %3269 = vmatpush.msra.mxu0 0.0
        %v3270 = vand.u32 %v371, 4294901760
        %3271 = vmatpush.msra.mxu0 %v3270
        %v3272 = vand.u32 %v355, 4294901760
        %3273 = vmatpush.msra.mxu0 %v3272
        %v3274 = vand.u32 %v339, 4294901760
        %3275 = vmatpush.msra.mxu0 %v3274
        %v3276 = vand.u32 %v323, 4294901760
        %3277 = vmatpush.msra.mxu0 %v3276
        %v3278 = vand.u32 %v381, 4294901760
        %v3279 = vsub.f32 %v381, %v3278
        %v3280 = vand.u32 %v3279, 4294901760
        %3281 = vmatmul.f32.gmra.mxu0 %v3280
        %v3282 = vpop.f32.mrf.mxu0
        %v3283 = vadd.f32 %v3256, %v3282
        %3284 = vdwg.mxu0
        %3285 = vmatpush.msra.mxu0 0.0
        %3286 = vmatpush.msra.mxu0 0.0
        %3287 = vmatpush.msra.mxu0 0.0
        %3288 = vmatpush.msra.mxu0 0.0
        %3289 = vmatpush.msra.mxu0 0.0
        %3290 = vmatpush.msra.mxu0 0.0
        %3291 = vmatpush.msra.mxu0 0.0
        %3292 = vmatpush.msra.mxu0 0.0
        %3293 = vmatpush.msra.mxu0 0.0
        %3294 = vmatpush.msra.mxu0 0.0
        %3295 = vmatpush.msra.mxu0 0.0
        %3296 = vmatpush.msra.mxu0 0.0
        %v3297 = vand.u32 %v371, 4294901760
        %v3298 = vsub.f32 %v371, %v3297
        %v3299 = vand.u32 %v3298, 4294901760
        %3300 = vmatpush.msra.mxu0 %v3299
        %v3301 = vand.u32 %v355, 4294901760
        %v3302 = vsub.f32 %v355, %v3301
        %v3303 = vand.u32 %v3302, 4294901760
        %3304 = vmatpush.msra.mxu0 %v3303
        %v3305 = vand.u32 %v339, 4294901760
        %v3306 = vsub.f32 %v339, %v3305
        %v3307 = vand.u32 %v3306, 4294901760
        %3308 = vmatpush.msra.mxu0 %v3307
        %v3309 = vand.u32 %v323, 4294901760
        %v3310 = vsub.f32 %v323, %v3309
        %v3311 = vand.u32 %v3310, 4294901760
        %3312 = vmatpush.msra.mxu0 %v3311
        %v3313 = vand.u32 %v381, 4294901760
        %3314 = vmatmul.f32.gmra.mxu0 %v3313
        %v3315 = vpop.f32.mrf.mxu0
        %v3316 = vadd.f32 %v3283, %v3315
        %3317 = vdwg.mxu0
        %3318 = vmatpush.msra.mxu0 0.0
        %3319 = vmatpush.msra.mxu0 0.0
        %3320 = vmatpush.msra.mxu0 0.0
        %3321 = vmatpush.msra.mxu0 0.0
        %3322 = vmatpush.msra.mxu0 0.0
        %3323 = vmatpush.msra.mxu0 0.0
        %3324 = vmatpush.msra.mxu0 0.0
        %3325 = vmatpush.msra.mxu0 0.0
        %3326 = vmatpush.msra.mxu0 0.0
        %3327 = vmatpush.msra.mxu0 0.0
        %3328 = vmatpush.msra.mxu0 0.0
        %3329 = vmatpush.msra.mxu0 0.0
        %v3330 = vand.u32 %v371, 4294901760
        %3331 = vmatpush.msra.mxu0 %v3330
        %v3332 = vand.u32 %v355, 4294901760
        %3333 = vmatpush.msra.mxu0 %v3332
        %v3334 = vand.u32 %v339, 4294901760
        %3335 = vmatpush.msra.mxu0 %v3334
        %v3336 = vand.u32 %v323, 4294901760
        %3337 = vmatpush.msra.mxu0 %v3336
        %v3338 = vand.u32 %v381, 4294901760
        %3339 = vmatmul.f32.gmra.mxu0 %v3338
        %v3340 = vpop.f32.mrf.mxu0
        %v3341 = vadd.f32 %v3316, %v3340
        %3342 = vdwg.mxu0
        %v3343 = vmax.f32 %v566, 0.0
        %v3344 = vmax.f32 %v751, 0.0
        %v3345 = vmax.f32 %v936, 0.0
        %v3346 = vmax.f32 %v1121, 0.0
        %v3347 = vmax.f32 %v1306, 0.0
        %v3348 = vmax.f32 %v1491, 0.0
        %v3349 = vmax.f32 %v1676, 0.0
        %v3350 = vmax.f32 %v1861, 0.0
        %v3351 = vmax.f32 %v2046, 0.0
        %v3352 = vmax.f32 %v2231, 0.0
        %v3353 = vmax.f32 %v2416, 0.0
        %v3354 = vmax.f32 %v2601, 0.0
        %v3355 = vmax.f32 %v2786, 0.0
        %v3356 = vmax.f32 %v2971, 0.0
        %v3357 = vmax.f32 %v3156, 0.0
        %v3358 = vmax.f32 %v3341, 0.0
        %3359 = vst [vmem:[%s297] sm:$0xff] %v3343
        %3360 = vst [vmem:[%s297 + $0x8] sm:$0xff] %v3344
        %3361 = vst [vmem:[%s297 + $0x10] sm:$0xff] %v3345
        %3362 = vst [vmem:[%s297 + $0x18] sm:$0xff] %v3346
        %3363 = vst [vmem:[%s297 + $0x20] sm:$0xff] %v3347
        %3364 = vst [vmem:[%s297 + $0x28] sm:$0xff] %v3348
        %3365 = vst [vmem:[%s297 + $0x30] sm:$0xff] %v3349
        %3366 = vst [vmem:[%s297 + $0x38] sm:$0xff] %v3350
        %3367 = vst [vmem:[%s297 + $0x40] sm:$0xff] %v3351
        %3368 = vst [vmem:[%s297 + $0x48] sm:$0xff] %v3352
        %3369 = vst [vmem:[%s297 + $0x50] sm:$0xff] %v3353
        %3370 = vst [vmem:[%s297 + $0x58] sm:$0xff] %v3354
        %3371 = vst [vmem:[%s297 + $0x60] sm:$0xff] %v3355
        %3372 = vst [vmem:[%s297 + $0x68] sm:$0xff] %v3356
        %3373 = vst [vmem:[%s297 + $0x70] sm:$0xff] %v3357
        %3374 = vst [vmem:[%s297 + $0x78] sm:$0xff] %v3358
        %v3375 = vld [vmem:[%s3] sm:$0x1]
        %v3376 = vld [vmem:[#allocation2] sm:$0x1]
        %3378 = vset.pattern.permute.xlu0 0
        %3379 = vperm.xlu0 %3378, %v3376
        %v3380 = vpop.permute.xlu0 %3379
        %v3382 = vperm.slane %v3380, 0
        %vm3383 = vcmask 64512
        %v3385 = vsel %vm3383, %v3375, 0
        %3387 = vmatpush.msra.mxu0 0.0
        %3388 = vmatpush.msra.mxu0 0.0
        %3389 = vmatpush.msra.mxu0 0.0
        %3390 = vmatpush.msra.mxu0 0.0
        %3391 = vmatpush.msra.mxu0 0.0
        %3392 = vmatpush.msra.mxu0 0.0
        %3393 = vmatpush.msra.mxu0 0.0
        %3394 = vmatpush.msra.mxu0 0.0
        %3395 = vmatpush.msra.mxu0 0.0
        %3396 = vmatpush.msra.mxu0 0.0
        %3397 = vmatpush.msra.mxu0 0.0
        %3398 = vmatpush.msra.mxu0 0.0
        %3399 = vmatpush.msra.mxu0 0.0
        %3400 = vmatpush.msra.mxu0 0.0
        %3401 = vmatpush.msra.mxu0 0.0
        %v3402 = vand.u32 %v3343, 4294901760
        %3403 = vmatpush.msra.mxu0 %v3402
        %v3404 = vand.u32 %v3385, 4294901760
        %v3405 = vsub.f32 %v3385, %v3404
        %v3406 = vand.u32 %v3405, 4294901760
        %v3407 = vsub.f32 %v3405, %v3406
        %v3408 = vand.u32 %v3407, 4294901760
        %3409 = vmatmul.f32.gmra.mxu0 %v3408
        %v3410 = vpop.f32.mrf.mxu0
        %v3411 = vadd.f32 %v3382, %v3410
        %3412 = vdwg.mxu0
        %3413 = vmatpush.msra.mxu0 0.0
        %3414 = vmatpush.msra.mxu0 0.0
        %3415 = vmatpush.msra.mxu0 0.0
        %3416 = vmatpush.msra.mxu0 0.0
        %3417 = vmatpush.msra.mxu0 0.0
        %3418 = vmatpush.msra.mxu0 0.0
        %3419 = vmatpush.msra.mxu0 0.0
        %3420 = vmatpush.msra.mxu0 0.0
        %3421 = vmatpush.msra.mxu0 0.0
        %3422 = vmatpush.msra.mxu0 0.0
        %3423 = vmatpush.msra.mxu0 0.0
        %3424 = vmatpush.msra.mxu0 0.0
        %3425 = vmatpush.msra.mxu0 0.0
        %3426 = vmatpush.msra.mxu0 0.0
        %3427 = vmatpush.msra.mxu0 0.0
        %v3428 = vand.u32 %v3343, 4294901760
        %v3429 = vsub.f32 %v3343, %v3428
        %v3430 = vand.u32 %v3429, 4294901760
        %v3431 = vsub.f32 %v3429, %v3430
        %v3432 = vand.u32 %v3431, 4294901760
        %3433 = vmatpush.msra.mxu0 %v3432
        %v3434 = vand.u32 %v3385, 4294901760
        %3435 = vmatmul.f32.gmra.mxu0 %v3434
        %v3436 = vpop.f32.mrf.mxu0
        %v3437 = vadd.f32 %v3411, %v3436
        %3438 = vdwg.mxu0
        %3439 = vmatpush.msra.mxu0 0.0
        %3440 = vmatpush.msra.mxu0 0.0
        %3441 = vmatpush.msra.mxu0 0.0
        %3442 = vmatpush.msra.mxu0 0.0
        %3443 = vmatpush.msra.mxu0 0.0
        %3444 = vmatpush.msra.mxu0 0.0
        %3445 = vmatpush.msra.mxu0 0.0
        %3446 = vmatpush.msra.mxu0 0.0
        %3447 = vmatpush.msra.mxu0 0.0
        %3448 = vmatpush.msra.mxu0 0.0
        %3449 = vmatpush.msra.mxu0 0.0
        %3450 = vmatpush.msra.mxu0 0.0
        %3451 = vmatpush.msra.mxu0 0.0
        %3452 = vmatpush.msra.mxu0 0.0
        %3453 = vmatpush.msra.mxu0 0.0
        %v3454 = vand.u32 %v3343, 4294901760
        %v3455 = vsub.f32 %v3343, %v3454
        %3456 = vmatpush.msra.mxu0 %v3455
        %v3457 = vand.u32 %v3385, 4294901760
        %v3458 = vsub.f32 %v3385, %v3457
        %3459 = vmatmul.f32.gmra.mxu0 %v3458
        %v3460 = vpop.f32.mrf.mxu0
        %v3461 = vadd.f32 %v3437, %v3460
        %3462 = vdwg.mxu0
        %3463 = vmatpush.msra.mxu0 0.0
        %3464 = vmatpush.msra.mxu0 0.0
        %3465 = vmatpush.msra.mxu0 0.0
        %3466 = vmatpush.msra.mxu0 0.0
        %3467 = vmatpush.msra.mxu0 0.0
        %3468 = vmatpush.msra.mxu0 0.0
        %3469 = vmatpush.msra.mxu0 0.0
        %3470 = vmatpush.msra.mxu0 0.0
        %3471 = vmatpush.msra.mxu0 0.0
        %3472 = vmatpush.msra.mxu0 0.0
        %3473 = vmatpush.msra.mxu0 0.0
        %3474 = vmatpush.msra.mxu0 0.0
        %3475 = vmatpush.msra.mxu0 0.0
        %3476 = vmatpush.msra.mxu0 0.0
        %3477 = vmatpush.msra.mxu0 0.0
        %v3478 = vand.u32 %v3343, 4294901760
        %3479 = vmatpush.msra.mxu0 %v3478
        %v3480 = vand.u32 %v3385, 4294901760
        %v3481 = vsub.f32 %v3385, %v3480
        %v3482 = vand.u32 %v3481, 4294901760
        %3483 = vmatmul.f32.gmra.mxu0 %v3482
        %v3484 = vpop.f32.mrf.mxu0
        %v3485 = vadd.f32 %v3461, %v3484
        %3486 = vdwg.mxu0
        %3487 = vmatpush.msra.mxu0 0.0
        %3488 = vmatpush.msra.mxu0 0.0
        %3489 = vmatpush.msra.mxu0 0.0
        %3490 = vmatpush.msra.mxu0 0.0
        %3491 = vmatpush.msra.mxu0 0.0
        %3492 = vmatpush.msra.mxu0 0.0
        %3493 = vmatpush.msra.mxu0 0.0
        %3494 = vmatpush.msra.mxu0 0.0
        %3495 = vmatpush.msra.mxu0 0.0
        %3496 = vmatpush.msra.mxu0 0.0
        %3497 = vmatpush.msra.mxu0 0.0
        %3498 = vmatpush.msra.mxu0 0.0
        %3499 = vmatpush.msra.mxu0 0.0
        %3500 = vmatpush.msra.mxu0 0.0
        %3501 = vmatpush.msra.mxu0 0.0
        %v3502 = vand.u32 %v3343, 4294901760
        %v3503 = vsub.f32 %v3343, %v3502
        %v3504 = vand.u32 %v3503, 4294901760
        %3505 = vmatpush.msra.mxu0 %v3504
        %v3506 = vand.u32 %v3385, 4294901760
        %3507 = vmatmul.f32.gmra.mxu0 %v3506
        %v3508 = vpop.f32.mrf.mxu0
        %v3509 = vadd.f32 %v3485, %v3508
        %3510 = vdwg.mxu0
        %3511 = vmatpush.msra.mxu0 0.0
        %3512 = vmatpush.msra.mxu0 0.0
        %3513 = vmatpush.msra.mxu0 0.0
        %3514 = vmatpush.msra.mxu0 0.0
        %3515 = vmatpush.msra.mxu0 0.0
        %3516 = vmatpush.msra.mxu0 0.0
        %3517 = vmatpush.msra.mxu0 0.0
        %3518 = vmatpush.msra.mxu0 0.0
        %3519 = vmatpush.msra.mxu0 0.0
        %3520 = vmatpush.msra.mxu0 0.0
        %3521 = vmatpush.msra.mxu0 0.0
        %3522 = vmatpush.msra.mxu0 0.0
        %3523 = vmatpush.msra.mxu0 0.0
        %3524 = vmatpush.msra.mxu0 0.0
        %3525 = vmatpush.msra.mxu0 0.0
        %v3526 = vand.u32 %v3343, 4294901760
        %3527 = vmatpush.msra.mxu0 %v3526
        %v3528 = vand.u32 %v3385, 4294901760
        %3529 = vmatmul.f32.gmra.mxu0 %v3528
        %v3530 = vpop.f32.mrf.mxu0
        %v3531 = vadd.f32 %v3509, %v3530
        %3532 = vdwg.mxu0
        %3533 = vmatpush.msra.mxu0 0.0
        %3534 = vmatpush.msra.mxu0 0.0
        %3535 = vmatpush.msra.mxu0 0.0
        %3536 = vmatpush.msra.mxu0 0.0
        %3537 = vmatpush.msra.mxu0 0.0
        %3538 = vmatpush.msra.mxu0 0.0
        %3539 = vmatpush.msra.mxu0 0.0
        %3540 = vmatpush.msra.mxu0 0.0
        %3541 = vmatpush.msra.mxu0 0.0
        %3542 = vmatpush.msra.mxu0 0.0
        %3543 = vmatpush.msra.mxu0 0.0
        %3544 = vmatpush.msra.mxu0 0.0
        %3545 = vmatpush.msra.mxu0 0.0
        %3546 = vmatpush.msra.mxu0 0.0
        %3547 = vmatpush.msra.mxu0 0.0
        %v3548 = vand.u32 %v3344, 4294901760
        %3549 = vmatpush.msra.mxu0 %v3548
        %v3550 = vand.u32 %v3385, 4294901760
        %v3551 = vsub.f32 %v3385, %v3550
        %v3552 = vand.u32 %v3551, 4294901760
        %v3553 = vsub.f32 %v3551, %v3552
        %v3554 = vand.u32 %v3553, 4294901760
        %3555 = vmatmul.f32.gmra.mxu0 %v3554
        %v3556 = vpop.f32.mrf.mxu0
        %v3557 = vadd.f32 %v3382, %v3556
        %3558 = vdwg.mxu0
        %3559 = vmatpush.msra.mxu0 0.0
        %3560 = vmatpush.msra.mxu0 0.0
        %3561 = vmatpush.msra.mxu0 0.0
        %3562 = vmatpush.msra.mxu0 0.0
        %3563 = vmatpush.msra.mxu0 0.0
        %3564 = vmatpush.msra.mxu0 0.0
        %3565 = vmatpush.msra.mxu0 0.0
        %3566 = vmatpush.msra.mxu0 0.0
        %3567 = vmatpush.msra.mxu0 0.0
        %3568 = vmatpush.msra.mxu0 0.0
        %3569 = vmatpush.msra.mxu0 0.0
        %3570 = vmatpush.msra.mxu0 0.0
        %3571 = vmatpush.msra.mxu0 0.0
        %3572 = vmatpush.msra.mxu0 0.0
        %3573 = vmatpush.msra.mxu0 0.0
        %v3574 = vand.u32 %v3344, 4294901760
        %v3575 = vsub.f32 %v3344, %v3574
        %v3576 = vand.u32 %v3575, 4294901760
        %v3577 = vsub.f32 %v3575, %v3576
        %v3578 = vand.u32 %v3577, 4294901760
        %3579 = vmatpush.msra.mxu0 %v3578
        %v3580 = vand.u32 %v3385, 4294901760
        %3581 = vmatmul.f32.gmra.mxu0 %v3580
        %v3582 = vpop.f32.mrf.mxu0
        %v3583 = vadd.f32 %v3557, %v3582
        %3584 = vdwg.mxu0
        %3585 = vmatpush.msra.mxu0 0.0
        %3586 = vmatpush.msra.mxu0 0.0
        %3587 = vmatpush.msra.mxu0 0.0
        %3588 = vmatpush.msra.mxu0 0.0
        %3589 = vmatpush.msra.mxu0 0.0
        %3590 = vmatpush.msra.mxu0 0.0
        %3591 = vmatpush.msra.mxu0 0.0
        %3592 = vmatpush.msra.mxu0 0.0
        %3593 = vmatpush.msra.mxu0 0.0
        %3594 = vmatpush.msra.mxu0 0.0
        %3595 = vmatpush.msra.mxu0 0.0
        %3596 = vmatpush.msra.mxu0 0.0
        %3597 = vmatpush.msra.mxu0 0.0
        %3598 = vmatpush.msra.mxu0 0.0
        %3599 = vmatpush.msra.mxu0 0.0
        %v3600 = vand.u32 %v3344, 4294901760
        %v3601 = vsub.f32 %v3344, %v3600
        %3602 = vmatpush.msra.mxu0 %v3601
        %v3603 = vand.u32 %v3385, 4294901760
        %v3604 = vsub.f32 %v3385, %v3603
        %3605 = vmatmul.f32.gmra.mxu0 %v3604
        %v3606 = vpop.f32.mrf.mxu0
        %v3607 = vadd.f32 %v3583, %v3606
        %3608 = vdwg.mxu0
        %3609 = vmatpush.msra.mxu0 0.0
        %3610 = vmatpush.msra.mxu0 0.0
        %3611 = vmatpush.msra.mxu0 0.0
        %3612 = vmatpush.msra.mxu0 0.0
        %3613 = vmatpush.msra.mxu0 0.0
        %3614 = vmatpush.msra.mxu0 0.0
        %3615 = vmatpush.msra.mxu0 0.0
        %3616 = vmatpush.msra.mxu0 0.0
        %3617 = vmatpush.msra.mxu0 0.0
        %3618 = vmatpush.msra.mxu0 0.0
        %3619 = vmatpush.msra.mxu0 0.0
        %3620 = vmatpush.msra.mxu0 0.0
        %3621 = vmatpush.msra.mxu0 0.0
        %3622 = vmatpush.msra.mxu0 0.0
        %3623 = vmatpush.msra.mxu0 0.0
        %v3624 = vand.u32 %v3344, 4294901760
        %3625 = vmatpush.msra.mxu0 %v3624
        %v3626 = vand.u32 %v3385, 4294901760
        %v3627 = vsub.f32 %v3385, %v3626
        %v3628 = vand.u32 %v3627, 4294901760
        %3629 = vmatmul.f32.gmra.mxu0 %v3628
        %v3630 = vpop.f32.mrf.mxu0
        %v3631 = vadd.f32 %v3607, %v3630
        %3632 = vdwg.mxu0
        %3633 = vmatpush.msra.mxu0 0.0
        %3634 = vmatpush.msra.mxu0 0.0
        %3635 = vmatpush.msra.mxu0 0.0
        %3636 = vmatpush.msra.mxu0 0.0
        %3637 = vmatpush.msra.mxu0 0.0
        %3638 = vmatpush.msra.mxu0 0.0
        %3639 = vmatpush.msra.mxu0 0.0
        %3640 = vmatpush.msra.mxu0 0.0
        %3641 = vmatpush.msra.mxu0 0.0
        %3642 = vmatpush.msra.mxu0 0.0
        %3643 = vmatpush.msra.mxu0 0.0
        %3644 = vmatpush.msra.mxu0 0.0
        %3645 = vmatpush.msra.mxu0 0.0
        %3646 = vmatpush.msra.mxu0 0.0
        %3647 = vmatpush.msra.mxu0 0.0
        %v3648 = vand.u32 %v3344, 4294901760
        %v3649 = vsub.f32 %v3344, %v3648
        %v3650 = vand.u32 %v3649, 4294901760
        %3651 = vmatpush.msra.mxu0 %v3650
        %v3652 = vand.u32 %v3385, 4294901760
        %3653 = vmatmul.f32.gmra.mxu0 %v3652
        %v3654 = vpop.f32.mrf.mxu0
        %v3655 = vadd.f32 %v3631, %v3654
        %3656 = vdwg.mxu0
        %3657 = vmatpush.msra.mxu0 0.0
        %3658 = vmatpush.msra.mxu0 0.0
        %3659 = vmatpush.msra.mxu0 0.0
        %3660 = vmatpush.msra.mxu0 0.0
        %3661 = vmatpush.msra.mxu0 0.0
        %3662 = vmatpush.msra.mxu0 0.0
        %3663 = vmatpush.msra.mxu0 0.0
        %3664 = vmatpush.msra.mxu0 0.0
        %3665 = vmatpush.msra.mxu0 0.0
        %3666 = vmatpush.msra.mxu0 0.0
        %3667 = vmatpush.msra.mxu0 0.0
        %3668 = vmatpush.msra.mxu0 0.0
        %3669 = vmatpush.msra.mxu0 0.0
        %3670 = vmatpush.msra.mxu0 0.0
        %3671 = vmatpush.msra.mxu0 0.0
        %v3672 = vand.u32 %v3344, 4294901760
        %3673 = vmatpush.msra.mxu0 %v3672
        %v3674 = vand.u32 %v3385, 4294901760
        %3675 = vmatmul.f32.gmra.mxu0 %v3674
        %v3676 = vpop.f32.mrf.mxu0
        %v3677 = vadd.f32 %v3655, %v3676
        %3678 = vdwg.mxu0
        %3679 = vmatpush.msra.mxu0 0.0
        %3680 = vmatpush.msra.mxu0 0.0
        %3681 = vmatpush.msra.mxu0 0.0
        %3682 = vmatpush.msra.mxu0 0.0
        %3683 = vmatpush.msra.mxu0 0.0
        %3684 = vmatpush.msra.mxu0 0.0
        %3685 = vmatpush.msra.mxu0 0.0
        %3686 = vmatpush.msra.mxu0 0.0
        %3687 = vmatpush.msra.mxu0 0.0
        %3688 = vmatpush.msra.mxu0 0.0
        %3689 = vmatpush.msra.mxu0 0.0
        %3690 = vmatpush.msra.mxu0 0.0
        %3691 = vmatpush.msra.mxu0 0.0
        %3692 = vmatpush.msra.mxu0 0.0
        %3693 = vmatpush.msra.mxu0 0.0
        %v3694 = vand.u32 %v3345, 4294901760
        %3695 = vmatpush.msra.mxu0 %v3694
        %v3696 = vand.u32 %v3385, 4294901760
        %v3697 = vsub.f32 %v3385, %v3696
        %v3698 = vand.u32 %v3697, 4294901760
        %v3699 = vsub.f32 %v3697, %v3698
        %v3700 = vand.u32 %v3699, 4294901760
        %3701 = vmatmul.f32.gmra.mxu0 %v3700
        %v3702 = vpop.f32.mrf.mxu0
        %v3703 = vadd.f32 %v3382, %v3702
        %3704 = vdwg.mxu0
        %3705 = vmatpush.msra.mxu0 0.0
        %3706 = vmatpush.msra.mxu0 0.0
        %3707 = vmatpush.msra.mxu0 0.0
        %3708 = vmatpush.msra.mxu0 0.0
        %3709 = vmatpush.msra.mxu0 0.0
        %3710 = vmatpush.msra.mxu0 0.0
        %3711 = vmatpush.msra.mxu0 0.0
        %3712 = vmatpush.msra.mxu0 0.0
        %3713 = vmatpush.msra.mxu0 0.0
        %3714 = vmatpush.msra.mxu0 0.0
        %3715 = vmatpush.msra.mxu0 0.0
        %3716 = vmatpush.msra.mxu0 0.0
        %3717 = vmatpush.msra.mxu0 0.0
        %3718 = vmatpush.msra.mxu0 0.0
        %3719 = vmatpush.msra.mxu0 0.0
        %v3720 = vand.u32 %v3345, 4294901760
        %v3721 = vsub.f32 %v3345, %v3720
        %v3722 = vand.u32 %v3721, 4294901760
        %v3723 = vsub.f32 %v3721, %v3722
        %v3724 = vand.u32 %v3723, 4294901760
        %3725 = vmatpush.msra.mxu0 %v3724
        %v3726 = vand.u32 %v3385, 4294901760
        %3727 = vmatmul.f32.gmra.mxu0 %v3726
        %v3728 = vpop.f32.mrf.mxu0
        %v3729 = vadd.f32 %v3703, %v3728
        %3730 = vdwg.mxu0
        %3731 = vmatpush.msra.mxu0 0.0
        %3732 = vmatpush.msra.mxu0 0.0
        %3733 = vmatpush.msra.mxu0 0.0
        %3734 = vmatpush.msra.mxu0 0.0
        %3735 = vmatpush.msra.mxu0 0.0
        %3736 = vmatpush.msra.mxu0 0.0
        %3737 = vmatpush.msra.mxu0 0.0
        %3738 = vmatpush.msra.mxu0 0.0
        %3739 = vmatpush.msra.mxu0 0.0
        %3740 = vmatpush.msra.mxu0 0.0
        %3741 = vmatpush.msra.mxu0 0.0
        %3742 = vmatpush.msra.mxu0 0.0
        %3743 = vmatpush.msra.mxu0 0.0
        %3744 = vmatpush.msra.mxu0 0.0
        %3745 = vmatpush.msra.mxu0 0.0
        %v3746 = vand.u32 %v3345, 4294901760
        %v3747 = vsub.f32 %v3345, %v3746
        %3748 = vmatpush.msra.mxu0 %v3747
        %v3749 = vand.u32 %v3385, 4294901760
        %v3750 = vsub.f32 %v3385, %v3749
        %3751 = vmatmul.f32.gmra.mxu0 %v3750
        %v3752 = vpop.f32.mrf.mxu0
        %v3753 = vadd.f32 %v3729, %v3752
        %3754 = vdwg.mxu0
        %3755 = vmatpush.msra.mxu0 0.0
        %3756 = vmatpush.msra.mxu0 0.0
        %3757 = vmatpush.msra.mxu0 0.0
        %3758 = vmatpush.msra.mxu0 0.0
        %3759 = vmatpush.msra.mxu0 0.0
        %3760 = vmatpush.msra.mxu0 0.0
        %3761 = vmatpush.msra.mxu0 0.0
        %3762 = vmatpush.msra.mxu0 0.0
        %3763 = vmatpush.msra.mxu0 0.0
        %3764 = vmatpush.msra.mxu0 0.0
        %3765 = vmatpush.msra.mxu0 0.0
        %3766 = vmatpush.msra.mxu0 0.0
        %3767 = vmatpush.msra.mxu0 0.0
        %3768 = vmatpush.msra.mxu0 0.0
        %3769 = vmatpush.msra.mxu0 0.0
        %v3770 = vand.u32 %v3345, 4294901760
        %3771 = vmatpush.msra.mxu0 %v3770
        %v3772 = vand.u32 %v3385, 4294901760
        %v3773 = vsub.f32 %v3385, %v3772
        %v3774 = vand.u32 %v3773, 4294901760
        %3775 = vmatmul.f32.gmra.mxu0 %v3774
        %v3776 = vpop.f32.mrf.mxu0
        %v3777 = vadd.f32 %v3753, %v3776
        %3778 = vdwg.mxu0
        %3779 = vmatpush.msra.mxu0 0.0
        %3780 = vmatpush.msra.mxu0 0.0
        %3781 = vmatpush.msra.mxu0 0.0
        %3782 = vmatpush.msra.mxu0 0.0
        %3783 = vmatpush.msra.mxu0 0.0
        %3784 = vmatpush.msra.mxu0 0.0
        %3785 = vmatpush.msra.mxu0 0.0
        %3786 = vmatpush.msra.mxu0 0.0
        %3787 = vmatpush.msra.mxu0 0.0
        %3788 = vmatpush.msra.mxu0 0.0
        %3789 = vmatpush.msra.mxu0 0.0
        %3790 = vmatpush.msra.mxu0 0.0
        %3791 = vmatpush.msra.mxu0 0.0
        %3792 = vmatpush.msra.mxu0 0.0
        %3793 = vmatpush.msra.mxu0 0.0
        %v3794 = vand.u32 %v3345, 4294901760
        %v3795 = vsub.f32 %v3345, %v3794
        %v3796 = vand.u32 %v3795, 4294901760
        %3797 = vmatpush.msra.mxu0 %v3796
        %v3798 = vand.u32 %v3385, 4294901760
        %3799 = vmatmul.f32.gmra.mxu0 %v3798
        %v3800 = vpop.f32.mrf.mxu0
        %v3801 = vadd.f32 %v3777, %v3800
        %3802 = vdwg.mxu0
        %3803 = vmatpush.msra.mxu0 0.0
        %3804 = vmatpush.msra.mxu0 0.0
        %3805 = vmatpush.msra.mxu0 0.0
        %3806 = vmatpush.msra.mxu0 0.0
        %3807 = vmatpush.msra.mxu0 0.0
        %3808 = vmatpush.msra.mxu0 0.0
        %3809 = vmatpush.msra.mxu0 0.0
        %3810 = vmatpush.msra.mxu0 0.0
        %3811 = vmatpush.msra.mxu0 0.0
        %3812 = vmatpush.msra.mxu0 0.0
        %3813 = vmatpush.msra.mxu0 0.0
        %3814 = vmatpush.msra.mxu0 0.0
        %3815 = vmatpush.msra.mxu0 0.0
        %3816 = vmatpush.msra.mxu0 0.0
        %3817 = vmatpush.msra.mxu0 0.0
        %v3818 = vand.u32 %v3345, 4294901760
        %3819 = vmatpush.msra.mxu0 %v3818
        %v3820 = vand.u32 %v3385, 4294901760
        %3821 = vmatmul.f32.gmra.mxu0 %v3820
        %v3822 = vpop.f32.mrf.mxu0
        %v3823 = vadd.f32 %v3801, %v3822
        %3824 = vdwg.mxu0
        %3825 = vmatpush.msra.mxu0 0.0
        %3826 = vmatpush.msra.mxu0 0.0
        %3827 = vmatpush.msra.mxu0 0.0
        %3828 = vmatpush.msra.mxu0 0.0
        %3829 = vmatpush.msra.mxu0 0.0
        %3830 = vmatpush.msra.mxu0 0.0
        %3831 = vmatpush.msra.mxu0 0.0
        %3832 = vmatpush.msra.mxu0 0.0
        %3833 = vmatpush.msra.mxu0 0.0
        %3834 = vmatpush.msra.mxu0 0.0
        %3835 = vmatpush.msra.mxu0 0.0
        %3836 = vmatpush.msra.mxu0 0.0
        %3837 = vmatpush.msra.mxu0 0.0
        %3838 = vmatpush.msra.mxu0 0.0
        %3839 = vmatpush.msra.mxu0 0.0
        %v3840 = vand.u32 %v3346, 4294901760
        %3841 = vmatpush.msra.mxu0 %v3840
        %v3842 = vand.u32 %v3385, 4294901760
        %v3843 = vsub.f32 %v3385, %v3842
        %v3844 = vand.u32 %v3843, 4294901760
        %v3845 = vsub.f32 %v3843, %v3844
        %v3846 = vand.u32 %v3845, 4294901760
        %3847 = vmatmul.f32.gmra.mxu0 %v3846
        %v3848 = vpop.f32.mrf.mxu0
        %v3849 = vadd.f32 %v3382, %v3848
        %3850 = vdwg.mxu0
        %3851 = vmatpush.msra.mxu0 0.0
        %3852 = vmatpush.msra.mxu0 0.0
        %3853 = vmatpush.msra.mxu0 0.0
        %3854 = vmatpush.msra.mxu0 0.0
        %3855 = vmatpush.msra.mxu0 0.0
        %3856 = vmatpush.msra.mxu0 0.0
        %3857 = vmatpush.msra.mxu0 0.0
        %3858 = vmatpush.msra.mxu0 0.0
        %3859 = vmatpush.msra.mxu0 0.0
        %3860 = vmatpush.msra.mxu0 0.0
        %3861 = vmatpush.msra.mxu0 0.0
        %3862 = vmatpush.msra.mxu0 0.0
        %3863 = vmatpush.msra.mxu0 0.0
        %3864 = vmatpush.msra.mxu0 0.0
        %3865 = vmatpush.msra.mxu0 0.0
        %v3866 = vand.u32 %v3346, 4294901760
        %v3867 = vsub.f32 %v3346, %v3866
        %v3868 = vand.u32 %v3867, 4294901760
        %v3869 = vsub.f32 %v3867, %v3868
        %v3870 = vand.u32 %v3869, 4294901760
        %3871 = vmatpush.msra.mxu0 %v3870
        %v3872 = vand.u32 %v3385, 4294901760
        %3873 = vmatmul.f32.gmra.mxu0 %v3872
        %v3874 = vpop.f32.mrf.mxu0
        %v3875 = vadd.f32 %v3849, %v3874
        %3876 = vdwg.mxu0
        %3877 = vmatpush.msra.mxu0 0.0
        %3878 = vmatpush.msra.mxu0 0.0
        %3879 = vmatpush.msra.mxu0 0.0
        %3880 = vmatpush.msra.mxu0 0.0
        %3881 = vmatpush.msra.mxu0 0.0
        %3882 = vmatpush.msra.mxu0 0.0
        %3883 = vmatpush.msra.mxu0 0.0
        %3884 = vmatpush.msra.mxu0 0.0
        %3885 = vmatpush.msra.mxu0 0.0
        %3886 = vmatpush.msra.mxu0 0.0
        %3887 = vmatpush.msra.mxu0 0.0
        %3888 = vmatpush.msra.mxu0 0.0
        %3889 = vmatpush.msra.mxu0 0.0
        %3890 = vmatpush.msra.mxu0 0.0
        %3891 = vmatpush.msra.mxu0 0.0
        %v3892 = vand.u32 %v3346, 4294901760
        %v3893 = vsub.f32 %v3346, %v3892
        %3894 = vmatpush.msra.mxu0 %v3893
        %v3895 = vand.u32 %v3385, 4294901760
        %v3896 = vsub.f32 %v3385, %v3895
        %3897 = vmatmul.f32.gmra.mxu0 %v3896
        %v3898 = vpop.f32.mrf.mxu0
        %v3899 = vadd.f32 %v3875, %v3898
        %3900 = vdwg.mxu0
        %3901 = vmatpush.msra.mxu0 0.0
        %3902 = vmatpush.msra.mxu0 0.0
        %3903 = vmatpush.msra.mxu0 0.0
        %3904 = vmatpush.msra.mxu0 0.0
        %3905 = vmatpush.msra.mxu0 0.0
        %3906 = vmatpush.msra.mxu0 0.0
        %3907 = vmatpush.msra.mxu0 0.0
        %3908 = vmatpush.msra.mxu0 0.0
        %3909 = vmatpush.msra.mxu0 0.0
        %3910 = vmatpush.msra.mxu0 0.0
        %3911 = vmatpush.msra.mxu0 0.0
        %3912 = vmatpush.msra.mxu0 0.0
        %3913 = vmatpush.msra.mxu0 0.0
        %3914 = vmatpush.msra.mxu0 0.0
        %3915 = vmatpush.msra.mxu0 0.0
        %v3916 = vand.u32 %v3346, 4294901760
        %3917 = vmatpush.msra.mxu0 %v3916
        %v3918 = vand.u32 %v3385, 4294901760
        %v3919 = vsub.f32 %v3385, %v3918
        %v3920 = vand.u32 %v3919, 4294901760
        %3921 = vmatmul.f32.gmra.mxu0 %v3920
        %v3922 = vpop.f32.mrf.mxu0
        %v3923 = vadd.f32 %v3899, %v3922
        %3924 = vdwg.mxu0
        %3925 = vmatpush.msra.mxu0 0.0
        %3926 = vmatpush.msra.mxu0 0.0
        %3927 = vmatpush.msra.mxu0 0.0
        %3928 = vmatpush.msra.mxu0 0.0
        %3929 = vmatpush.msra.mxu0 0.0
        %3930 = vmatpush.msra.mxu0 0.0
        %3931 = vmatpush.msra.mxu0 0.0
        %3932 = vmatpush.msra.mxu0 0.0
        %3933 = vmatpush.msra.mxu0 0.0
        %3934 = vmatpush.msra.mxu0 0.0
        %3935 = vmatpush.msra.mxu0 0.0
        %3936 = vmatpush.msra.mxu0 0.0
        %3937 = vmatpush.msra.mxu0 0.0
        %3938 = vmatpush.msra.mxu0 0.0
        %3939 = vmatpush.msra.mxu0 0.0
        %v3940 = vand.u32 %v3346, 4294901760
        %v3941 = vsub.f32 %v3346, %v3940
        %v3942 = vand.u32 %v3941, 4294901760
        %3943 = vmatpush.msra.mxu0 %v3942
        %v3944 = vand.u32 %v3385, 4294901760
        %3945 = vmatmul.f32.gmra.mxu0 %v3944
        %v3946 = vpop.f32.mrf.mxu0
        %v3947 = vadd.f32 %v3923, %v3946
        %3948 = vdwg.mxu0
        %3949 = vmatpush.msra.mxu0 0.0
        %3950 = vmatpush.msra.mxu0 0.0
        %3951 = vmatpush.msra.mxu0 0.0
        %3952 = vmatpush.msra.mxu0 0.0
        %3953 = vmatpush.msra.mxu0 0.0
        %3954 = vmatpush.msra.mxu0 0.0
        %3955 = vmatpush.msra.mxu0 0.0
        %3956 = vmatpush.msra.mxu0 0.0
        %3957 = vmatpush.msra.mxu0 0.0
        %3958 = vmatpush.msra.mxu0 0.0
        %3959 = vmatpush.msra.mxu0 0.0
        %3960 = vmatpush.msra.mxu0 0.0
        %3961 = vmatpush.msra.mxu0 0.0
        %3962 = vmatpush.msra.mxu0 0.0
        %3963 = vmatpush.msra.mxu0 0.0
        %v3964 = vand.u32 %v3346, 4294901760
        %3965 = vmatpush.msra.mxu0 %v3964
        %v3966 = vand.u32 %v3385, 4294901760
        %3967 = vmatmul.f32.gmra.mxu0 %v3966
        %v3968 = vpop.f32.mrf.mxu0
        %v3969 = vadd.f32 %v3947, %v3968
        %3970 = vdwg.mxu0
        %3971 = vmatpush.msra.mxu0 0.0
        %3972 = vmatpush.msra.mxu0 0.0
        %3973 = vmatpush.msra.mxu0 0.0
        %3974 = vmatpush.msra.mxu0 0.0
        %3975 = vmatpush.msra.mxu0 0.0
        %3976 = vmatpush.msra.mxu0 0.0
        %3977 = vmatpush.msra.mxu0 0.0
        %3978 = vmatpush.msra.mxu0 0.0
        %3979 = vmatpush.msra.mxu0 0.0
        %3980 = vmatpush.msra.mxu0 0.0
        %3981 = vmatpush.msra.mxu0 0.0
        %3982 = vmatpush.msra.mxu0 0.0
        %3983 = vmatpush.msra.mxu0 0.0
        %3984 = vmatpush.msra.mxu0 0.0
        %3985 = vmatpush.msra.mxu0 0.0
        %v3986 = vand.u32 %v3347, 4294901760
        %3987 = vmatpush.msra.mxu0 %v3986
        %v3988 = vand.u32 %v3385, 4294901760
        %v3989 = vsub.f32 %v3385, %v3988
        %v3990 = vand.u32 %v3989, 4294901760
        %v3991 = vsub.f32 %v3989, %v3990
        %v3992 = vand.u32 %v3991, 4294901760
        %3993 = vmatmul.f32.gmra.mxu0 %v3992
        %v3994 = vpop.f32.mrf.mxu0
        %v3995 = vadd.f32 %v3382, %v3994
        %3996 = vdwg.mxu0
        %3997 = vmatpush.msra.mxu0 0.0
        %3998 = vmatpush.msra.mxu0 0.0
        %3999 = vmatpush.msra.mxu0 0.0
        %4000 = vmatpush.msra.mxu0 0.0
        %4001 = vmatpush.msra.mxu0 0.0
        %4002 = vmatpush.msra.mxu0 0.0
        %4003 = vmatpush.msra.mxu0 0.0
        %4004 = vmatpush.msra.mxu0 0.0
        %4005 = vmatpush.msra.mxu0 0.0
        %4006 = vmatpush.msra.mxu0 0.0
        %4007 = vmatpush.msra.mxu0 0.0
        %4008 = vmatpush.msra.mxu0 0.0
        %4009 = vmatpush.msra.mxu0 0.0
        %4010 = vmatpush.msra.mxu0 0.0
        %4011 = vmatpush.msra.mxu0 0.0
        %v4012 = vand.u32 %v3347, 4294901760
        %v4013 = vsub.f32 %v3347, %v4012
        %v4014 = vand.u32 %v4013, 4294901760
        %v4015 = vsub.f32 %v4013, %v4014
        %v4016 = vand.u32 %v4015, 4294901760
        %4017 = vmatpush.msra.mxu0 %v4016
        %v4018 = vand.u32 %v3385, 4294901760
        %4019 = vmatmul.f32.gmra.mxu0 %v4018
        %v4020 = vpop.f32.mrf.mxu0
        %v4021 = vadd.f32 %v3995, %v4020
        %4022 = vdwg.mxu0
        %4023 = vmatpush.msra.mxu0 0.0
        %4024 = vmatpush.msra.mxu0 0.0
        %4025 = vmatpush.msra.mxu0 0.0
        %4026 = vmatpush.msra.mxu0 0.0
        %4027 = vmatpush.msra.mxu0 0.0
        %4028 = vmatpush.msra.mxu0 0.0
        %4029 = vmatpush.msra.mxu0 0.0
        %4030 = vmatpush.msra.mxu0 0.0
        %4031 = vmatpush.msra.mxu0 0.0
        %4032 = vmatpush.msra.mxu0 0.0
        %4033 = vmatpush.msra.mxu0 0.0
        %4034 = vmatpush.msra.mxu0 0.0
        %4035 = vmatpush.msra.mxu0 0.0
        %4036 = vmatpush.msra.mxu0 0.0
        %4037 = vmatpush.msra.mxu0 0.0
        %v4038 = vand.u32 %v3347, 4294901760
        %v4039 = vsub.f32 %v3347, %v4038
        %4040 = vmatpush.msra.mxu0 %v4039
        %v4041 = vand.u32 %v3385, 4294901760
        %v4042 = vsub.f32 %v3385, %v4041
        %4043 = vmatmul.f32.gmra.mxu0 %v4042
        %v4044 = vpop.f32.mrf.mxu0
        %v4045 = vadd.f32 %v4021, %v4044
        %4046 = vdwg.mxu0
        %4047 = vmatpush.msra.mxu0 0.0
        %4048 = vmatpush.msra.mxu0 0.0
        %4049 = vmatpush.msra.mxu0 0.0
        %4050 = vmatpush.msra.mxu0 0.0
        %4051 = vmatpush.msra.mxu0 0.0
        %4052 = vmatpush.msra.mxu0 0.0
        %4053 = vmatpush.msra.mxu0 0.0
        %4054 = vmatpush.msra.mxu0 0.0
        %4055 = vmatpush.msra.mxu0 0.0
        %4056 = vmatpush.msra.mxu0 0.0
        %4057 = vmatpush.msra.mxu0 0.0
        %4058 = vmatpush.msra.mxu0 0.0
        %4059 = vmatpush.msra.mxu0 0.0
        %4060 = vmatpush.msra.mxu0 0.0
        %4061 = vmatpush.msra.mxu0 0.0
        %v4062 = vand.u32 %v3347, 4294901760
        %4063 = vmatpush.msra.mxu0 %v4062
        %v4064 = vand.u32 %v3385, 4294901760
        %v4065 = vsub.f32 %v3385, %v4064
        %v4066 = vand.u32 %v4065, 4294901760
        %4067 = vmatmul.f32.gmra.mxu0 %v4066
        %v4068 = vpop.f32.mrf.mxu0
        %v4069 = vadd.f32 %v4045, %v4068
        %4070 = vdwg.mxu0
        %4071 = vmatpush.msra.mxu0 0.0
        %4072 = vmatpush.msra.mxu0 0.0
        %4073 = vmatpush.msra.mxu0 0.0
        %4074 = vmatpush.msra.mxu0 0.0
        %4075 = vmatpush.msra.mxu0 0.0
        %4076 = vmatpush.msra.mxu0 0.0
        %4077 = vmatpush.msra.mxu0 0.0
        %4078 = vmatpush.msra.mxu0 0.0
        %4079 = vmatpush.msra.mxu0 0.0
        %4080 = vmatpush.msra.mxu0 0.0
        %4081 = vmatpush.msra.mxu0 0.0
        %4082 = vmatpush.msra.mxu0 0.0
        %4083 = vmatpush.msra.mxu0 0.0
        %4084 = vmatpush.msra.mxu0 0.0
        %4085 = vmatpush.msra.mxu0 0.0
        %v4086 = vand.u32 %v3347, 4294901760
        %v4087 = vsub.f32 %v3347, %v4086
        %v4088 = vand.u32 %v4087, 4294901760
        %4089 = vmatpush.msra.mxu0 %v4088
        %v4090 = vand.u32 %v3385, 4294901760
        %4091 = vmatmul.f32.gmra.mxu0 %v4090
        %v4092 = vpop.f32.mrf.mxu0
        %v4093 = vadd.f32 %v4069, %v4092
        %4094 = vdwg.mxu0
        %4095 = vmatpush.msra.mxu0 0.0
        %4096 = vmatpush.msra.mxu0 0.0
        %4097 = vmatpush.msra.mxu0 0.0
        %4098 = vmatpush.msra.mxu0 0.0
        %4099 = vmatpush.msra.mxu0 0.0
        %4100 = vmatpush.msra.mxu0 0.0
        %4101 = vmatpush.msra.mxu0 0.0
        %4102 = vmatpush.msra.mxu0 0.0
        %4103 = vmatpush.msra.mxu0 0.0
        %4104 = vmatpush.msra.mxu0 0.0
        %4105 = vmatpush.msra.mxu0 0.0
        %4106 = vmatpush.msra.mxu0 0.0
        %4107 = vmatpush.msra.mxu0 0.0
        %4108 = vmatpush.msra.mxu0 0.0
        %4109 = vmatpush.msra.mxu0 0.0
        %v4110 = vand.u32 %v3347, 4294901760
        %4111 = vmatpush.msra.mxu0 %v4110
        %v4112 = vand.u32 %v3385, 4294901760
        %4113 = vmatmul.f32.gmra.mxu0 %v4112
        %v4114 = vpop.f32.mrf.mxu0
        %v4115 = vadd.f32 %v4093, %v4114
        %4116 = vdwg.mxu0
        %4117 = vmatpush.msra.mxu0 0.0
        %4118 = vmatpush.msra.mxu0 0.0
        %4119 = vmatpush.msra.mxu0 0.0
        %4120 = vmatpush.msra.mxu0 0.0
        %4121 = vmatpush.msra.mxu0 0.0
        %4122 = vmatpush.msra.mxu0 0.0
        %4123 = vmatpush.msra.mxu0 0.0
        %4124 = vmatpush.msra.mxu0 0.0
        %4125 = vmatpush.msra.mxu0 0.0
        %4126 = vmatpush.msra.mxu0 0.0
        %4127 = vmatpush.msra.mxu0 0.0
        %4128 = vmatpush.msra.mxu0 0.0
        %4129 = vmatpush.msra.mxu0 0.0
        %4130 = vmatpush.msra.mxu0 0.0
        %4131 = vmatpush.msra.mxu0 0.0
        %v4132 = vand.u32 %v3348, 4294901760
        %4133 = vmatpush.msra.mxu0 %v4132
        %v4134 = vand.u32 %v3385, 4294901760
        %v4135 = vsub.f32 %v3385, %v4134
        %v4136 = vand.u32 %v4135, 4294901760
        %v4137 = vsub.f32 %v4135, %v4136
        %v4138 = vand.u32 %v4137, 4294901760
        %4139 = vmatmul.f32.gmra.mxu0 %v4138
        %v4140 = vpop.f32.mrf.mxu0
        %v4141 = vadd.f32 %v3382, %v4140
        %4142 = vdwg.mxu0
        %4143 = vmatpush.msra.mxu0 0.0
        %4144 = vmatpush.msra.mxu0 0.0
        %4145 = vmatpush.msra.mxu0 0.0
        %4146 = vmatpush.msra.mxu0 0.0
        %4147 = vmatpush.msra.mxu0 0.0
        %4148 = vmatpush.msra.mxu0 0.0
        %4149 = vmatpush.msra.mxu0 0.0
        %4150 = vmatpush.msra.mxu0 0.0
        %4151 = vmatpush.msra.mxu0 0.0
        %4152 = vmatpush.msra.mxu0 0.0
        %4153 = vmatpush.msra.mxu0 0.0
        %4154 = vmatpush.msra.mxu0 0.0
        %4155 = vmatpush.msra.mxu0 0.0
        %4156 = vmatpush.msra.mxu0 0.0
        %4157 = vmatpush.msra.mxu0 0.0
        %v4158 = vand.u32 %v3348, 4294901760
        %v4159 = vsub.f32 %v3348, %v4158
        %v4160 = vand.u32 %v4159, 4294901760
        %v4161 = vsub.f32 %v4159, %v4160
        %v4162 = vand.u32 %v4161, 4294901760
        %4163 = vmatpush.msra.mxu0 %v4162
        %v4164 = vand.u32 %v3385, 4294901760
        %4165 = vmatmul.f32.gmra.mxu0 %v4164
        %v4166 = vpop.f32.mrf.mxu0
        %v4167 = vadd.f32 %v4141, %v4166
        %4168 = vdwg.mxu0
        %4169 = vmatpush.msra.mxu0 0.0
        %4170 = vmatpush.msra.mxu0 0.0
        %4171 = vmatpush.msra.mxu0 0.0
        %4172 = vmatpush.msra.mxu0 0.0
        %4173 = vmatpush.msra.mxu0 0.0
        %4174 = vmatpush.msra.mxu0 0.0
        %4175 = vmatpush.msra.mxu0 0.0
        %4176 = vmatpush.msra.mxu0 0.0
        %4177 = vmatpush.msra.mxu0 0.0
        %4178 = vmatpush.msra.mxu0 0.0
        %4179 = vmatpush.msra.mxu0 0.0
        %4180 = vmatpush.msra.mxu0 0.0
        %4181 = vmatpush.msra.mxu0 0.0
        %4182 = vmatpush.msra.mxu0 0.0
        %4183 = vmatpush.msra.mxu0 0.0
        %v4184 = vand.u32 %v3348, 4294901760
        %v4185 = vsub.f32 %v3348, %v4184
        %4186 = vmatpush.msra.mxu0 %v4185
        %v4187 = vand.u32 %v3385, 4294901760
        %v4188 = vsub.f32 %v3385, %v4187
        %4189 = vmatmul.f32.gmra.mxu0 %v4188
        %v4190 = vpop.f32.mrf.mxu0
        %v4191 = vadd.f32 %v4167, %v4190
        %4192 = vdwg.mxu0
        %4193 = vmatpush.msra.mxu0 0.0
        %4194 = vmatpush.msra.mxu0 0.0
        %4195 = vmatpush.msra.mxu0 0.0
        %4196 = vmatpush.msra.mxu0 0.0
        %4197 = vmatpush.msra.mxu0 0.0
        %4198 = vmatpush.msra.mxu0 0.0
        %4199 = vmatpush.msra.mxu0 0.0
        %4200 = vmatpush.msra.mxu0 0.0
        %4201 = vmatpush.msra.mxu0 0.0
        %4202 = vmatpush.msra.mxu0 0.0
        %4203 = vmatpush.msra.mxu0 0.0
        %4204 = vmatpush.msra.mxu0 0.0
        %4205 = vmatpush.msra.mxu0 0.0
        %4206 = vmatpush.msra.mxu0 0.0
        %4207 = vmatpush.msra.mxu0 0.0
        %v4208 = vand.u32 %v3348, 4294901760
        %4209 = vmatpush.msra.mxu0 %v4208
        %v4210 = vand.u32 %v3385, 4294901760
        %v4211 = vsub.f32 %v3385, %v4210
        %v4212 = vand.u32 %v4211, 4294901760
        %4213 = vmatmul.f32.gmra.mxu0 %v4212
        %v4214 = vpop.f32.mrf.mxu0
        %v4215 = vadd.f32 %v4191, %v4214
        %4216 = vdwg.mxu0
        %4217 = vmatpush.msra.mxu0 0.0
        %4218 = vmatpush.msra.mxu0 0.0
        %4219 = vmatpush.msra.mxu0 0.0
        %4220 = vmatpush.msra.mxu0 0.0
        %4221 = vmatpush.msra.mxu0 0.0
        %4222 = vmatpush.msra.mxu0 0.0
        %4223 = vmatpush.msra.mxu0 0.0
        %4224 = vmatpush.msra.mxu0 0.0
        %4225 = vmatpush.msra.mxu0 0.0
        %4226 = vmatpush.msra.mxu0 0.0
        %4227 = vmatpush.msra.mxu0 0.0
        %4228 = vmatpush.msra.mxu0 0.0
        %4229 = vmatpush.msra.mxu0 0.0
        %4230 = vmatpush.msra.mxu0 0.0
        %4231 = vmatpush.msra.mxu0 0.0
        %v4232 = vand.u32 %v3348, 4294901760
        %v4233 = vsub.f32 %v3348, %v4232
        %v4234 = vand.u32 %v4233, 4294901760
        %4235 = vmatpush.msra.mxu0 %v4234
        %v4236 = vand.u32 %v3385, 4294901760
        %4237 = vmatmul.f32.gmra.mxu0 %v4236
        %v4238 = vpop.f32.mrf.mxu0
        %v4239 = vadd.f32 %v4215, %v4238
        %4240 = vdwg.mxu0
        %4241 = vmatpush.msra.mxu0 0.0
        %4242 = vmatpush.msra.mxu0 0.0
        %4243 = vmatpush.msra.mxu0 0.0
        %4244 = vmatpush.msra.mxu0 0.0
        %4245 = vmatpush.msra.mxu0 0.0
        %4246 = vmatpush.msra.mxu0 0.0
        %4247 = vmatpush.msra.mxu0 0.0
        %4248 = vmatpush.msra.mxu0 0.0
        %4249 = vmatpush.msra.mxu0 0.0
        %4250 = vmatpush.msra.mxu0 0.0
        %4251 = vmatpush.msra.mxu0 0.0
        %4252 = vmatpush.msra.mxu0 0.0
        %4253 = vmatpush.msra.mxu0 0.0
        %4254 = vmatpush.msra.mxu0 0.0
        %4255 = vmatpush.msra.mxu0 0.0
        %v4256 = vand.u32 %v3348, 4294901760
        %4257 = vmatpush.msra.mxu0 %v4256
        %v4258 = vand.u32 %v3385, 4294901760
        %4259 = vmatmul.f32.gmra.mxu0 %v4258
        %v4260 = vpop.f32.mrf.mxu0
        %v4261 = vadd.f32 %v4239, %v4260
        %4262 = vdwg.mxu0
        %4263 = vmatpush.msra.mxu0 0.0
        %4264 = vmatpush.msra.mxu0 0.0
        %4265 = vmatpush.msra.mxu0 0.0
        %4266 = vmatpush.msra.mxu0 0.0
        %4267 = vmatpush.msra.mxu0 0.0
        %4268 = vmatpush.msra.mxu0 0.0
        %4269 = vmatpush.msra.mxu0 0.0
        %4270 = vmatpush.msra.mxu0 0.0
        %4271 = vmatpush.msra.mxu0 0.0
        %4272 = vmatpush.msra.mxu0 0.0
        %4273 = vmatpush.msra.mxu0 0.0
        %4274 = vmatpush.msra.mxu0 0.0
        %4275 = vmatpush.msra.mxu0 0.0
        %4276 = vmatpush.msra.mxu0 0.0
        %4277 = vmatpush.msra.mxu0 0.0
        %v4278 = vand.u32 %v3349, 4294901760
        %4279 = vmatpush.msra.mxu0 %v4278
        %v4280 = vand.u32 %v3385, 4294901760
        %v4281 = vsub.f32 %v3385, %v4280
        %v4282 = vand.u32 %v4281, 4294901760
        %v4283 = vsub.f32 %v4281, %v4282
        %v4284 = vand.u32 %v4283, 4294901760
        %4285 = vmatmul.f32.gmra.mxu0 %v4284
        %v4286 = vpop.f32.mrf.mxu0
        %v4287 = vadd.f32 %v3382, %v4286
        %4288 = vdwg.mxu0
        %4289 = vmatpush.msra.mxu0 0.0
        %4290 = vmatpush.msra.mxu0 0.0
        %4291 = vmatpush.msra.mxu0 0.0
        %4292 = vmatpush.msra.mxu0 0.0
        %4293 = vmatpush.msra.mxu0 0.0
        %4294 = vmatpush.msra.mxu0 0.0
        %4295 = vmatpush.msra.mxu0 0.0
        %4296 = vmatpush.msra.mxu0 0.0
        %4297 = vmatpush.msra.mxu0 0.0
        %4298 = vmatpush.msra.mxu0 0.0
        %4299 = vmatpush.msra.mxu0 0.0
        %4300 = vmatpush.msra.mxu0 0.0
        %4301 = vmatpush.msra.mxu0 0.0
        %4302 = vmatpush.msra.mxu0 0.0
        %4303 = vmatpush.msra.mxu0 0.0
        %v4304 = vand.u32 %v3349, 4294901760
        %v4305 = vsub.f32 %v3349, %v4304
        %v4306 = vand.u32 %v4305, 4294901760
        %v4307 = vsub.f32 %v4305, %v4306
        %v4308 = vand.u32 %v4307, 4294901760
        %4309 = vmatpush.msra.mxu0 %v4308
        %v4310 = vand.u32 %v3385, 4294901760
        %4311 = vmatmul.f32.gmra.mxu0 %v4310
        %v4312 = vpop.f32.mrf.mxu0
        %v4313 = vadd.f32 %v4287, %v4312
        %4314 = vdwg.mxu0
        %4315 = vmatpush.msra.mxu0 0.0
        %4316 = vmatpush.msra.mxu0 0.0
        %4317 = vmatpush.msra.mxu0 0.0
        %4318 = vmatpush.msra.mxu0 0.0
        %4319 = vmatpush.msra.mxu0 0.0
        %4320 = vmatpush.msra.mxu0 0.0
        %4321 = vmatpush.msra.mxu0 0.0
        %4322 = vmatpush.msra.mxu0 0.0
        %4323 = vmatpush.msra.mxu0 0.0
        %4324 = vmatpush.msra.mxu0 0.0
        %4325 = vmatpush.msra.mxu0 0.0
        %4326 = vmatpush.msra.mxu0 0.0
        %4327 = vmatpush.msra.mxu0 0.0
        %4328 = vmatpush.msra.mxu0 0.0
        %4329 = vmatpush.msra.mxu0 0.0
        %v4330 = vand.u32 %v3349, 4294901760
        %v4331 = vsub.f32 %v3349, %v4330
        %4332 = vmatpush.msra.mxu0 %v4331
        %v4333 = vand.u32 %v3385, 4294901760
        %v4334 = vsub.f32 %v3385, %v4333
        %4335 = vmatmul.f32.gmra.mxu0 %v4334
        %v4336 = vpop.f32.mrf.mxu0
        %v4337 = vadd.f32 %v4313, %v4336
        %4338 = vdwg.mxu0
        %4339 = vmatpush.msra.mxu0 0.0
        %4340 = vmatpush.msra.mxu0 0.0
        %4341 = vmatpush.msra.mxu0 0.0
        %4342 = vmatpush.msra.mxu0 0.0
        %4343 = vmatpush.msra.mxu0 0.0
        %4344 = vmatpush.msra.mxu0 0.0
        %4345 = vmatpush.msra.mxu0 0.0
        %4346 = vmatpush.msra.mxu0 0.0
        %4347 = vmatpush.msra.mxu0 0.0
        %4348 = vmatpush.msra.mxu0 0.0
        %4349 = vmatpush.msra.mxu0 0.0
        %4350 = vmatpush.msra.mxu0 0.0
        %4351 = vmatpush.msra.mxu0 0.0
        %4352 = vmatpush.msra.mxu0 0.0
        %4353 = vmatpush.msra.mxu0 0.0
        %v4354 = vand.u32 %v3349, 4294901760
        %4355 = vmatpush.msra.mxu0 %v4354
        %v4356 = vand.u32 %v3385, 4294901760
        %v4357 = vsub.f32 %v3385, %v4356
        %v4358 = vand.u32 %v4357, 4294901760
        %4359 = vmatmul.f32.gmra.mxu0 %v4358
        %v4360 = vpop.f32.mrf.mxu0
        %v4361 = vadd.f32 %v4337, %v4360
        %4362 = vdwg.mxu0
        %4363 = vmatpush.msra.mxu0 0.0
        %4364 = vmatpush.msra.mxu0 0.0
        %4365 = vmatpush.msra.mxu0 0.0
        %4366 = vmatpush.msra.mxu0 0.0
        %4367 = vmatpush.msra.mxu0 0.0
        %4368 = vmatpush.msra.mxu0 0.0
        %4369 = vmatpush.msra.mxu0 0.0
        %4370 = vmatpush.msra.mxu0 0.0
        %4371 = vmatpush.msra.mxu0 0.0
        %4372 = vmatpush.msra.mxu0 0.0
        %4373 = vmatpush.msra.mxu0 0.0
        %4374 = vmatpush.msra.mxu0 0.0
        %4375 = vmatpush.msra.mxu0 0.0
        %4376 = vmatpush.msra.mxu0 0.0
        %4377 = vmatpush.msra.mxu0 0.0
        %v4378 = vand.u32 %v3349, 4294901760
        %v4379 = vsub.f32 %v3349, %v4378
        %v4380 = vand.u32 %v4379, 4294901760
        %4381 = vmatpush.msra.mxu0 %v4380
        %v4382 = vand.u32 %v3385, 4294901760
        %4383 = vmatmul.f32.gmra.mxu0 %v4382
        %v4384 = vpop.f32.mrf.mxu0
        %v4385 = vadd.f32 %v4361, %v4384
        %4386 = vdwg.mxu0
        %4387 = vmatpush.msra.mxu0 0.0
        %4388 = vmatpush.msra.mxu0 0.0
        %4389 = vmatpush.msra.mxu0 0.0
        %4390 = vmatpush.msra.mxu0 0.0
        %4391 = vmatpush.msra.mxu0 0.0
        %4392 = vmatpush.msra.mxu0 0.0
        %4393 = vmatpush.msra.mxu0 0.0
        %4394 = vmatpush.msra.mxu0 0.0
        %4395 = vmatpush.msra.mxu0 0.0
        %4396 = vmatpush.msra.mxu0 0.0
        %4397 = vmatpush.msra.mxu0 0.0
        %4398 = vmatpush.msra.mxu0 0.0
        %4399 = vmatpush.msra.mxu0 0.0
        %4400 = vmatpush.msra.mxu0 0.0
        %4401 = vmatpush.msra.mxu0 0.0
        %v4402 = vand.u32 %v3349, 4294901760
        %4403 = vmatpush.msra.mxu0 %v4402
        %v4404 = vand.u32 %v3385, 4294901760
        %4405 = vmatmul.f32.gmra.mxu0 %v4404
        %v4406 = vpop.f32.mrf.mxu0
        %v4407 = vadd.f32 %v4385, %v4406
        %4408 = vdwg.mxu0
        %4409 = vmatpush.msra.mxu0 0.0
        %4410 = vmatpush.msra.mxu0 0.0
        %4411 = vmatpush.msra.mxu0 0.0
        %4412 = vmatpush.msra.mxu0 0.0
        %4413 = vmatpush.msra.mxu0 0.0
        %4414 = vmatpush.msra.mxu0 0.0
        %4415 = vmatpush.msra.mxu0 0.0
        %4416 = vmatpush.msra.mxu0 0.0
        %4417 = vmatpush.msra.mxu0 0.0
        %4418 = vmatpush.msra.mxu0 0.0
        %4419 = vmatpush.msra.mxu0 0.0
        %4420 = vmatpush.msra.mxu0 0.0
        %4421 = vmatpush.msra.mxu0 0.0
        %4422 = vmatpush.msra.mxu0 0.0
        %4423 = vmatpush.msra.mxu0 0.0
        %v4424 = vand.u32 %v3350, 4294901760
        %4425 = vmatpush.msra.mxu0 %v4424
        %v4426 = vand.u32 %v3385, 4294901760
        %v4427 = vsub.f32 %v3385, %v4426
        %v4428 = vand.u32 %v4427, 4294901760
        %v4429 = vsub.f32 %v4427, %v4428
        %v4430 = vand.u32 %v4429, 4294901760
        %4431 = vmatmul.f32.gmra.mxu0 %v4430
        %v4432 = vpop.f32.mrf.mxu0
        %v4433 = vadd.f32 %v3382, %v4432
        %4434 = vdwg.mxu0
        %4435 = vmatpush.msra.mxu0 0.0
        %4436 = vmatpush.msra.mxu0 0.0
        %4437 = vmatpush.msra.mxu0 0.0
        %4438 = vmatpush.msra.mxu0 0.0
        %4439 = vmatpush.msra.mxu0 0.0
        %4440 = vmatpush.msra.mxu0 0.0
        %4441 = vmatpush.msra.mxu0 0.0
        %4442 = vmatpush.msra.mxu0 0.0
        %4443 = vmatpush.msra.mxu0 0.0
        %4444 = vmatpush.msra.mxu0 0.0
        %4445 = vmatpush.msra.mxu0 0.0
        %4446 = vmatpush.msra.mxu0 0.0
        %4447 = vmatpush.msra.mxu0 0.0
        %4448 = vmatpush.msra.mxu0 0.0
        %4449 = vmatpush.msra.mxu0 0.0
        %v4450 = vand.u32 %v3350, 4294901760
        %v4451 = vsub.f32 %v3350, %v4450
        %v4452 = vand.u32 %v4451, 4294901760
        %v4453 = vsub.f32 %v4451, %v4452
        %v4454 = vand.u32 %v4453, 4294901760
        %4455 = vmatpush.msra.mxu0 %v4454
        %v4456 = vand.u32 %v3385, 4294901760
        %4457 = vmatmul.f32.gmra.mxu0 %v4456
        %v4458 = vpop.f32.mrf.mxu0
        %v4459 = vadd.f32 %v4433, %v4458
        %4460 = vdwg.mxu0
        %4461 = vmatpush.msra.mxu0 0.0
        %4462 = vmatpush.msra.mxu0 0.0
        %4463 = vmatpush.msra.mxu0 0.0
        %4464 = vmatpush.msra.mxu0 0.0
        %4465 = vmatpush.msra.mxu0 0.0
        %4466 = vmatpush.msra.mxu0 0.0
        %4467 = vmatpush.msra.mxu0 0.0
        %4468 = vmatpush.msra.mxu0 0.0
        %4469 = vmatpush.msra.mxu0 0.0
        %4470 = vmatpush.msra.mxu0 0.0
        %4471 = vmatpush.msra.mxu0 0.0
        %4472 = vmatpush.msra.mxu0 0.0
        %4473 = vmatpush.msra.mxu0 0.0
        %4474 = vmatpush.msra.mxu0 0.0
        %4475 = vmatpush.msra.mxu0 0.0
        %v4476 = vand.u32 %v3350, 4294901760
        %v4477 = vsub.f32 %v3350, %v4476
        %4478 = vmatpush.msra.mxu0 %v4477
        %v4479 = vand.u32 %v3385, 4294901760
        %v4480 = vsub.f32 %v3385, %v4479
        %4481 = vmatmul.f32.gmra.mxu0 %v4480
        %v4482 = vpop.f32.mrf.mxu0
        %v4483 = vadd.f32 %v4459, %v4482
        %4484 = vdwg.mxu0
        %4485 = vmatpush.msra.mxu0 0.0
        %4486 = vmatpush.msra.mxu0 0.0
        %4487 = vmatpush.msra.mxu0 0.0
        %4488 = vmatpush.msra.mxu0 0.0
        %4489 = vmatpush.msra.mxu0 0.0
        %4490 = vmatpush.msra.mxu0 0.0
        %4491 = vmatpush.msra.mxu0 0.0
        %4492 = vmatpush.msra.mxu0 0.0
        %4493 = vmatpush.msra.mxu0 0.0
        %4494 = vmatpush.msra.mxu0 0.0
        %4495 = vmatpush.msra.mxu0 0.0
        %4496 = vmatpush.msra.mxu0 0.0
        %4497 = vmatpush.msra.mxu0 0.0
        %4498 = vmatpush.msra.mxu0 0.0
        %4499 = vmatpush.msra.mxu0 0.0
        %v4500 = vand.u32 %v3350, 4294901760
        %4501 = vmatpush.msra.mxu0 %v4500
        %v4502 = vand.u32 %v3385, 4294901760
        %v4503 = vsub.f32 %v3385, %v4502
        %v4504 = vand.u32 %v4503, 4294901760
        %4505 = vmatmul.f32.gmra.mxu0 %v4504
        %v4506 = vpop.f32.mrf.mxu0
        %v4507 = vadd.f32 %v4483, %v4506
        %4508 = vdwg.mxu0
        %4509 = vmatpush.msra.mxu0 0.0
        %4510 = vmatpush.msra.mxu0 0.0
        %4511 = vmatpush.msra.mxu0 0.0
        %4512 = vmatpush.msra.mxu0 0.0
        %4513 = vmatpush.msra.mxu0 0.0
        %4514 = vmatpush.msra.mxu0 0.0
        %4515 = vmatpush.msra.mxu0 0.0
        %4516 = vmatpush.msra.mxu0 0.0
        %4517 = vmatpush.msra.mxu0 0.0
        %4518 = vmatpush.msra.mxu0 0.0
        %4519 = vmatpush.msra.mxu0 0.0
        %4520 = vmatpush.msra.mxu0 0.0
        %4521 = vmatpush.msra.mxu0 0.0
        %4522 = vmatpush.msra.mxu0 0.0
        %4523 = vmatpush.msra.mxu0 0.0
        %v4524 = vand.u32 %v3350, 4294901760
        %v4525 = vsub.f32 %v3350, %v4524
        %v4526 = vand.u32 %v4525, 4294901760
        %4527 = vmatpush.msra.mxu0 %v4526
        %v4528 = vand.u32 %v3385, 4294901760
        %4529 = vmatmul.f32.gmra.mxu0 %v4528
        %v4530 = vpop.f32.mrf.mxu0
        %v4531 = vadd.f32 %v4507, %v4530
        %4532 = vdwg.mxu0
        %4533 = vmatpush.msra.mxu0 0.0
        %4534 = vmatpush.msra.mxu0 0.0
        %4535 = vmatpush.msra.mxu0 0.0
        %4536 = vmatpush.msra.mxu0 0.0
        %4537 = vmatpush.msra.mxu0 0.0
        %4538 = vmatpush.msra.mxu0 0.0
        %4539 = vmatpush.msra.mxu0 0.0
        %4540 = vmatpush.msra.mxu0 0.0
        %4541 = vmatpush.msra.mxu0 0.0
        %4542 = vmatpush.msra.mxu0 0.0
        %4543 = vmatpush.msra.mxu0 0.0
        %4544 = vmatpush.msra.mxu0 0.0
        %4545 = vmatpush.msra.mxu0 0.0
        %4546 = vmatpush.msra.mxu0 0.0
        %4547 = vmatpush.msra.mxu0 0.0
        %v4548 = vand.u32 %v3350, 4294901760
        %4549 = vmatpush.msra.mxu0 %v4548
        %v4550 = vand.u32 %v3385, 4294901760
        %4551 = vmatmul.f32.gmra.mxu0 %v4550
        %v4552 = vpop.f32.mrf.mxu0
        %v4553 = vadd.f32 %v4531, %v4552
        %4554 = vdwg.mxu0
        %4555 = vmatpush.msra.mxu0 0.0
        %4556 = vmatpush.msra.mxu0 0.0
        %4557 = vmatpush.msra.mxu0 0.0
        %4558 = vmatpush.msra.mxu0 0.0
        %4559 = vmatpush.msra.mxu0 0.0
        %4560 = vmatpush.msra.mxu0 0.0
        %4561 = vmatpush.msra.mxu0 0.0
        %4562 = vmatpush.msra.mxu0 0.0
        %4563 = vmatpush.msra.mxu0 0.0
        %4564 = vmatpush.msra.mxu0 0.0
        %4565 = vmatpush.msra.mxu0 0.0
        %4566 = vmatpush.msra.mxu0 0.0
        %4567 = vmatpush.msra.mxu0 0.0
        %4568 = vmatpush.msra.mxu0 0.0
        %4569 = vmatpush.msra.mxu0 0.0
        %v4570 = vand.u32 %v3351, 4294901760
        %4571 = vmatpush.msra.mxu0 %v4570
        %v4572 = vand.u32 %v3385, 4294901760
        %v4573 = vsub.f32 %v3385, %v4572
        %v4574 = vand.u32 %v4573, 4294901760
        %v4575 = vsub.f32 %v4573, %v4574
        %v4576 = vand.u32 %v4575, 4294901760
        %4577 = vmatmul.f32.gmra.mxu0 %v4576
        %v4578 = vpop.f32.mrf.mxu0
        %v4579 = vadd.f32 %v3382, %v4578
        %4580 = vdwg.mxu0
        %4581 = vmatpush.msra.mxu0 0.0
        %4582 = vmatpush.msra.mxu0 0.0
        %4583 = vmatpush.msra.mxu0 0.0
        %4584 = vmatpush.msra.mxu0 0.0
        %4585 = vmatpush.msra.mxu0 0.0
        %4586 = vmatpush.msra.mxu0 0.0
        %4587 = vmatpush.msra.mxu0 0.0
        %4588 = vmatpush.msra.mxu0 0.0
        %4589 = vmatpush.msra.mxu0 0.0
        %4590 = vmatpush.msra.mxu0 0.0
        %4591 = vmatpush.msra.mxu0 0.0
        %4592 = vmatpush.msra.mxu0 0.0
        %4593 = vmatpush.msra.mxu0 0.0
        %4594 = vmatpush.msra.mxu0 0.0
        %4595 = vmatpush.msra.mxu0 0.0
        %v4596 = vand.u32 %v3351, 4294901760
        %v4597 = vsub.f32 %v3351, %v4596
        %v4598 = vand.u32 %v4597, 4294901760
        %v4599 = vsub.f32 %v4597, %v4598
        %v4600 = vand.u32 %v4599, 4294901760
        %4601 = vmatpush.msra.mxu0 %v4600
        %v4602 = vand.u32 %v3385, 4294901760
        %4603 = vmatmul.f32.gmra.mxu0 %v4602
        %v4604 = vpop.f32.mrf.mxu0
        %v4605 = vadd.f32 %v4579, %v4604
        %4606 = vdwg.mxu0
        %4607 = vmatpush.msra.mxu0 0.0
        %4608 = vmatpush.msra.mxu0 0.0
        %4609 = vmatpush.msra.mxu0 0.0
        %4610 = vmatpush.msra.mxu0 0.0
        %4611 = vmatpush.msra.mxu0 0.0
        %4612 = vmatpush.msra.mxu0 0.0
        %4613 = vmatpush.msra.mxu0 0.0
        %4614 = vmatpush.msra.mxu0 0.0
        %4615 = vmatpush.msra.mxu0 0.0
        %4616 = vmatpush.msra.mxu0 0.0
        %4617 = vmatpush.msra.mxu0 0.0
        %4618 = vmatpush.msra.mxu0 0.0
        %4619 = vmatpush.msra.mxu0 0.0
        %4620 = vmatpush.msra.mxu0 0.0
        %4621 = vmatpush.msra.mxu0 0.0
        %v4622 = vand.u32 %v3351, 4294901760
        %v4623 = vsub.f32 %v3351, %v4622
        %4624 = vmatpush.msra.mxu0 %v4623
        %v4625 = vand.u32 %v3385, 4294901760
        %v4626 = vsub.f32 %v3385, %v4625
        %4627 = vmatmul.f32.gmra.mxu0 %v4626
        %v4628 = vpop.f32.mrf.mxu0
        %v4629 = vadd.f32 %v4605, %v4628
        %4630 = vdwg.mxu0
        %4631 = vmatpush.msra.mxu0 0.0
        %4632 = vmatpush.msra.mxu0 0.0
        %4633 = vmatpush.msra.mxu0 0.0
        %4634 = vmatpush.msra.mxu0 0.0
        %4635 = vmatpush.msra.mxu0 0.0
        %4636 = vmatpush.msra.mxu0 0.0
        %4637 = vmatpush.msra.mxu0 0.0
        %4638 = vmatpush.msra.mxu0 0.0
        %4639 = vmatpush.msra.mxu0 0.0
        %4640 = vmatpush.msra.mxu0 0.0
        %4641 = vmatpush.msra.mxu0 0.0
        %4642 = vmatpush.msra.mxu0 0.0
        %4643 = vmatpush.msra.mxu0 0.0
        %4644 = vmatpush.msra.mxu0 0.0
        %4645 = vmatpush.msra.mxu0 0.0
        %v4646 = vand.u32 %v3351, 4294901760
        %4647 = vmatpush.msra.mxu0 %v4646
        %v4648 = vand.u32 %v3385, 4294901760
        %v4649 = vsub.f32 %v3385, %v4648
        %v4650 = vand.u32 %v4649, 4294901760
        %4651 = vmatmul.f32.gmra.mxu0 %v4650
        %v4652 = vpop.f32.mrf.mxu0
        %v4653 = vadd.f32 %v4629, %v4652
        %4654 = vdwg.mxu0
        %4655 = vmatpush.msra.mxu0 0.0
        %4656 = vmatpush.msra.mxu0 0.0
        %4657 = vmatpush.msra.mxu0 0.0
        %4658 = vmatpush.msra.mxu0 0.0
        %4659 = vmatpush.msra.mxu0 0.0
        %4660 = vmatpush.msra.mxu0 0.0
        %4661 = vmatpush.msra.mxu0 0.0
        %4662 = vmatpush.msra.mxu0 0.0
        %4663 = vmatpush.msra.mxu0 0.0
        %4664 = vmatpush.msra.mxu0 0.0
        %4665 = vmatpush.msra.mxu0 0.0
        %4666 = vmatpush.msra.mxu0 0.0
        %4667 = vmatpush.msra.mxu0 0.0
        %4668 = vmatpush.msra.mxu0 0.0
        %4669 = vmatpush.msra.mxu0 0.0
        %v4670 = vand.u32 %v3351, 4294901760
        %v4671 = vsub.f32 %v3351, %v4670
        %v4672 = vand.u32 %v4671, 4294901760
        %4673 = vmatpush.msra.mxu0 %v4672
        %v4674 = vand.u32 %v3385, 4294901760
        %4675 = vmatmul.f32.gmra.mxu0 %v4674
        %v4676 = vpop.f32.mrf.mxu0
        %v4677 = vadd.f32 %v4653, %v4676
        %4678 = vdwg.mxu0
        %4679 = vmatpush.msra.mxu0 0.0
        %4680 = vmatpush.msra.mxu0 0.0
        %4681 = vmatpush.msra.mxu0 0.0
        %4682 = vmatpush.msra.mxu0 0.0
        %4683 = vmatpush.msra.mxu0 0.0
        %4684 = vmatpush.msra.mxu0 0.0
        %4685 = vmatpush.msra.mxu0 0.0
        %4686 = vmatpush.msra.mxu0 0.0
        %4687 = vmatpush.msra.mxu0 0.0
        %4688 = vmatpush.msra.mxu0 0.0
        %4689 = vmatpush.msra.mxu0 0.0
        %4690 = vmatpush.msra.mxu0 0.0
        %4691 = vmatpush.msra.mxu0 0.0
        %4692 = vmatpush.msra.mxu0 0.0
        %4693 = vmatpush.msra.mxu0 0.0
        %v4694 = vand.u32 %v3351, 4294901760
        %4695 = vmatpush.msra.mxu0 %v4694
        %v4696 = vand.u32 %v3385, 4294901760
        %4697 = vmatmul.f32.gmra.mxu0 %v4696
        %v4698 = vpop.f32.mrf.mxu0
        %v4699 = vadd.f32 %v4677, %v4698
        %4700 = vdwg.mxu0
        %4701 = vmatpush.msra.mxu0 0.0
        %4702 = vmatpush.msra.mxu0 0.0
        %4703 = vmatpush.msra.mxu0 0.0
        %4704 = vmatpush.msra.mxu0 0.0
        %4705 = vmatpush.msra.mxu0 0.0
        %4706 = vmatpush.msra.mxu0 0.0
        %4707 = vmatpush.msra.mxu0 0.0
        %4708 = vmatpush.msra.mxu0 0.0
        %4709 = vmatpush.msra.mxu0 0.0
        %4710 = vmatpush.msra.mxu0 0.0
        %4711 = vmatpush.msra.mxu0 0.0
        %4712 = vmatpush.msra.mxu0 0.0
        %4713 = vmatpush.msra.mxu0 0.0
        %4714 = vmatpush.msra.mxu0 0.0
        %4715 = vmatpush.msra.mxu0 0.0
        %v4716 = vand.u32 %v3352, 4294901760
        %4717 = vmatpush.msra.mxu0 %v4716
        %v4718 = vand.u32 %v3385, 4294901760
        %v4719 = vsub.f32 %v3385, %v4718
        %v4720 = vand.u32 %v4719, 4294901760
        %v4721 = vsub.f32 %v4719, %v4720
        %v4722 = vand.u32 %v4721, 4294901760
        %4723 = vmatmul.f32.gmra.mxu0 %v4722
        %v4724 = vpop.f32.mrf.mxu0
        %v4725 = vadd.f32 %v3382, %v4724
        %4726 = vdwg.mxu0
        %4727 = vmatpush.msra.mxu0 0.0
        %4728 = vmatpush.msra.mxu0 0.0
        %4729 = vmatpush.msra.mxu0 0.0
        %4730 = vmatpush.msra.mxu0 0.0
        %4731 = vmatpush.msra.mxu0 0.0
        %4732 = vmatpush.msra.mxu0 0.0
        %4733 = vmatpush.msra.mxu0 0.0
        %4734 = vmatpush.msra.mxu0 0.0
        %4735 = vmatpush.msra.mxu0 0.0
        %4736 = vmatpush.msra.mxu0 0.0
        %4737 = vmatpush.msra.mxu0 0.0
        %4738 = vmatpush.msra.mxu0 0.0
        %4739 = vmatpush.msra.mxu0 0.0
        %4740 = vmatpush.msra.mxu0 0.0
        %4741 = vmatpush.msra.mxu0 0.0
        %v4742 = vand.u32 %v3352, 4294901760
        %v4743 = vsub.f32 %v3352, %v4742
        %v4744 = vand.u32 %v4743, 4294901760
        %v4745 = vsub.f32 %v4743, %v4744
        %v4746 = vand.u32 %v4745, 4294901760
        %4747 = vmatpush.msra.mxu0 %v4746
        %v4748 = vand.u32 %v3385, 4294901760
        %4749 = vmatmul.f32.gmra.mxu0 %v4748
        %v4750 = vpop.f32.mrf.mxu0
        %v4751 = vadd.f32 %v4725, %v4750
        %4752 = vdwg.mxu0
        %4753 = vmatpush.msra.mxu0 0.0
        %4754 = vmatpush.msra.mxu0 0.0
        %4755 = vmatpush.msra.mxu0 0.0
        %4756 = vmatpush.msra.mxu0 0.0
        %4757 = vmatpush.msra.mxu0 0.0
        %4758 = vmatpush.msra.mxu0 0.0
        %4759 = vmatpush.msra.mxu0 0.0
        %4760 = vmatpush.msra.mxu0 0.0
        %4761 = vmatpush.msra.mxu0 0.0
        %4762 = vmatpush.msra.mxu0 0.0
        %4763 = vmatpush.msra.mxu0 0.0
        %4764 = vmatpush.msra.mxu0 0.0
        %4765 = vmatpush.msra.mxu0 0.0
        %4766 = vmatpush.msra.mxu0 0.0
        %4767 = vmatpush.msra.mxu0 0.0
        %v4768 = vand.u32 %v3352, 4294901760
        %v4769 = vsub.f32 %v3352, %v4768
        %4770 = vmatpush.msra.mxu0 %v4769
        %v4771 = vand.u32 %v3385, 4294901760
        %v4772 = vsub.f32 %v3385, %v4771
        %4773 = vmatmul.f32.gmra.mxu0 %v4772
        %v4774 = vpop.f32.mrf.mxu0
        %v4775 = vadd.f32 %v4751, %v4774
        %4776 = vdwg.mxu0
        %4777 = vmatpush.msra.mxu0 0.0
        %4778 = vmatpush.msra.mxu0 0.0
        %4779 = vmatpush.msra.mxu0 0.0
        %4780 = vmatpush.msra.mxu0 0.0
        %4781 = vmatpush.msra.mxu0 0.0
        %4782 = vmatpush.msra.mxu0 0.0
        %4783 = vmatpush.msra.mxu0 0.0
        %4784 = vmatpush.msra.mxu0 0.0
        %4785 = vmatpush.msra.mxu0 0.0
        %4786 = vmatpush.msra.mxu0 0.0
        %4787 = vmatpush.msra.mxu0 0.0
        %4788 = vmatpush.msra.mxu0 0.0
        %4789 = vmatpush.msra.mxu0 0.0
        %4790 = vmatpush.msra.mxu0 0.0
        %4791 = vmatpush.msra.mxu0 0.0
        %v4792 = vand.u32 %v3352, 4294901760
        %4793 = vmatpush.msra.mxu0 %v4792
        %v4794 = vand.u32 %v3385, 4294901760
        %v4795 = vsub.f32 %v3385, %v4794
        %v4796 = vand.u32 %v4795, 4294901760
        %4797 = vmatmul.f32.gmra.mxu0 %v4796
        %v4798 = vpop.f32.mrf.mxu0
        %v4799 = vadd.f32 %v4775, %v4798
        %4800 = vdwg.mxu0
        %4801 = vmatpush.msra.mxu0 0.0
        %4802 = vmatpush.msra.mxu0 0.0
        %4803 = vmatpush.msra.mxu0 0.0
        %4804 = vmatpush.msra.mxu0 0.0
        %4805 = vmatpush.msra.mxu0 0.0
        %4806 = vmatpush.msra.mxu0 0.0
        %4807 = vmatpush.msra.mxu0 0.0
        %4808 = vmatpush.msra.mxu0 0.0
        %4809 = vmatpush.msra.mxu0 0.0
        %4810 = vmatpush.msra.mxu0 0.0
        %4811 = vmatpush.msra.mxu0 0.0
        %4812 = vmatpush.msra.mxu0 0.0
        %4813 = vmatpush.msra.mxu0 0.0
        %4814 = vmatpush.msra.mxu0 0.0
        %4815 = vmatpush.msra.mxu0 0.0
        %v4816 = vand.u32 %v3352, 4294901760
        %v4817 = vsub.f32 %v3352, %v4816
        %v4818 = vand.u32 %v4817, 4294901760
        %4819 = vmatpush.msra.mxu0 %v4818
        %v4820 = vand.u32 %v3385, 4294901760
        %4821 = vmatmul.f32.gmra.mxu0 %v4820
        %v4822 = vpop.f32.mrf.mxu0
        %v4823 = vadd.f32 %v4799, %v4822
        %4824 = vdwg.mxu0
        %4825 = vmatpush.msra.mxu0 0.0
        %4826 = vmatpush.msra.mxu0 0.0
        %4827 = vmatpush.msra.mxu0 0.0
        %4828 = vmatpush.msra.mxu0 0.0
        %4829 = vmatpush.msra.mxu0 0.0
        %4830 = vmatpush.msra.mxu0 0.0
        %4831 = vmatpush.msra.mxu0 0.0
        %4832 = vmatpush.msra.mxu0 0.0
        %4833 = vmatpush.msra.mxu0 0.0
        %4834 = vmatpush.msra.mxu0 0.0
        %4835 = vmatpush.msra.mxu0 0.0
        %4836 = vmatpush.msra.mxu0 0.0
        %4837 = vmatpush.msra.mxu0 0.0
        %4838 = vmatpush.msra.mxu0 0.0
        %4839 = vmatpush.msra.mxu0 0.0
        %v4840 = vand.u32 %v3352, 4294901760
        %4841 = vmatpush.msra.mxu0 %v4840
        %v4842 = vand.u32 %v3385, 4294901760
        %4843 = vmatmul.f32.gmra.mxu0 %v4842
        %v4844 = vpop.f32.mrf.mxu0
        %v4845 = vadd.f32 %v4823, %v4844
        %4846 = vdwg.mxu0
        %4847 = vmatpush.msra.mxu0 0.0
        %4848 = vmatpush.msra.mxu0 0.0
        %4849 = vmatpush.msra.mxu0 0.0
        %4850 = vmatpush.msra.mxu0 0.0
        %4851 = vmatpush.msra.mxu0 0.0
        %4852 = vmatpush.msra.mxu0 0.0
        %4853 = vmatpush.msra.mxu0 0.0
        %4854 = vmatpush.msra.mxu0 0.0
        %4855 = vmatpush.msra.mxu0 0.0
        %4856 = vmatpush.msra.mxu0 0.0
        %4857 = vmatpush.msra.mxu0 0.0
        %4858 = vmatpush.msra.mxu0 0.0
        %4859 = vmatpush.msra.mxu0 0.0
        %4860 = vmatpush.msra.mxu0 0.0
        %4861 = vmatpush.msra.mxu0 0.0
        %v4862 = vand.u32 %v3353, 4294901760
        %4863 = vmatpush.msra.mxu0 %v4862
        %v4864 = vand.u32 %v3385, 4294901760
        %v4865 = vsub.f32 %v3385, %v4864
        %v4866 = vand.u32 %v4865, 4294901760
        %v4867 = vsub.f32 %v4865, %v4866
        %v4868 = vand.u32 %v4867, 4294901760
        %4869 = vmatmul.f32.gmra.mxu0 %v4868
        %v4870 = vpop.f32.mrf.mxu0
        %v4871 = vadd.f32 %v3382, %v4870
        %4872 = vdwg.mxu0
        %4873 = vmatpush.msra.mxu0 0.0
        %4874 = vmatpush.msra.mxu0 0.0
        %4875 = vmatpush.msra.mxu0 0.0
        %4876 = vmatpush.msra.mxu0 0.0
        %4877 = vmatpush.msra.mxu0 0.0
        %4878 = vmatpush.msra.mxu0 0.0
        %4879 = vmatpush.msra.mxu0 0.0
        %4880 = vmatpush.msra.mxu0 0.0
        %4881 = vmatpush.msra.mxu0 0.0
        %4882 = vmatpush.msra.mxu0 0.0
        %4883 = vmatpush.msra.mxu0 0.0
        %4884 = vmatpush.msra.mxu0 0.0
        %4885 = vmatpush.msra.mxu0 0.0
        %4886 = vmatpush.msra.mxu0 0.0
        %4887 = vmatpush.msra.mxu0 0.0
        %v4888 = vand.u32 %v3353, 4294901760
        %v4889 = vsub.f32 %v3353, %v4888
        %v4890 = vand.u32 %v4889, 4294901760
        %v4891 = vsub.f32 %v4889, %v4890
        %v4892 = vand.u32 %v4891, 4294901760
        %4893 = vmatpush.msra.mxu0 %v4892
        %v4894 = vand.u32 %v3385, 4294901760
        %4895 = vmatmul.f32.gmra.mxu0 %v4894
        %v4896 = vpop.f32.mrf.mxu0
        %v4897 = vadd.f32 %v4871, %v4896
        %4898 = vdwg.mxu0
        %4899 = vmatpush.msra.mxu0 0.0
        %4900 = vmatpush.msra.mxu0 0.0
        %4901 = vmatpush.msra.mxu0 0.0
        %4902 = vmatpush.msra.mxu0 0.0
        %4903 = vmatpush.msra.mxu0 0.0
        %4904 = vmatpush.msra.mxu0 0.0
        %4905 = vmatpush.msra.mxu0 0.0
        %4906 = vmatpush.msra.mxu0 0.0
        %4907 = vmatpush.msra.mxu0 0.0
        %4908 = vmatpush.msra.mxu0 0.0
        %4909 = vmatpush.msra.mxu0 0.0
        %4910 = vmatpush.msra.mxu0 0.0
        %4911 = vmatpush.msra.mxu0 0.0
        %4912 = vmatpush.msra.mxu0 0.0
        %4913 = vmatpush.msra.mxu0 0.0
        %v4914 = vand.u32 %v3353, 4294901760
        %v4915 = vsub.f32 %v3353, %v4914
        %4916 = vmatpush.msra.mxu0 %v4915
        %v4917 = vand.u32 %v3385, 4294901760
        %v4918 = vsub.f32 %v3385, %v4917
        %4919 = vmatmul.f32.gmra.mxu0 %v4918
        %v4920 = vpop.f32.mrf.mxu0
        %v4921 = vadd.f32 %v4897, %v4920
        %4922 = vdwg.mxu0
        %4923 = vmatpush.msra.mxu0 0.0
        %4924 = vmatpush.msra.mxu0 0.0
        %4925 = vmatpush.msra.mxu0 0.0
        %4926 = vmatpush.msra.mxu0 0.0
        %4927 = vmatpush.msra.mxu0 0.0
        %4928 = vmatpush.msra.mxu0 0.0
        %4929 = vmatpush.msra.mxu0 0.0
        %4930 = vmatpush.msra.mxu0 0.0
        %4931 = vmatpush.msra.mxu0 0.0
        %4932 = vmatpush.msra.mxu0 0.0
        %4933 = vmatpush.msra.mxu0 0.0
        %4934 = vmatpush.msra.mxu0 0.0
        %4935 = vmatpush.msra.mxu0 0.0
        %4936 = vmatpush.msra.mxu0 0.0
        %4937 = vmatpush.msra.mxu0 0.0
        %v4938 = vand.u32 %v3353, 4294901760
        %4939 = vmatpush.msra.mxu0 %v4938
        %v4940 = vand.u32 %v3385, 4294901760
        %v4941 = vsub.f32 %v3385, %v4940
        %v4942 = vand.u32 %v4941, 4294901760
        %4943 = vmatmul.f32.gmra.mxu0 %v4942
        %v4944 = vpop.f32.mrf.mxu0
        %v4945 = vadd.f32 %v4921, %v4944
        %4946 = vdwg.mxu0
        %4947 = vmatpush.msra.mxu0 0.0
        %4948 = vmatpush.msra.mxu0 0.0
        %4949 = vmatpush.msra.mxu0 0.0
        %4950 = vmatpush.msra.mxu0 0.0
        %4951 = vmatpush.msra.mxu0 0.0
        %4952 = vmatpush.msra.mxu0 0.0
        %4953 = vmatpush.msra.mxu0 0.0
        %4954 = vmatpush.msra.mxu0 0.0
        %4955 = vmatpush.msra.mxu0 0.0
        %4956 = vmatpush.msra.mxu0 0.0
        %4957 = vmatpush.msra.mxu0 0.0
        %4958 = vmatpush.msra.mxu0 0.0
        %4959 = vmatpush.msra.mxu0 0.0
        %4960 = vmatpush.msra.mxu0 0.0
        %4961 = vmatpush.msra.mxu0 0.0
        %v4962 = vand.u32 %v3353, 4294901760
        %v4963 = vsub.f32 %v3353, %v4962
        %v4964 = vand.u32 %v4963, 4294901760
        %4965 = vmatpush.msra.mxu0 %v4964
        %v4966 = vand.u32 %v3385, 4294901760
        %4967 = vmatmul.f32.gmra.mxu0 %v4966
        %v4968 = vpop.f32.mrf.mxu0
        %v4969 = vadd.f32 %v4945, %v4968
        %4970 = vdwg.mxu0
        %4971 = vmatpush.msra.mxu0 0.0
        %4972 = vmatpush.msra.mxu0 0.0
        %4973 = vmatpush.msra.mxu0 0.0
        %4974 = vmatpush.msra.mxu0 0.0
        %4975 = vmatpush.msra.mxu0 0.0
        %4976 = vmatpush.msra.mxu0 0.0
        %4977 = vmatpush.msra.mxu0 0.0
        %4978 = vmatpush.msra.mxu0 0.0
        %4979 = vmatpush.msra.mxu0 0.0
        %4980 = vmatpush.msra.mxu0 0.0
        %4981 = vmatpush.msra.mxu0 0.0
        %4982 = vmatpush.msra.mxu0 0.0
        %4983 = vmatpush.msra.mxu0 0.0
        %4984 = vmatpush.msra.mxu0 0.0
        %4985 = vmatpush.msra.mxu0 0.0
        %v4986 = vand.u32 %v3353, 4294901760
        %4987 = vmatpush.msra.mxu0 %v4986
        %v4988 = vand.u32 %v3385, 4294901760
        %4989 = vmatmul.f32.gmra.mxu0 %v4988
        %v4990 = vpop.f32.mrf.mxu0
        %v4991 = vadd.f32 %v4969, %v4990
        %4992 = vdwg.mxu0
        %4993 = vmatpush.msra.mxu0 0.0
        %4994 = vmatpush.msra.mxu0 0.0
        %4995 = vmatpush.msra.mxu0 0.0
        %4996 = vmatpush.msra.mxu0 0.0
        %4997 = vmatpush.msra.mxu0 0.0
        %4998 = vmatpush.msra.mxu0 0.0
        %4999 = vmatpush.msra.mxu0 0.0
        %5000 = vmatpush.msra.mxu0 0.0
        %5001 = vmatpush.msra.mxu0 0.0
        %5002 = vmatpush.msra.mxu0 0.0
        %5003 = vmatpush.msra.mxu0 0.0
        %5004 = vmatpush.msra.mxu0 0.0
        %5005 = vmatpush.msra.mxu0 0.0
        %5006 = vmatpush.msra.mxu0 0.0
        %5007 = vmatpush.msra.mxu0 0.0
        %v5008 = vand.u32 %v3354, 4294901760
        %5009 = vmatpush.msra.mxu0 %v5008
        %v5010 = vand.u32 %v3385, 4294901760
        %v5011 = vsub.f32 %v3385, %v5010
        %v5012 = vand.u32 %v5011, 4294901760
        %v5013 = vsub.f32 %v5011, %v5012
        %v5014 = vand.u32 %v5013, 4294901760
        %5015 = vmatmul.f32.gmra.mxu0 %v5014
        %v5016 = vpop.f32.mrf.mxu0
        %v5017 = vadd.f32 %v3382, %v5016
        %5018 = vdwg.mxu0
        %5019 = vmatpush.msra.mxu0 0.0
        %5020 = vmatpush.msra.mxu0 0.0
        %5021 = vmatpush.msra.mxu0 0.0
        %5022 = vmatpush.msra.mxu0 0.0
        %5023 = vmatpush.msra.mxu0 0.0
        %5024 = vmatpush.msra.mxu0 0.0
        %5025 = vmatpush.msra.mxu0 0.0
        %5026 = vmatpush.msra.mxu0 0.0
        %5027 = vmatpush.msra.mxu0 0.0
        %5028 = vmatpush.msra.mxu0 0.0
        %5029 = vmatpush.msra.mxu0 0.0
        %5030 = vmatpush.msra.mxu0 0.0
        %5031 = vmatpush.msra.mxu0 0.0
        %5032 = vmatpush.msra.mxu0 0.0
        %5033 = vmatpush.msra.mxu0 0.0
        %v5034 = vand.u32 %v3354, 4294901760
        %v5035 = vsub.f32 %v3354, %v5034
        %v5036 = vand.u32 %v5035, 4294901760
        %v5037 = vsub.f32 %v5035, %v5036
        %v5038 = vand.u32 %v5037, 4294901760
        %5039 = vmatpush.msra.mxu0 %v5038
        %v5040 = vand.u32 %v3385, 4294901760
        %5041 = vmatmul.f32.gmra.mxu0 %v5040
        %v5042 = vpop.f32.mrf.mxu0
        %v5043 = vadd.f32 %v5017, %v5042
        %5044 = vdwg.mxu0
        %5045 = vmatpush.msra.mxu0 0.0
        %5046 = vmatpush.msra.mxu0 0.0
        %5047 = vmatpush.msra.mxu0 0.0
        %5048 = vmatpush.msra.mxu0 0.0
        %5049 = vmatpush.msra.mxu0 0.0
        %5050 = vmatpush.msra.mxu0 0.0
        %5051 = vmatpush.msra.mxu0 0.0
        %5052 = vmatpush.msra.mxu0 0.0
        %5053 = vmatpush.msra.mxu0 0.0
        %5054 = vmatpush.msra.mxu0 0.0
        %5055 = vmatpush.msra.mxu0 0.0
        %5056 = vmatpush.msra.mxu0 0.0
        %5057 = vmatpush.msra.mxu0 0.0
        %5058 = vmatpush.msra.mxu0 0.0
        %5059 = vmatpush.msra.mxu0 0.0
        %v5060 = vand.u32 %v3354, 4294901760
        %v5061 = vsub.f32 %v3354, %v5060
        %5062 = vmatpush.msra.mxu0 %v5061
        %v5063 = vand.u32 %v3385, 4294901760
        %v5064 = vsub.f32 %v3385, %v5063
        %5065 = vmatmul.f32.gmra.mxu0 %v5064
        %v5066 = vpop.f32.mrf.mxu0
        %v5067 = vadd.f32 %v5043, %v5066
        %5068 = vdwg.mxu0
        %5069 = vmatpush.msra.mxu0 0.0
        %5070 = vmatpush.msra.mxu0 0.0
        %5071 = vmatpush.msra.mxu0 0.0
        %5072 = vmatpush.msra.mxu0 0.0
        %5073 = vmatpush.msra.mxu0 0.0
        %5074 = vmatpush.msra.mxu0 0.0
        %5075 = vmatpush.msra.mxu0 0.0
        %5076 = vmatpush.msra.mxu0 0.0
        %5077 = vmatpush.msra.mxu0 0.0
        %5078 = vmatpush.msra.mxu0 0.0
        %5079 = vmatpush.msra.mxu0 0.0
        %5080 = vmatpush.msra.mxu0 0.0
        %5081 = vmatpush.msra.mxu0 0.0
        %5082 = vmatpush.msra.mxu0 0.0
        %5083 = vmatpush.msra.mxu0 0.0
        %v5084 = vand.u32 %v3354, 4294901760
        %5085 = vmatpush.msra.mxu0 %v5084
        %v5086 = vand.u32 %v3385, 4294901760
        %v5087 = vsub.f32 %v3385, %v5086
        %v5088 = vand.u32 %v5087, 4294901760
        %5089 = vmatmul.f32.gmra.mxu0 %v5088
        %v5090 = vpop.f32.mrf.mxu0
        %v5091 = vadd.f32 %v5067, %v5090
        %5092 = vdwg.mxu0
        %5093 = vmatpush.msra.mxu0 0.0
        %5094 = vmatpush.msra.mxu0 0.0
        %5095 = vmatpush.msra.mxu0 0.0
        %5096 = vmatpush.msra.mxu0 0.0
        %5097 = vmatpush.msra.mxu0 0.0
        %5098 = vmatpush.msra.mxu0 0.0
        %5099 = vmatpush.msra.mxu0 0.0
        %5100 = vmatpush.msra.mxu0 0.0
        %5101 = vmatpush.msra.mxu0 0.0
        %5102 = vmatpush.msra.mxu0 0.0
        %5103 = vmatpush.msra.mxu0 0.0
        %5104 = vmatpush.msra.mxu0 0.0
        %5105 = vmatpush.msra.mxu0 0.0
        %5106 = vmatpush.msra.mxu0 0.0
        %5107 = vmatpush.msra.mxu0 0.0
        %v5108 = vand.u32 %v3354, 4294901760
        %v5109 = vsub.f32 %v3354, %v5108
        %v5110 = vand.u32 %v5109, 4294901760
        %5111 = vmatpush.msra.mxu0 %v5110
        %v5112 = vand.u32 %v3385, 4294901760
        %5113 = vmatmul.f32.gmra.mxu0 %v5112
        %v5114 = vpop.f32.mrf.mxu0
        %v5115 = vadd.f32 %v5091, %v5114
        %5116 = vdwg.mxu0
        %5117 = vmatpush.msra.mxu0 0.0
        %5118 = vmatpush.msra.mxu0 0.0
        %5119 = vmatpush.msra.mxu0 0.0
        %5120 = vmatpush.msra.mxu0 0.0
        %5121 = vmatpush.msra.mxu0 0.0
        %5122 = vmatpush.msra.mxu0 0.0
        %5123 = vmatpush.msra.mxu0 0.0
        %5124 = vmatpush.msra.mxu0 0.0
        %5125 = vmatpush.msra.mxu0 0.0
        %5126 = vmatpush.msra.mxu0 0.0
        %5127 = vmatpush.msra.mxu0 0.0
        %5128 = vmatpush.msra.mxu0 0.0
        %5129 = vmatpush.msra.mxu0 0.0
        %5130 = vmatpush.msra.mxu0 0.0
        %5131 = vmatpush.msra.mxu0 0.0
        %v5132 = vand.u32 %v3354, 4294901760
        %5133 = vmatpush.msra.mxu0 %v5132
        %v5134 = vand.u32 %v3385, 4294901760
        %5135 = vmatmul.f32.gmra.mxu0 %v5134
        %v5136 = vpop.f32.mrf.mxu0
        %v5137 = vadd.f32 %v5115, %v5136
        %5138 = vdwg.mxu0
        %5139 = vmatpush.msra.mxu0 0.0
        %5140 = vmatpush.msra.mxu0 0.0
        %5141 = vmatpush.msra.mxu0 0.0
        %5142 = vmatpush.msra.mxu0 0.0
        %5143 = vmatpush.msra.mxu0 0.0
        %5144 = vmatpush.msra.mxu0 0.0
        %5145 = vmatpush.msra.mxu0 0.0
        %5146 = vmatpush.msra.mxu0 0.0
        %5147 = vmatpush.msra.mxu0 0.0
        %5148 = vmatpush.msra.mxu0 0.0
        %5149 = vmatpush.msra.mxu0 0.0
        %5150 = vmatpush.msra.mxu0 0.0
        %5151 = vmatpush.msra.mxu0 0.0
        %5152 = vmatpush.msra.mxu0 0.0
        %5153 = vmatpush.msra.mxu0 0.0
        %v5154 = vand.u32 %v3355, 4294901760
        %5155 = vmatpush.msra.mxu0 %v5154
        %v5156 = vand.u32 %v3385, 4294901760
        %v5157 = vsub.f32 %v3385, %v5156
        %v5158 = vand.u32 %v5157, 4294901760
        %v5159 = vsub.f32 %v5157, %v5158
        %v5160 = vand.u32 %v5159, 4294901760
        %5161 = vmatmul.f32.gmra.mxu0 %v5160
        %v5162 = vpop.f32.mrf.mxu0
        %v5163 = vadd.f32 %v3382, %v5162
        %5164 = vdwg.mxu0
        %5165 = vmatpush.msra.mxu0 0.0
        %5166 = vmatpush.msra.mxu0 0.0
        %5167 = vmatpush.msra.mxu0 0.0
        %5168 = vmatpush.msra.mxu0 0.0
        %5169 = vmatpush.msra.mxu0 0.0
        %5170 = vmatpush.msra.mxu0 0.0
        %5171 = vmatpush.msra.mxu0 0.0
        %5172 = vmatpush.msra.mxu0 0.0
        %5173 = vmatpush.msra.mxu0 0.0
        %5174 = vmatpush.msra.mxu0 0.0
        %5175 = vmatpush.msra.mxu0 0.0
        %5176 = vmatpush.msra.mxu0 0.0
        %5177 = vmatpush.msra.mxu0 0.0
        %5178 = vmatpush.msra.mxu0 0.0
        %5179 = vmatpush.msra.mxu0 0.0
        %v5180 = vand.u32 %v3355, 4294901760
        %v5181 = vsub.f32 %v3355, %v5180
        %v5182 = vand.u32 %v5181, 4294901760
        %v5183 = vsub.f32 %v5181, %v5182
        %v5184 = vand.u32 %v5183, 4294901760
        %5185 = vmatpush.msra.mxu0 %v5184
        %v5186 = vand.u32 %v3385, 4294901760
        %5187 = vmatmul.f32.gmra.mxu0 %v5186
        %v5188 = vpop.f32.mrf.mxu0
        %v5189 = vadd.f32 %v5163, %v5188
        %5190 = vdwg.mxu0
        %5191 = vmatpush.msra.mxu0 0.0
        %5192 = vmatpush.msra.mxu0 0.0
        %5193 = vmatpush.msra.mxu0 0.0
        %5194 = vmatpush.msra.mxu0 0.0
        %5195 = vmatpush.msra.mxu0 0.0
        %5196 = vmatpush.msra.mxu0 0.0
        %5197 = vmatpush.msra.mxu0 0.0
        %5198 = vmatpush.msra.mxu0 0.0
        %5199 = vmatpush.msra.mxu0 0.0
        %5200 = vmatpush.msra.mxu0 0.0
        %5201 = vmatpush.msra.mxu0 0.0
        %5202 = vmatpush.msra.mxu0 0.0
        %5203 = vmatpush.msra.mxu0 0.0
        %5204 = vmatpush.msra.mxu0 0.0
        %5205 = vmatpush.msra.mxu0 0.0
        %v5206 = vand.u32 %v3355, 4294901760
        %v5207 = vsub.f32 %v3355, %v5206
        %5208 = vmatpush.msra.mxu0 %v5207
        %v5209 = vand.u32 %v3385, 4294901760
        %v5210 = vsub.f32 %v3385, %v5209
        %5211 = vmatmul.f32.gmra.mxu0 %v5210
        %v5212 = vpop.f32.mrf.mxu0
        %v5213 = vadd.f32 %v5189, %v5212
        %5214 = vdwg.mxu0
        %5215 = vmatpush.msra.mxu0 0.0
        %5216 = vmatpush.msra.mxu0 0.0
        %5217 = vmatpush.msra.mxu0 0.0
        %5218 = vmatpush.msra.mxu0 0.0
        %5219 = vmatpush.msra.mxu0 0.0
        %5220 = vmatpush.msra.mxu0 0.0
        %5221 = vmatpush.msra.mxu0 0.0
        %5222 = vmatpush.msra.mxu0 0.0
        %5223 = vmatpush.msra.mxu0 0.0
        %5224 = vmatpush.msra.mxu0 0.0
        %5225 = vmatpush.msra.mxu0 0.0
        %5226 = vmatpush.msra.mxu0 0.0
        %5227 = vmatpush.msra.mxu0 0.0
        %5228 = vmatpush.msra.mxu0 0.0
        %5229 = vmatpush.msra.mxu0 0.0
        %v5230 = vand.u32 %v3355, 4294901760
        %5231 = vmatpush.msra.mxu0 %v5230
        %v5232 = vand.u32 %v3385, 4294901760
        %v5233 = vsub.f32 %v3385, %v5232
        %v5234 = vand.u32 %v5233, 4294901760
        %5235 = vmatmul.f32.gmra.mxu0 %v5234
        %v5236 = vpop.f32.mrf.mxu0
        %v5237 = vadd.f32 %v5213, %v5236
        %5238 = vdwg.mxu0
        %5239 = vmatpush.msra.mxu0 0.0
        %5240 = vmatpush.msra.mxu0 0.0
        %5241 = vmatpush.msra.mxu0 0.0
        %5242 = vmatpush.msra.mxu0 0.0
        %5243 = vmatpush.msra.mxu0 0.0
        %5244 = vmatpush.msra.mxu0 0.0
        %5245 = vmatpush.msra.mxu0 0.0
        %5246 = vmatpush.msra.mxu0 0.0
        %5247 = vmatpush.msra.mxu0 0.0
        %5248 = vmatpush.msra.mxu0 0.0
        %5249 = vmatpush.msra.mxu0 0.0
        %5250 = vmatpush.msra.mxu0 0.0
        %5251 = vmatpush.msra.mxu0 0.0
        %5252 = vmatpush.msra.mxu0 0.0
        %5253 = vmatpush.msra.mxu0 0.0
        %v5254 = vand.u32 %v3355, 4294901760
        %v5255 = vsub.f32 %v3355, %v5254
        %v5256 = vand.u32 %v5255, 4294901760
        %5257 = vmatpush.msra.mxu0 %v5256
        %v5258 = vand.u32 %v3385, 4294901760
        %5259 = vmatmul.f32.gmra.mxu0 %v5258
        %v5260 = vpop.f32.mrf.mxu0
        %v5261 = vadd.f32 %v5237, %v5260
        %5262 = vdwg.mxu0
        %5263 = vmatpush.msra.mxu0 0.0
        %5264 = vmatpush.msra.mxu0 0.0
        %5265 = vmatpush.msra.mxu0 0.0
        %5266 = vmatpush.msra.mxu0 0.0
        %5267 = vmatpush.msra.mxu0 0.0
        %5268 = vmatpush.msra.mxu0 0.0
        %5269 = vmatpush.msra.mxu0 0.0
        %5270 = vmatpush.msra.mxu0 0.0
        %5271 = vmatpush.msra.mxu0 0.0
        %5272 = vmatpush.msra.mxu0 0.0
        %5273 = vmatpush.msra.mxu0 0.0
        %5274 = vmatpush.msra.mxu0 0.0
        %5275 = vmatpush.msra.mxu0 0.0
        %5276 = vmatpush.msra.mxu0 0.0
        %5277 = vmatpush.msra.mxu0 0.0
        %v5278 = vand.u32 %v3355, 4294901760
        %5279 = vmatpush.msra.mxu0 %v5278
        %v5280 = vand.u32 %v3385, 4294901760
        %5281 = vmatmul.f32.gmra.mxu0 %v5280
        %v5282 = vpop.f32.mrf.mxu0
        %v5283 = vadd.f32 %v5261, %v5282
        %5284 = vdwg.mxu0
        %5285 = vmatpush.msra.mxu0 0.0
        %5286 = vmatpush.msra.mxu0 0.0
        %5287 = vmatpush.msra.mxu0 0.0
        %5288 = vmatpush.msra.mxu0 0.0
        %5289 = vmatpush.msra.mxu0 0.0
        %5290 = vmatpush.msra.mxu0 0.0
        %5291 = vmatpush.msra.mxu0 0.0
        %5292 = vmatpush.msra.mxu0 0.0
        %5293 = vmatpush.msra.mxu0 0.0
        %5294 = vmatpush.msra.mxu0 0.0
        %5295 = vmatpush.msra.mxu0 0.0
        %5296 = vmatpush.msra.mxu0 0.0
        %5297 = vmatpush.msra.mxu0 0.0
        %5298 = vmatpush.msra.mxu0 0.0
        %5299 = vmatpush.msra.mxu0 0.0
        %v5300 = vand.u32 %v3356, 4294901760
        %5301 = vmatpush.msra.mxu0 %v5300
        %v5302 = vand.u32 %v3385, 4294901760
        %v5303 = vsub.f32 %v3385, %v5302
        %v5304 = vand.u32 %v5303, 4294901760
        %v5305 = vsub.f32 %v5303, %v5304
        %v5306 = vand.u32 %v5305, 4294901760
        %5307 = vmatmul.f32.gmra.mxu0 %v5306
        %v5308 = vpop.f32.mrf.mxu0
        %v5309 = vadd.f32 %v3382, %v5308
        %5310 = vdwg.mxu0
        %5311 = vmatpush.msra.mxu0 0.0
        %5312 = vmatpush.msra.mxu0 0.0
        %5313 = vmatpush.msra.mxu0 0.0
        %5314 = vmatpush.msra.mxu0 0.0
        %5315 = vmatpush.msra.mxu0 0.0
        %5316 = vmatpush.msra.mxu0 0.0
        %5317 = vmatpush.msra.mxu0 0.0
        %5318 = vmatpush.msra.mxu0 0.0
        %5319 = vmatpush.msra.mxu0 0.0
        %5320 = vmatpush.msra.mxu0 0.0
        %5321 = vmatpush.msra.mxu0 0.0
        %5322 = vmatpush.msra.mxu0 0.0
        %5323 = vmatpush.msra.mxu0 0.0
        %5324 = vmatpush.msra.mxu0 0.0
        %5325 = vmatpush.msra.mxu0 0.0
        %v5326 = vand.u32 %v3356, 4294901760
        %v5327 = vsub.f32 %v3356, %v5326
        %v5328 = vand.u32 %v5327, 4294901760
        %v5329 = vsub.f32 %v5327, %v5328
        %v5330 = vand.u32 %v5329, 4294901760
        %5331 = vmatpush.msra.mxu0 %v5330
        %v5332 = vand.u32 %v3385, 4294901760
        %5333 = vmatmul.f32.gmra.mxu0 %v5332
        %v5334 = vpop.f32.mrf.mxu0
        %v5335 = vadd.f32 %v5309, %v5334
        %5336 = vdwg.mxu0
        %5337 = vmatpush.msra.mxu0 0.0
        %5338 = vmatpush.msra.mxu0 0.0
        %5339 = vmatpush.msra.mxu0 0.0
        %5340 = vmatpush.msra.mxu0 0.0
        %5341 = vmatpush.msra.mxu0 0.0
        %5342 = vmatpush.msra.mxu0 0.0
        %5343 = vmatpush.msra.mxu0 0.0
        %5344 = vmatpush.msra.mxu0 0.0
        %5345 = vmatpush.msra.mxu0 0.0
        %5346 = vmatpush.msra.mxu0 0.0
        %5347 = vmatpush.msra.mxu0 0.0
        %5348 = vmatpush.msra.mxu0 0.0
        %5349 = vmatpush.msra.mxu0 0.0
        %5350 = vmatpush.msra.mxu0 0.0
        %5351 = vmatpush.msra.mxu0 0.0
        %v5352 = vand.u32 %v3356, 4294901760
        %v5353 = vsub.f32 %v3356, %v5352
        %5354 = vmatpush.msra.mxu0 %v5353
        %v5355 = vand.u32 %v3385, 4294901760
        %v5356 = vsub.f32 %v3385, %v5355
        %5357 = vmatmul.f32.gmra.mxu0 %v5356
        %v5358 = vpop.f32.mrf.mxu0
        %v5359 = vadd.f32 %v5335, %v5358
        %5360 = vdwg.mxu0
        %5361 = vmatpush.msra.mxu0 0.0
        %5362 = vmatpush.msra.mxu0 0.0
        %5363 = vmatpush.msra.mxu0 0.0
        %5364 = vmatpush.msra.mxu0 0.0
        %5365 = vmatpush.msra.mxu0 0.0
        %5366 = vmatpush.msra.mxu0 0.0
        %5367 = vmatpush.msra.mxu0 0.0
        %5368 = vmatpush.msra.mxu0 0.0
        %5369 = vmatpush.msra.mxu0 0.0
        %5370 = vmatpush.msra.mxu0 0.0
        %5371 = vmatpush.msra.mxu0 0.0
        %5372 = vmatpush.msra.mxu0 0.0
        %5373 = vmatpush.msra.mxu0 0.0
        %5374 = vmatpush.msra.mxu0 0.0
        %5375 = vmatpush.msra.mxu0 0.0
        %v5376 = vand.u32 %v3356, 4294901760
        %5377 = vmatpush.msra.mxu0 %v5376
        %v5378 = vand.u32 %v3385, 4294901760
        %v5379 = vsub.f32 %v3385, %v5378
        %v5380 = vand.u32 %v5379, 4294901760
        %5381 = vmatmul.f32.gmra.mxu0 %v5380
        %v5382 = vpop.f32.mrf.mxu0
        %v5383 = vadd.f32 %v5359, %v5382
        %5384 = vdwg.mxu0
        %5385 = vmatpush.msra.mxu0 0.0
        %5386 = vmatpush.msra.mxu0 0.0
        %5387 = vmatpush.msra.mxu0 0.0
        %5388 = vmatpush.msra.mxu0 0.0
        %5389 = vmatpush.msra.mxu0 0.0
        %5390 = vmatpush.msra.mxu0 0.0
        %5391 = vmatpush.msra.mxu0 0.0
        %5392 = vmatpush.msra.mxu0 0.0
        %5393 = vmatpush.msra.mxu0 0.0
        %5394 = vmatpush.msra.mxu0 0.0
        %5395 = vmatpush.msra.mxu0 0.0
        %5396 = vmatpush.msra.mxu0 0.0
        %5397 = vmatpush.msra.mxu0 0.0
        %5398 = vmatpush.msra.mxu0 0.0
        %5399 = vmatpush.msra.mxu0 0.0
        %v5400 = vand.u32 %v3356, 4294901760
        %v5401 = vsub.f32 %v3356, %v5400
        %v5402 = vand.u32 %v5401, 4294901760
        %5403 = vmatpush.msra.mxu0 %v5402
        %v5404 = vand.u32 %v3385, 4294901760
        %5405 = vmatmul.f32.gmra.mxu0 %v5404
        %v5406 = vpop.f32.mrf.mxu0
        %v5407 = vadd.f32 %v5383, %v5406
        %5408 = vdwg.mxu0
        %5409 = vmatpush.msra.mxu0 0.0
        %5410 = vmatpush.msra.mxu0 0.0
        %5411 = vmatpush.msra.mxu0 0.0
        %5412 = vmatpush.msra.mxu0 0.0
        %5413 = vmatpush.msra.mxu0 0.0
        %5414 = vmatpush.msra.mxu0 0.0
        %5415 = vmatpush.msra.mxu0 0.0
        %5416 = vmatpush.msra.mxu0 0.0
        %5417 = vmatpush.msra.mxu0 0.0
        %5418 = vmatpush.msra.mxu0 0.0
        %5419 = vmatpush.msra.mxu0 0.0
        %5420 = vmatpush.msra.mxu0 0.0
        %5421 = vmatpush.msra.mxu0 0.0
        %5422 = vmatpush.msra.mxu0 0.0
        %5423 = vmatpush.msra.mxu0 0.0
        %v5424 = vand.u32 %v3356, 4294901760
        %5425 = vmatpush.msra.mxu0 %v5424
        %v5426 = vand.u32 %v3385, 4294901760
        %5427 = vmatmul.f32.gmra.mxu0 %v5426
        %v5428 = vpop.f32.mrf.mxu0
        %v5429 = vadd.f32 %v5407, %v5428
        %5430 = vdwg.mxu0
        %5431 = vmatpush.msra.mxu0 0.0
        %5432 = vmatpush.msra.mxu0 0.0
        %5433 = vmatpush.msra.mxu0 0.0
        %5434 = vmatpush.msra.mxu0 0.0
        %5435 = vmatpush.msra.mxu0 0.0
        %5436 = vmatpush.msra.mxu0 0.0
        %5437 = vmatpush.msra.mxu0 0.0
        %5438 = vmatpush.msra.mxu0 0.0
        %5439 = vmatpush.msra.mxu0 0.0
        %5440 = vmatpush.msra.mxu0 0.0
        %5441 = vmatpush.msra.mxu0 0.0
        %5442 = vmatpush.msra.mxu0 0.0
        %5443 = vmatpush.msra.mxu0 0.0
        %5444 = vmatpush.msra.mxu0 0.0
        %5445 = vmatpush.msra.mxu0 0.0
        %v5446 = vand.u32 %v3357, 4294901760
        %5447 = vmatpush.msra.mxu0 %v5446
        %v5448 = vand.u32 %v3385, 4294901760
        %v5449 = vsub.f32 %v3385, %v5448
        %v5450 = vand.u32 %v5449, 4294901760
        %v5451 = vsub.f32 %v5449, %v5450
        %v5452 = vand.u32 %v5451, 4294901760
        %5453 = vmatmul.f32.gmra.mxu0 %v5452
        %v5454 = vpop.f32.mrf.mxu0
        %v5455 = vadd.f32 %v3382, %v5454
        %5456 = vdwg.mxu0
        %5457 = vmatpush.msra.mxu0 0.0
        %5458 = vmatpush.msra.mxu0 0.0
        %5459 = vmatpush.msra.mxu0 0.0
        %5460 = vmatpush.msra.mxu0 0.0
        %5461 = vmatpush.msra.mxu0 0.0
        %5462 = vmatpush.msra.mxu0 0.0
        %5463 = vmatpush.msra.mxu0 0.0
        %5464 = vmatpush.msra.mxu0 0.0
        %5465 = vmatpush.msra.mxu0 0.0
        %5466 = vmatpush.msra.mxu0 0.0
        %5467 = vmatpush.msra.mxu0 0.0
        %5468 = vmatpush.msra.mxu0 0.0
        %5469 = vmatpush.msra.mxu0 0.0
        %5470 = vmatpush.msra.mxu0 0.0
        %5471 = vmatpush.msra.mxu0 0.0
        %v5472 = vand.u32 %v3357, 4294901760
        %v5473 = vsub.f32 %v3357, %v5472
        %v5474 = vand.u32 %v5473, 4294901760
        %v5475 = vsub.f32 %v5473, %v5474
        %v5476 = vand.u32 %v5475, 4294901760
        %5477 = vmatpush.msra.mxu0 %v5476
        %v5478 = vand.u32 %v3385, 4294901760
        %5479 = vmatmul.f32.gmra.mxu0 %v5478
        %v5480 = vpop.f32.mrf.mxu0
        %v5481 = vadd.f32 %v5455, %v5480
        %5482 = vdwg.mxu0
        %5483 = vmatpush.msra.mxu0 0.0
        %5484 = vmatpush.msra.mxu0 0.0
        %5485 = vmatpush.msra.mxu0 0.0
        %5486 = vmatpush.msra.mxu0 0.0
        %5487 = vmatpush.msra.mxu0 0.0
        %5488 = vmatpush.msra.mxu0 0.0
        %5489 = vmatpush.msra.mxu0 0.0
        %5490 = vmatpush.msra.mxu0 0.0
        %5491 = vmatpush.msra.mxu0 0.0
        %5492 = vmatpush.msra.mxu0 0.0
        %5493 = vmatpush.msra.mxu0 0.0
        %5494 = vmatpush.msra.mxu0 0.0
        %5495 = vmatpush.msra.mxu0 0.0
        %5496 = vmatpush.msra.mxu0 0.0
        %5497 = vmatpush.msra.mxu0 0.0
        %v5498 = vand.u32 %v3357, 4294901760
        %v5499 = vsub.f32 %v3357, %v5498
        %5500 = vmatpush.msra.mxu0 %v5499
        %v5501 = vand.u32 %v3385, 4294901760
        %v5502 = vsub.f32 %v3385, %v5501
        %5503 = vmatmul.f32.gmra.mxu0 %v5502
        %v5504 = vpop.f32.mrf.mxu0
        %v5505 = vadd.f32 %v5481, %v5504
        %5506 = vdwg.mxu0
        %5507 = vmatpush.msra.mxu0 0.0
        %5508 = vmatpush.msra.mxu0 0.0
        %5509 = vmatpush.msra.mxu0 0.0
        %5510 = vmatpush.msra.mxu0 0.0
        %5511 = vmatpush.msra.mxu0 0.0
        %5512 = vmatpush.msra.mxu0 0.0
        %5513 = vmatpush.msra.mxu0 0.0
        %5514 = vmatpush.msra.mxu0 0.0
        %5515 = vmatpush.msra.mxu0 0.0
        %5516 = vmatpush.msra.mxu0 0.0
        %5517 = vmatpush.msra.mxu0 0.0
        %5518 = vmatpush.msra.mxu0 0.0
        %5519 = vmatpush.msra.mxu0 0.0
        %5520 = vmatpush.msra.mxu0 0.0
        %5521 = vmatpush.msra.mxu0 0.0
        %v5522 = vand.u32 %v3357, 4294901760
        %5523 = vmatpush.msra.mxu0 %v5522
        %v5524 = vand.u32 %v3385, 4294901760
        %v5525 = vsub.f32 %v3385, %v5524
        %v5526 = vand.u32 %v5525, 4294901760
        %5527 = vmatmul.f32.gmra.mxu0 %v5526
        %v5528 = vpop.f32.mrf.mxu0
        %v5529 = vadd.f32 %v5505, %v5528
        %5530 = vdwg.mxu0
        %5531 = vmatpush.msra.mxu0 0.0
        %5532 = vmatpush.msra.mxu0 0.0
        %5533 = vmatpush.msra.mxu0 0.0
        %5534 = vmatpush.msra.mxu0 0.0
        %5535 = vmatpush.msra.mxu0 0.0
        %5536 = vmatpush.msra.mxu0 0.0
        %5537 = vmatpush.msra.mxu0 0.0
        %5538 = vmatpush.msra.mxu0 0.0
        %5539 = vmatpush.msra.mxu0 0.0
        %5540 = vmatpush.msra.mxu0 0.0
        %5541 = vmatpush.msra.mxu0 0.0
        %5542 = vmatpush.msra.mxu0 0.0
        %5543 = vmatpush.msra.mxu0 0.0
        %5544 = vmatpush.msra.mxu0 0.0
        %5545 = vmatpush.msra.mxu0 0.0
        %v5546 = vand.u32 %v3357, 4294901760
        %v5547 = vsub.f32 %v3357, %v5546
        %v5548 = vand.u32 %v5547, 4294901760
        %5549 = vmatpush.msra.mxu0 %v5548
        %v5550 = vand.u32 %v3385, 4294901760
        %5551 = vmatmul.f32.gmra.mxu0 %v5550
        %v5552 = vpop.f32.mrf.mxu0
        %v5553 = vadd.f32 %v5529, %v5552
        %5554 = vdwg.mxu0
        %5555 = vmatpush.msra.mxu0 0.0
        %5556 = vmatpush.msra.mxu0 0.0
        %5557 = vmatpush.msra.mxu0 0.0
        %5558 = vmatpush.msra.mxu0 0.0
        %5559 = vmatpush.msra.mxu0 0.0
        %5560 = vmatpush.msra.mxu0 0.0
        %5561 = vmatpush.msra.mxu0 0.0
        %5562 = vmatpush.msra.mxu0 0.0
        %5563 = vmatpush.msra.mxu0 0.0
        %5564 = vmatpush.msra.mxu0 0.0
        %5565 = vmatpush.msra.mxu0 0.0
        %5566 = vmatpush.msra.mxu0 0.0
        %5567 = vmatpush.msra.mxu0 0.0
        %5568 = vmatpush.msra.mxu0 0.0
        %5569 = vmatpush.msra.mxu0 0.0
        %v5570 = vand.u32 %v3357, 4294901760
        %5571 = vmatpush.msra.mxu0 %v5570
        %v5572 = vand.u32 %v3385, 4294901760
        %5573 = vmatmul.f32.gmra.mxu0 %v5572
        %v5574 = vpop.f32.mrf.mxu0
        %v5575 = vadd.f32 %v5553, %v5574
        %5576 = vdwg.mxu0
        %5577 = vmatpush.msra.mxu0 0.0
        %5578 = vmatpush.msra.mxu0 0.0
        %5579 = vmatpush.msra.mxu0 0.0
        %5580 = vmatpush.msra.mxu0 0.0
        %5581 = vmatpush.msra.mxu0 0.0
        %5582 = vmatpush.msra.mxu0 0.0
        %5583 = vmatpush.msra.mxu0 0.0
        %5584 = vmatpush.msra.mxu0 0.0
        %5585 = vmatpush.msra.mxu0 0.0
        %5586 = vmatpush.msra.mxu0 0.0
        %5587 = vmatpush.msra.mxu0 0.0
        %5588 = vmatpush.msra.mxu0 0.0
        %5589 = vmatpush.msra.mxu0 0.0
        %5590 = vmatpush.msra.mxu0 0.0
        %5591 = vmatpush.msra.mxu0 0.0
        %v5592 = vand.u32 %v3358, 4294901760
        %5593 = vmatpush.msra.mxu0 %v5592
        %v5594 = vand.u32 %v3385, 4294901760
        %v5595 = vsub.f32 %v3385, %v5594
        %v5596 = vand.u32 %v5595, 4294901760
        %v5597 = vsub.f32 %v5595, %v5596
        %v5598 = vand.u32 %v5597, 4294901760
        %5599 = vmatmul.f32.gmra.mxu0 %v5598
        %v5600 = vpop.f32.mrf.mxu0
        %v5601 = vadd.f32 %v3382, %v5600
        %5602 = vdwg.mxu0
        %5603 = vmatpush.msra.mxu0 0.0
        %5604 = vmatpush.msra.mxu0 0.0
        %5605 = vmatpush.msra.mxu0 0.0
        %5606 = vmatpush.msra.mxu0 0.0
        %5607 = vmatpush.msra.mxu0 0.0
        %5608 = vmatpush.msra.mxu0 0.0
        %5609 = vmatpush.msra.mxu0 0.0
        %5610 = vmatpush.msra.mxu0 0.0
        %5611 = vmatpush.msra.mxu0 0.0
        %5612 = vmatpush.msra.mxu0 0.0
        %5613 = vmatpush.msra.mxu0 0.0
        %5614 = vmatpush.msra.mxu0 0.0
        %5615 = vmatpush.msra.mxu0 0.0
        %5616 = vmatpush.msra.mxu0 0.0
        %5617 = vmatpush.msra.mxu0 0.0
        %v5618 = vand.u32 %v3358, 4294901760
        %v5619 = vsub.f32 %v3358, %v5618
        %v5620 = vand.u32 %v5619, 4294901760
        %v5621 = vsub.f32 %v5619, %v5620
        %v5622 = vand.u32 %v5621, 4294901760
        %5623 = vmatpush.msra.mxu0 %v5622
        %v5624 = vand.u32 %v3385, 4294901760
        %5625 = vmatmul.f32.gmra.mxu0 %v5624
        %v5626 = vpop.f32.mrf.mxu0
        %v5627 = vadd.f32 %v5601, %v5626
        %5628 = vdwg.mxu0
        %5629 = vmatpush.msra.mxu0 0.0
        %5630 = vmatpush.msra.mxu0 0.0
        %5631 = vmatpush.msra.mxu0 0.0
        %5632 = vmatpush.msra.mxu0 0.0
        %5633 = vmatpush.msra.mxu0 0.0
        %5634 = vmatpush.msra.mxu0 0.0
        %5635 = vmatpush.msra.mxu0 0.0
        %5636 = vmatpush.msra.mxu0 0.0
        %5637 = vmatpush.msra.mxu0 0.0
        %5638 = vmatpush.msra.mxu0 0.0
        %5639 = vmatpush.msra.mxu0 0.0
        %5640 = vmatpush.msra.mxu0 0.0
        %5641 = vmatpush.msra.mxu0 0.0
        %5642 = vmatpush.msra.mxu0 0.0
        %5643 = vmatpush.msra.mxu0 0.0
        %v5644 = vand.u32 %v3358, 4294901760
        %v5645 = vsub.f32 %v3358, %v5644
        %5646 = vmatpush.msra.mxu0 %v5645
        %v5647 = vand.u32 %v3385, 4294901760
        %v5648 = vsub.f32 %v3385, %v5647
        %5649 = vmatmul.f32.gmra.mxu0 %v5648
        %v5650 = vpop.f32.mrf.mxu0
        %v5651 = vadd.f32 %v5627, %v5650
        %5652 = vdwg.mxu0
        %5653 = vmatpush.msra.mxu0 0.0
        %5654 = vmatpush.msra.mxu0 0.0
        %5655 = vmatpush.msra.mxu0 0.0
        %5656 = vmatpush.msra.mxu0 0.0
        %5657 = vmatpush.msra.mxu0 0.0
        %5658 = vmatpush.msra.mxu0 0.0
        %5659 = vmatpush.msra.mxu0 0.0
        %5660 = vmatpush.msra.mxu0 0.0
        %5661 = vmatpush.msra.mxu0 0.0
        %5662 = vmatpush.msra.mxu0 0.0
        %5663 = vmatpush.msra.mxu0 0.0
        %5664 = vmatpush.msra.mxu0 0.0
        %5665 = vmatpush.msra.mxu0 0.0
        %5666 = vmatpush.msra.mxu0 0.0
        %5667 = vmatpush.msra.mxu0 0.0
        %v5668 = vand.u32 %v3358, 4294901760
        %5669 = vmatpush.msra.mxu0 %v5668
        %v5670 = vand.u32 %v3385, 4294901760
        %v5671 = vsub.f32 %v3385, %v5670
        %v5672 = vand.u32 %v5671, 4294901760
        %5673 = vmatmul.f32.gmra.mxu0 %v5672
        %v5674 = vpop.f32.mrf.mxu0
        %v5675 = vadd.f32 %v5651, %v5674
        %5676 = vdwg.mxu0
        %5677 = vmatpush.msra.mxu0 0.0
        %5678 = vmatpush.msra.mxu0 0.0
        %5679 = vmatpush.msra.mxu0 0.0
        %5680 = vmatpush.msra.mxu0 0.0
        %5681 = vmatpush.msra.mxu0 0.0
        %5682 = vmatpush.msra.mxu0 0.0
        %5683 = vmatpush.msra.mxu0 0.0
        %5684 = vmatpush.msra.mxu0 0.0
        %5685 = vmatpush.msra.mxu0 0.0
        %5686 = vmatpush.msra.mxu0 0.0
        %5687 = vmatpush.msra.mxu0 0.0
        %5688 = vmatpush.msra.mxu0 0.0
        %5689 = vmatpush.msra.mxu0 0.0
        %5690 = vmatpush.msra.mxu0 0.0
        %5691 = vmatpush.msra.mxu0 0.0
        %v5692 = vand.u32 %v3358, 4294901760
        %v5693 = vsub.f32 %v3358, %v5692
        %v5694 = vand.u32 %v5693, 4294901760
        %5695 = vmatpush.msra.mxu0 %v5694
        %v5696 = vand.u32 %v3385, 4294901760
        %5697 = vmatmul.f32.gmra.mxu0 %v5696
        %v5698 = vpop.f32.mrf.mxu0
        %v5699 = vadd.f32 %v5675, %v5698
        %5700 = vdwg.mxu0
        %5701 = vmatpush.msra.mxu0 0.0
        %5702 = vmatpush.msra.mxu0 0.0
        %5703 = vmatpush.msra.mxu0 0.0
        %5704 = vmatpush.msra.mxu0 0.0
        %5705 = vmatpush.msra.mxu0 0.0
        %5706 = vmatpush.msra.mxu0 0.0
        %5707 = vmatpush.msra.mxu0 0.0
        %5708 = vmatpush.msra.mxu0 0.0
        %5709 = vmatpush.msra.mxu0 0.0
        %5710 = vmatpush.msra.mxu0 0.0
        %5711 = vmatpush.msra.mxu0 0.0
        %5712 = vmatpush.msra.mxu0 0.0
        %5713 = vmatpush.msra.mxu0 0.0
        %5714 = vmatpush.msra.mxu0 0.0
        %5715 = vmatpush.msra.mxu0 0.0
        %v5716 = vand.u32 %v3358, 4294901760
        %5717 = vmatpush.msra.mxu0 %v5716
        %v5718 = vand.u32 %v3385, 4294901760
        %5719 = vmatmul.f32.gmra.mxu0 %v5718
        %v5720 = vpop.f32.mrf.mxu0
        %v5721 = vadd.f32 %v5699, %v5720
        %5722 = vdwg.mxu0
        %v5739 = vrot.slane %v3677, 7
        %v5740 = vrot.slane %v3823, 6
        %v5741 = vrot.slane %v3969, 5
        %v5742 = vrot.slane %v4115, 4
        %v5743 = vrot.slane %v4261, 3
        %v5744 = vrot.slane %v4407, 2
        %v5745 = vrot.slane %v4553, 1
        %v5746 = vrot.slane %v4845, 7
        %v5747 = vrot.slane %v4991, 6
        %v5748 = vrot.slane %v5137, 5
        %v5749 = vrot.slane %v5283, 4
        %v5750 = vrot.slane %v5429, 3
        %v5751 = vrot.slane %v5575, 2
        %v5752 = vrot.slane %v5721, 1
        %vm5753 = vcmask 1040384
        %v5754 = vsel %vm5753, %v3531, %v5739
        %vm5755 = vcmask 1042434
        %v5756 = vsel %vm5755, %v5740, %v5741
        %vm5757 = vcmask 1041408
        %v5758 = vsel %vm5757, %v5754, %v5756
        %vm5759 = vcmask 1044484
        %v5760 = vsel %vm5759, %v5742, %v5743
        %vm5761 = vcmask 1046534
        %v5762 = vsel %vm5761, %v5744, %v5745
        %vm5763 = vcmask 1045508
        %v5764 = vsel %vm5763, %v5760, %v5762
        %vm5765 = vcmask 1043456
        %v5766 = vsel %vm5765, %v5758, %v5764
        %v5767 = vsel %vm5753, %v4699, %v5746
        %v5768 = vsel %vm5755, %v5747, %v5748
        %v5769 = vsel %vm5757, %v5767, %v5768
        %v5770 = vsel %vm5759, %v5749, %v5750
        %v5771 = vsel %vm5761, %v5751, %v5752
        %v5772 = vsel %vm5763, %v5770, %v5771
        %v5773 = vsel %vm5765, %v5769, %v5772
        %5776 = vst [vmem:[%s304] sm:$0xff] %v5766
        %5777 = vst [vmem:[%s304 + $0x8] sm:$0xff] %v5773
        %s5778 = sand.u32 %s163, 1
        %s5779 = scalar_lea.sflag [#allocation5], %s5778
        %s5780 = sand.u32 %s163, 1
        %s5781 = smul.addr %s5780, 128
        %s5782 = scalar_lea.vmem [#allocation6], %s5781
        %s5783 = sand.u32 %s191, 1
        %s5784 = scalar_lea.sflag [#allocation8], %s5783
        %s5785 = sand.u32 %s191, 1
        %s5786 = smul.addr %s5785, 16
        %s5787 = scalar_lea.vmem [#allocation7], %s5786
        // Predicated region
        $region45: #{tpu_custom_call.1} parent=39 // pred_check
          %p5788 = pneg %p173
        $region46: #{tpu_custom_call.1} parent=39 // pred_check_branch
          %5790 = sbr.rel (%p5788) target = $region48
        $region47: #{tpu_custom_call.1} parent=39 // pred_region
          %s5791 = smul.u32 16, %s34
          %5793 = vsyncadd %s5779, 0
          %s5794 = smul.addr %s33, 16
          %s5795 = sadd.s32 %s5791, %s5794
          %s5796 = smul.addr %s5795, 8
          %s5797 = scalar_lea.hbm %s5, %s5796
          %s5799 = sshll.u32 %s5782, 4
          %s5800 = int_to_ptr.vmem [resolvable:$true] %s5799
          %s5801 = sshll.u32 %s5797, 4
          %s5802 = int_to_ptr.hbm [resolvable:$true] %s5801
          %5804 = dma.vmem_to_hbm [thread:$0]  %s5800, 2048, %s5802, %s5779
        $region48: #{tpu_custom_call.1} parent=39 // pred_fallthru
          _
        // Predicated region
        $region49: #{tpu_custom_call.1} parent=39 // pred_check
          %p5805 = pneg %p201
        $region50: #{tpu_custom_call.1} parent=39 // pred_check_branch
          %5807 = sbr.rel (%p5805) target = $region52
        $region51: #{tpu_custom_call.1} parent=39 // pred_region
          %s5808 = smul.u32 16, %s34
          %5810 = vsyncadd %s5784, 0
          %s5811 = smul.addr %s33, 16
          %s5812 = sadd.s32 %s5808, %s5811
          %s5813 = scalar_lea.hbm %s6, %s5812
          %s5815 = sshll.u32 %s5787, 4
          %s5816 = int_to_ptr.vmem [resolvable:$true] %s5815
          %s5817 = sshll.u32 %s5813, 4
          %s5818 = int_to_ptr.hbm [resolvable:$true] %s5817
          %5820 = dma.vmem_to_hbm [thread:$0]  %s5816, 256, %s5818, %s5784
        $region52: #{tpu_custom_call.1} parent=39 // pred_fallthru
          _
      $region40: #{tpu_custom_call.1} parent=5 // pred_fallthru
        _
      %p5821 = scmp.le.s32.totalorder 2, %s24
      // Predicated region
      $region53: #{tpu_custom_call.1} parent=5 // pred_check
        %p5822 = pneg %p5821
      $region54: #{tpu_custom_call.1} parent=5 // pred_check_branch
        %5824 = sbr.rel (%p5822) target = $region56
      $region55: #{tpu_custom_call.1} parent=5 // pred_region
        %s5825 = ssub.s32 %s24, 2
        // Predicated region
        $region57: #{tpu_custom_call.1} parent=55 // pred_check
          %p5826 = pneg %p179
        $region58: #{tpu_custom_call.1} parent=55 // pred_check_branch
          %5828 = sbr.rel (%p5826) target = $region60
        $region59: #{tpu_custom_call.1} parent=55 // pred_region
          %s5829 = sand.u32 %s164, 1
          %s5830 = scalar_lea.sflag [#allocation5], %s5829
          %s5831 = sand.u32 %s164, 1
          %s5832 = smul.addr %s5831, 128
          %s5833 = scalar_lea.vmem [#allocation6], %s5832
          %5835 = dma.done %s5830, 2048
        $region60: #{tpu_custom_call.1} parent=55 // pred_fallthru
          _
        // Predicated region
        $region61: #{tpu_custom_call.1} parent=55 // pred_check
          %p5836 = pneg %p207
        $region62: #{tpu_custom_call.1} parent=55 // pred_check_branch
          %5838 = sbr.rel (%p5836) target = $region64
        $region63: #{tpu_custom_call.1} parent=55 // pred_region
          %s5839 = sand.u32 %s192, 1
          %s5840 = scalar_lea.sflag [#allocation8], %s5839
          %s5841 = sand.u32 %s192, 1
          %s5842 = smul.addr %s5841, 16
          %s5843 = scalar_lea.vmem [#allocation7], %s5842
          %5845 = dma.done %s5840, 256
        $region64: #{tpu_custom_call.1} parent=55 // pred_fallthru
          _
      $region56: #{tpu_custom_call.1} parent=5 // pred_fallthru
        _
    $region6: #{tpu_custom_call.1} parent=1 // loop_footer
      %s28 = sadd.s32 1, %s24
    $region7: #{tpu_custom_call.1} parent=1 // loop_footer_branch
      %23 = sbr.rel target = $region3
    $region8: #{tpu_custom_call.1} parent=1 // loop_exit
      _
    %5846 = vsyncpa [#allocation4], 1
    %s5847 = scalar_lea.sflag [#allocation4], 1
    %5848 = vsyncpa %s5847, 1
    %5849 = vsyncpa [#allocation5], 1
    %s5850 = scalar_lea.sflag [#allocation5], 1
    %5851 = vsyncpa %s5850, 1
    %5852 = vsyncpa [#allocation8], 1
    %s5853 = scalar_lea.sflag [#allocation8], 1
    %5854 = vsyncpa %s5853, 1

</llo_original>
